<compile_context>
chip_gen: v6e
topology: v6e:2x2x1
jax: 0.10.0
libtpu: 0.0.40
codegen_flags: <defaults>
</compile_context>

<pallas_src>
import numpy as np
import jax
import jax.numpy as jnp
from jax.experimental import pallas as pl
from jax.experimental.pallas import tpu as pltpu

# MXU operand dtype; accumulation and all elementwise math stay float32.
MXU_DTYPE = jnp.bfloat16


# ----------------------------- Pallas kernels --------------------------------

def _make_deconv_bn_relu_kernel(nblk, cout):
    """Fused (nblk*cout, Keff) @ (Keff, R) matmul + BatchNorm(batch stats) + ReLU.

    Output rows are `nblk` blocks of `cout` channels (blocks = the 4 sub-pixel
    phases of a stride-2 deconv, or the 16 spatial taps of the 1x1->4x4 layer);
    columns are batch*spatial positions.  Per-channel BN statistics therefore
    reduce over the lane axis and over the nblk row blocks.
    """
    def kernel(w_ref, p_ref, g_ref, b_ref, o_ref):
        out = jnp.dot(w_ref[...], p_ref[...],
                      preferred_element_type=jnp.float32)        # (nblk*cout, R) f32
        r = out.shape[1]
        s1 = jnp.sum(out, axis=1, keepdims=True)                 # (nblk*cout, 1)
        s2 = jnp.sum(out * out, axis=1, keepdims=True)
        cs1 = s1[0:cout, :]
        cs2 = s2[0:cout, :]
        for k in range(1, nblk):                                 # combine phase/tap blocks
            cs1 = cs1 + s1[k * cout:(k + 1) * cout, :]
            cs2 = cs2 + s2[k * cout:(k + 1) * cout, :]
        n = float(nblk * r)                                      # = B * H_out * W_out
        mean = cs1 / n
        var = cs2 / n - mean * mean                              # biased var: torch training BN
        inv = jax.lax.rsqrt(var + 1e-5)
        scale = g_ref[...] * inv                                 # (cout, 1)
        shift = b_ref[...] - mean * scale
        for k in range(nblk):
            blk = out[k * cout:(k + 1) * cout, :]
            y = jnp.maximum(blk * scale + shift, 0.0)
            o_ref[k * cout:(k + 1) * cout, :] = y.astype(o_ref.dtype)
    return kernel


def _deconv_tanh_kernel(w_ref, p_ref, o_ref):
    out = jnp.dot(w_ref[...], p_ref[...], preferred_element_type=jnp.float32)
    o_ref[...] = jnp.tanh(out)


def _vmem_spec():
    return pl.BlockSpec(memory_space=pltpu.MemorySpace.VMEM)


def _fused_deconv_bn_relu(wm, pm, gamma, beta, nblk, cout):
    m, r = wm.shape[0], pm.shape[1]
    return pl.pallas_call(
        _make_deconv_bn_relu_kernel(nblk, cout),
        out_shape=jax.ShapeDtypeStruct((m, r), MXU_DTYPE),
        in_specs=[_vmem_spec(), _vmem_spec(), _vmem_spec(), _vmem_spec()],
        out_specs=_vmem_spec(),
    )(wm, pm, gamma, beta)


def _fused_deconv_tanh(wm, pm):
    m, r = wm.shape[0], pm.shape[1]
    return pl.pallas_call(
        _deconv_tanh_kernel,
        out_shape=jax.ShapeDtypeStruct((m, r), jnp.float32),
        in_specs=[_vmem_spec(), _vmem_spec()],
        out_specs=_vmem_spec(),
    )(wm, pm)


# ------------------------ layout glue (plain JAX / XLA) -----------------------

def _im2col3x3_T(a):
    """(B,H,W,C) NHWC -> patch matrix (9*C, B*H*W); row=(dh*3+dw)*C+ci, col=b*H*W+m*W+n."""
    B, H, W, C = a.shape
    ap = jnp.pad(a, ((0, 0), (1, 1), (1, 1), (0, 0)))
    wins = [ap[:, dh:dh + H, dw:dw + W, :] for dh in range(3) for dw in range(3)]
    p = jnp.stack(wins, axis=0)                                  # (9, B, H, W, C)
    return p.transpose(0, 4, 1, 2, 3).reshape(9 * C, B * H * W)


def _phases_to_nhwc(y, cout, B, H, W):
    """(4*cout, B*H*W) phase-blocked output -> (B, 2H, 2W, cout) NHWC."""
    a = y.reshape(2, 2, cout, B, H, W).transpose(3, 4, 0, 5, 1, 2)   # (B,H,rh,W,rw,C)
    return a.reshape(B, 2 * H, 2 * W, cout)


def _phases_to_nchw(y, cout, B, H, W):
    """(4*cout, B*H*W) phase-blocked output -> (B, cout, 2H, 2W) NCHW."""
    a = y.reshape(2, 2, cout, B, H, W).transpose(3, 2, 4, 0, 5, 1)   # (B,C,H,rh,W,rw)
    return a.reshape(B, cout, 2 * H, 2 * W)


# (output phase r, 3x3-window tap d) -> ConvTranspose2d kernel index k, for
# stride=2, K=4, pad=1:   out[2m+0] = xp[m]*W[3] + xp[m+1]*W[1]
#                         out[2m+1] = xp[m+1]*W[2] + xp[m+2]*W[0]
# where xp is the input zero-padded by 1 on each side.
_PHASE_TAP_TO_K = {(0, 0): 3, (0, 1): 1, (1, 1): 2, (1, 2): 0}


def _pack_w_stride2(w):
    """torch ConvTranspose2d weight (Cin, Cout, 4, 4) -> (4*Cout, 9*Cin) phase matrix."""
    cin, cout = w.shape[0], w.shape[1]
    wm = jnp.zeros((4 * cout, 9 * cin), jnp.float32)
    for (rh, dh), kh in _PHASE_TAP_TO_K.items():
        for (rw, dw), kw in _PHASE_TAP_TO_K.items():
            blk = w[:, :, kh, kw].T                              # (Cout, Cin)
            r0 = (rh * 2 + rw) * cout
            c0 = (dh * 3 + dw) * cin
            wm = wm.at[r0:r0 + cout, c0:c0 + cin].set(blk)
    return wm


def _pack_w_first(w):
    """Layer 1 (stride=1, pad=0, 1x1 input): (Cin, Cout, 4, 4) -> (16*Cout, Cin),
    row = (kh*4+kw)*Cout + co."""
    cin = w.shape[0]
    return jnp.transpose(w, (2, 3, 1, 0)).reshape(-1, cin)


def pack_params(p):
    cast = lambda a: a.astype(MXU_DTYPE)
    col = lambda a: a.reshape(-1, 1).astype(jnp.float32)
    return {
        "w1m": cast(_pack_w_first(p["w1"])),
        "w2m": cast(_pack_w_stride2(p["w2"])),
        "w3m": cast(_pack_w_stride2(p["w3"])),
        "w4m": cast(_pack_w_stride2(p["w4"])),
        "g1": col(p["g1"]), "b1": col(p["b1"]),
        "g2": col(p["g2"]), "b2": col(p["b2"]),
        "g3": col(p["g3"]), "b3": col(p["b3"]),
    }


# ----------------------------- DCGenerator forward ----------------------------

def dc_generator_forward(z_nchw, pp):
    """z: (B, noise_size, 1, 1) NCHW  ->  (B, 3, 32, 32) NCHW."""
    B = z_nchw.shape[0]
    c1, c2, c3 = pp["g1"].shape[0], pp["g2"].shape[0], pp["g3"].shape[0]

    # deconv1: 1x1 -> 4x4 (stride 1, pad 0) + BN + ReLU
    p1 = jnp.transpose(z_nchw.reshape(B, -1), (1, 0)).astype(MXU_DTYPE)      # (Cin, B)
    y1 = _fused_deconv_bn_relu(pp["w1m"], p1, pp["g1"], pp["b1"], nblk=16, cout=c1)
    a1 = y1.reshape(4, 4, c1, B).transpose(3, 0, 1, 2)                       # (B,4,4,c1)

    # deconv2: 4x4 -> 8x8 (stride 2, pad 1) + BN + ReLU
    y2 = _fused_deconv_bn_relu(pp["w2m"], _im2col3x3_T(a1), pp["g2"], pp["b2"],
                               nblk=4, cout=c2)
    a2 = _phases_to_nhwc(y2, c2, B, 4, 4)                                    # (B,8,8,c2)

    # deconv3: 8x8 -> 16x16 + BN + ReLU
    y3 = _fused_deconv_bn_relu(pp["w3m"], _im2col3x3_T(a2), pp["g3"], pp["b3"],
                               nblk=4, cout=c3)
    a3 = _phases_to_nhwc(y3, c3, B, 8, 8)                                    # (B,16,16,c3)

    # deconv4: 16x16 -> 32x32 + tanh
    y4 = _fused_deconv_tanh(pp["w4m"], _im2col3x3_T(a3))                     # (12, B*256)
    return _phases_to_nchw(y4, 3, B, 16, 16)                                 # (B,3,32,32)


# ----------------------- pure-JAX reference (for checking) --------------------

def reference_forward(z, p):
    """Mirrors the kernel's bf16 MXU operands / f32 accumulation so the check is tight."""
    def deconv_ref(x, W, stride, padding):
        K = W.shape[-1]
        rhs = jnp.transpose(W, (1, 0, 2, 3))[:, :, ::-1, ::-1]   # (Cout, Cin, K, K) flipped
        return jax.lax.conv_general_dilated(
            x.astype(MXU_DTYPE), rhs.astype(MXU_DTYPE),
            window_strides=(1, 1),
            padding=[(K - 1 - padding, K - 1 - padding)] * 2,
            lhs_dilation=(stride, stride),
            dimension_numbers=("NCHW", "OIHW", "NCHW"),
            preferred_element_type=jnp.float32)

    def bn_relu_ref(x, g, b):
        mean = jnp.mean(x, axis=(0, 2, 3), keepdims=True)
        var = jnp.mean((x - mean) ** 2, axis=(0, 2, 3), keepdims=True)
        y = (x - mean) / jnp.sqrt(var + 1e-5)
        y = y * g.reshape(1, -1, 1, 1) + b.reshape(1, -1, 1, 1)
        return jnp.maximum(y, 0.0)

    x = bn_relu_ref(deconv_ref(z, p["w1"], 1, 0), p["g1"], p["b1"])
    x = bn_relu_ref(deconv_ref(x, p["w2"], 2, 1), p["g2"], p["b2"])
    x = bn_relu_ref(deconv_ref(x, p["w3"], 2, 1), p["g3"], p["b3"])
    return jnp.tanh(deconv_ref(x, p["w4"], 2, 1))


# ------------------------------------ main ------------------------------------

if __name__ == "__main__":
    noise_size, conv_dim, B = 32, 8, 2

    key = jax.random.PRNGKey(0)
    kz, k1, k2, k3, k4 = jax.random.split(key, 5)
    z = jax.random.normal(kz, (B, noise_size, 1, 1), dtype=jnp.float32)

    params = {
        # ConvTranspose2d weights: (Cin, Cout, K, K)
        "w1": 0.05 * jax.random.normal(k1, (noise_size, conv_dim * 4, 4, 4), jnp.float32),
        "w2": 0.05 * jax.random.normal(k2, (conv_dim * 4, conv_dim * 2, 4, 4), jnp.float32),
        "w3": 0.05 * jax.random.normal(k3, (conv_dim * 2, conv_dim, 4, 4), jnp.float32),
        "w4": 0.05 * jax.random.normal(k4, (conv_dim, 3, 4, 4), jnp.float32),
        # BatchNorm affine params (PyTorch default init: gamma=1, beta=0)
        "g1": jnp.ones((conv_dim * 4,), jnp.float32), "b1": jnp.zeros((conv_dim * 4,), jnp.float32),
        "g2": jnp.ones((conv_dim * 2,), jnp.float32), "b2": jnp.zeros((conv_dim * 2,), jnp.float32),
        "g3": jnp.ones((conv_dim,), jnp.float32),     "b3": jnp.zeros((conv_dim,), jnp.float32),
    }

    packed = pack_params(params)                       # pack weights once, outside jit
    fwd = jax.jit(dc_generator_forward)

    out = jax.block_until_ready(fwd(z, packed))
    assert out.shape == (B, 3, 32, 32), out.shape

    ref = jax.block_until_ready(reference_forward(z, params))
    np.testing.assert_allclose(np.asarray(out), np.asarray(ref), rtol=2e-2, atol=2e-2)

    print("KERNEL_OK")
</pallas_src>

<mosaic_0001>
module attributes {stable_mosaic.version = 11 : i64} {
  func.func @kernel(%arg0: memref<512x32xbf16, #tpu.memory_space<vmem>>, %arg1: memref<32x2xbf16, #tpu.memory_space<vmem>>, %arg2: memref<32x1xf32, #tpu.memory_space<vmem>>, %arg3: memref<32x1xf32, #tpu.memory_space<vmem>>, %arg4: memref<512x2xbf16, #tpu.memory_space<vmem>>) attributes {dimension_semantics = [], scalar_prefetch = 0 : i64, scratch_operands = 0 : i64, tpu.core_type = #tpu.core_type<tc>} {
    %c0 = arith.constant 0 : index
    %c0_0 = arith.constant 0 : index
    %0 = vector.load %arg0[%c0, %c0_0] : memref<512x32xbf16, #tpu.memory_space<vmem>>, vector<512x32xbf16>
    %c0_1 = arith.constant 0 : index
    %c0_2 = arith.constant 0 : index
    %1 = vector.load %arg1[%c0_1, %c0_2] : memref<32x2xbf16, #tpu.memory_space<vmem>>, vector<32x2xbf16>
    %cst = arith.constant dense<0.000000e+00> : vector<512x2xf32>
    %2 = tpu.matmul %0, %1, %cst {dimension_numbers = #tpu.dot_dimension_numbers<[1], [0], [0], [1], [0, 0, 1, 1], [], []>} : vector<512x32xbf16>, vector<32x2xbf16>, vector<512x2xf32> -> vector<512x2xf32>
    %cst_3 = arith.constant dense<0.000000e+00> : vector<512xf32>
    %3 = vector.multi_reduction <add>, %2, %cst_3 [1] : vector<512x2xf32> to vector<512xf32>
    %4 = vector.shape_cast %3 : vector<512xf32> to vector<512x1xf32>
    %5 = arith.mulf %2, %2 : vector<512x2xf32>
    %cst_4 = arith.constant dense<0.000000e+00> : vector<512xf32>
    %6 = vector.multi_reduction <add>, %5, %cst_4 [1] : vector<512x2xf32> to vector<512xf32>
    %7 = vector.shape_cast %6 : vector<512xf32> to vector<512x1xf32>
    %8 = vector.extract_strided_slice %4 {offsets = [0, 0], sizes = [32, 1], strides = [1, 1]} : vector<512x1xf32> to vector<32x1xf32>
    %9 = vector.extract_strided_slice %7 {offsets = [0, 0], sizes = [32, 1], strides = [1, 1]} : vector<512x1xf32> to vector<32x1xf32>
    %10 = vector.extract_strided_slice %4 {offsets = [32, 0], sizes = [32, 1], strides = [1, 1]} : vector<512x1xf32> to vector<32x1xf32>
    %11 = arith.addf %8, %10 : vector<32x1xf32>
    %12 = vector.extract_strided_slice %7 {offsets = [32, 0], sizes = [32, 1], strides = [1, 1]} : vector<512x1xf32> to vector<32x1xf32>
    %13 = arith.addf %9, %12 : vector<32x1xf32>
    %14 = vector.extract_strided_slice %4 {offsets = [64, 0], sizes = [32, 1], strides = [1, 1]} : vector<512x1xf32> to vector<32x1xf32>
    %15 = arith.addf %11, %14 : vector<32x1xf32>
    %16 = vector.extract_strided_slice %7 {offsets = [64, 0], sizes = [32, 1], strides = [1, 1]} : vector<512x1xf32> to vector<32x1xf32>
    %17 = arith.addf %13, %16 : vector<32x1xf32>
    %18 = vector.extract_strided_slice %4 {offsets = [96, 0], sizes = [32, 1], strides = [1, 1]} : vector<512x1xf32> to vector<32x1xf32>
    %19 = arith.addf %15, %18 : vector<32x1xf32>
    %20 = vector.extract_strided_slice %7 {offsets = [96, 0], sizes = [32, 1], strides = [1, 1]} : vector<512x1xf32> to vector<32x1xf32>
    %21 = arith.addf %17, %20 : vector<32x1xf32>
    %22 = vector.extract_strided_slice %4 {offsets = [128, 0], sizes = [32, 1], strides = [1, 1]} : vector<512x1xf32> to vector<32x1xf32>
    %23 = arith.addf %19, %22 : vector<32x1xf32>
    %24 = vector.extract_strided_slice %7 {offsets = [128, 0], sizes = [32, 1], strides = [1, 1]} : vector<512x1xf32> to vector<32x1xf32>
    %25 = arith.addf %21, %24 : vector<32x1xf32>
    %26 = vector.extract_strided_slice %4 {offsets = [160, 0], sizes = [32, 1], strides = [1, 1]} : vector<512x1xf32> to vector<32x1xf32>
    %27 = arith.addf %23, %26 : vector<32x1xf32>
    %28 = vector.extract_strided_slice %7 {offsets = [160, 0], sizes = [32, 1], strides = [1, 1]} : vector<512x1xf32> to vector<32x1xf32>
    %29 = arith.addf %25, %28 : vector<32x1xf32>
    %30 = vector.extract_strided_slice %4 {offsets = [192, 0], sizes = [32, 1], strides = [1, 1]} : vector<512x1xf32> to vector<32x1xf32>
    %31 = arith.addf %27, %30 : vector<32x1xf32>
    %32 = vector.extract_strided_slice %7 {offsets = [192, 0], sizes = [32, 1], strides = [1, 1]} : vector<512x1xf32> to vector<32x1xf32>
    %33 = arith.addf %29, %32 : vector<32x1xf32>
    %34 = vector.extract_strided_slice %4 {offsets = [224, 0], sizes = [32, 1], strides = [1, 1]} : vector<512x1xf32> to vector<32x1xf32>
    %35 = arith.addf %31, %34 : vector<32x1xf32>
    %36 = vector.extract_strided_slice %7 {offsets = [224, 0], sizes = [32, 1], strides = [1, 1]} : vector<512x1xf32> to vector<32x1xf32>
    %37 = arith.addf %33, %36 : vector<32x1xf32>
    %38 = vector.extract_strided_slice %4 {offsets = [256, 0], sizes = [32, 1], strides = [1, 1]} : vector<512x1xf32> to vector<32x1xf32>
    %39 = arith.addf %35, %38 : vector<32x1xf32>
    %40 = vector.extract_strided_slice %7 {offsets = [256, 0], sizes = [32, 1], strides = [1, 1]} : vector<512x1xf32> to vector<32x1xf32>
    %41 = arith.addf %37, %40 : vector<32x1xf32>
    %42 = vector.extract_strided_slice %4 {offsets = [288, 0], sizes = [32, 1], strides = [1, 1]} : vector<512x1xf32> to vector<32x1xf32>
    %43 = arith.addf %39, %42 : vector<32x1xf32>
    %44 = vector.extract_strided_slice %7 {offsets = [288, 0], sizes = [32, 1], strides = [1, 1]} : vector<512x1xf32> to vector<32x1xf32>
    %45 = arith.addf %41, %44 : vector<32x1xf32>
    %46 = vector.extract_strided_slice %4 {offsets = [320, 0], sizes = [32, 1], strides = [1, 1]} : vector<512x1xf32> to vector<32x1xf32>
    %47 = arith.addf %43, %46 : vector<32x1xf32>
    %48 = vector.extract_strided_slice %7 {offsets = [320, 0], sizes = [32, 1], strides = [1, 1]} : vector<512x1xf32> to vector<32x1xf32>
    %49 = arith.addf %45, %48 : vector<32x1xf32>
    %50 = vector.extract_strided_slice %4 {offsets = [352, 0], sizes = [32, 1], strides = [1, 1]} : vector<512x1xf32> to vector<32x1xf32>
    %51 = arith.addf %47, %50 : vector<32x1xf32>
    %52 = vector.extract_strided_slice %7 {offsets = [352, 0], sizes = [32, 1], strides = [1, 1]} : vector<512x1xf32> to vector<32x1xf32>
    %53 = arith.addf %49, %52 : vector<32x1xf32>
    %54 = vector.extract_strided_slice %4 {offsets = [384, 0], sizes = [32, 1], strides = [1, 1]} : vector<512x1xf32> to vector<32x1xf32>
    %55 = arith.addf %51, %54 : vector<32x1xf32>
    %56 = vector.extract_strided_slice %7 {offsets = [384, 0], sizes = [32, 1], strides = [1, 1]} : vector<512x1xf32> to vector<32x1xf32>
    %57 = arith.addf %53, %56 : vector<32x1xf32>
    %58 = vector.extract_strided_slice %4 {offsets = [416, 0], sizes = [32, 1], strides = [1, 1]} : vector<512x1xf32> to vector<32x1xf32>
    %59 = arith.addf %55, %58 : vector<32x1xf32>
    %60 = vector.extract_strided_slice %7 {offsets = [416, 0], sizes = [32, 1], strides = [1, 1]} : vector<512x1xf32> to vector<32x1xf32>
    %61 = arith.addf %57, %60 : vector<32x1xf32>
    %62 = vector.extract_strided_slice %4 {offsets = [448, 0], sizes = [32, 1], strides = [1, 1]} : vector<512x1xf32> to vector<32x1xf32>
    %63 = arith.addf %59, %62 : vector<32x1xf32>
    %64 = vector.extract_strided_slice %7 {offsets = [448, 0], sizes = [32, 1], strides = [1, 1]} : vector<512x1xf32> to vector<32x1xf32>
    %65 = arith.addf %61, %64 : vector<32x1xf32>
    %66 = vector.extract_strided_slice %4 {offsets = [480, 0], sizes = [32, 1], strides = [1, 1]} : vector<512x1xf32> to vector<32x1xf32>
    %67 = arith.addf %63, %66 : vector<32x1xf32>
    %68 = vector.extract_strided_slice %7 {offsets = [480, 0], sizes = [32, 1], strides = [1, 1]} : vector<512x1xf32> to vector<32x1xf32>
    %69 = arith.addf %65, %68 : vector<32x1xf32>
    %cst_5 = arith.constant 3.200000e+01 : f32
    %70 = vector.broadcast %cst_5 : f32 to vector<32x1xf32>
    %71 = arith.divf %67, %70 : vector<32x1xf32>
    %cst_6 = arith.constant 3.200000e+01 : f32
    %72 = vector.broadcast %cst_6 : f32 to vector<32x1xf32>
    %73 = arith.divf %69, %72 : vector<32x1xf32>
    %74 = arith.mulf %71, %71 : vector<32x1xf32>
    %75 = arith.subf %73, %74 : vector<32x1xf32>
    %cst_7 = arith.constant 9.99999974E-6 : f32
    %76 = vector.broadcast %cst_7 : f32 to vector<32x1xf32>
    %77 = arith.addf %75, %76 : vector<32x1xf32>
    %78 = math.rsqrt %77 : vector<32x1xf32>
    %c0_8 = arith.constant 0 : index
    %c0_9 = arith.constant 0 : index
    %79 = vector.load %arg2[%c0_8, %c0_9] : memref<32x1xf32, #tpu.memory_space<vmem>>, vector<32x1xf32>
    %80 = arith.mulf %79, %78 : vector<32x1xf32>
    %c0_10 = arith.constant 0 : index
    %c0_11 = arith.constant 0 : index
    %81 = vector.load %arg3[%c0_10, %c0_11] : memref<32x1xf32, #tpu.memory_space<vmem>>, vector<32x1xf32>
    %82 = arith.mulf %71, %80 : vector<32x1xf32>
    %83 = arith.subf %81, %82 : vector<32x1xf32>
    %84 = vector.extract_strided_slice %2 {offsets = [0, 0], sizes = [32, 2], strides = [1, 1]} : vector<512x2xf32> to vector<32x2xf32>
    %85 = vector.broadcast %80 : vector<32x1xf32> to vector<32x2xf32>
    %86 = arith.mulf %84, %85 : vector<32x2xf32>
    %87 = vector.broadcast %83 : vector<32x1xf32> to vector<32x2xf32>
    %88 = arith.addf %86, %87 : vector<32x2xf32>
    %cst_12 = arith.constant 0.000000e+00 : f32
    %89 = vector.broadcast %cst_12 : f32 to vector<32x2xf32>
    %90 = arith.maximumf %88, %89 : vector<32x2xf32>
    %91 = arith.truncf %90 : vector<32x2xf32> to vector<32x2xbf16>
    %c0_13 = arith.constant 0 : index
    %c0_14 = arith.constant 0 : index
    %92 = vector.load %arg4[%c0_13, %c0_14] : memref<512x2xbf16, #tpu.memory_space<vmem>>, vector<32x2xbf16>
    tpu.vector_store %arg4[%c0_13, %c0_14], %91 {strides = array<i32>} : memref<512x2xbf16, #tpu.memory_space<vmem>>, vector<32x2xbf16>,
    %93 = vector.extract_strided_slice %2 {offsets = [32, 0], sizes = [32, 2], strides = [1, 1]} : vector<512x2xf32> to vector<32x2xf32>
    %94 = vector.broadcast %80 : vector<32x1xf32> to vector<32x2xf32>
    %95 = arith.mulf %93, %94 : vector<32x2xf32>
    %96 = vector.broadcast %83 : vector<32x1xf32> to vector<32x2xf32>
    %97 = arith.addf %95, %96 : vector<32x2xf32>
    %cst_15 = arith.constant 0.000000e+00 : f32
    %98 = vector.broadcast %cst_15 : f32 to vector<32x2xf32>
    %99 = arith.maximumf %97, %98 : vector<32x2xf32>
    %100 = arith.truncf %99 : vector<32x2xf32> to vector<32x2xbf16>
    %c32 = arith.constant 32 : index
    %c0_16 = arith.constant 0 : index
    %101 = vector.load %arg4[%c32, %c0_16] : memref<512x2xbf16, #tpu.memory_space<vmem>>, vector<32x2xbf16>
    tpu.vector_store %arg4[%c32, %c0_16], %100 {strides = array<i32>} : memref<512x2xbf16, #tpu.memory_space<vmem>>, vector<32x2xbf16>,
    %102 = vector.extract_strided_slice %2 {offsets = [64, 0], sizes = [32, 2], strides = [1, 1]} : vector<512x2xf32> to vector<32x2xf32>
    %103 = vector.broadcast %80 : vector<32x1xf32> to vector<32x2xf32>
    %104 = arith.mulf %102, %103 : vector<32x2xf32>
    %105 = vector.broadcast %83 : vector<32x1xf32> to vector<32x2xf32>
    %106 = arith.addf %104, %105 : vector<32x2xf32>
    %cst_17 = arith.constant 0.000000e+00 : f32
    %107 = vector.broadcast %cst_17 : f32 to vector<32x2xf32>
    %108 = arith.maximumf %106, %107 : vector<32x2xf32>
    %109 = arith.truncf %108 : vector<32x2xf32> to vector<32x2xbf16>
    %c64 = arith.constant 64 : index
    %c0_18 = arith.constant 0 : index
    %110 = vector.load %arg4[%c64, %c0_18] : memref<512x2xbf16, #tpu.memory_space<vmem>>, vector<32x2xbf16>
    tpu.vector_store %arg4[%c64, %c0_18], %109 {strides = array<i32>} : memref<512x2xbf16, #tpu.memory_space<vmem>>, vector<32x2xbf16>,
    %111 = vector.extract_strided_slice %2 {offsets = [96, 0], sizes = [32, 2], strides = [1, 1]} : vector<512x2xf32> to vector<32x2xf32>
    %112 = vector.broadcast %80 : vector<32x1xf32> to vector<32x2xf32>
    %113 = arith.mulf %111, %112 : vector<32x2xf32>
    %114 = vector.broadcast %83 : vector<32x1xf32> to vector<32x2xf32>
    %115 = arith.addf %113, %114 : vector<32x2xf32>
    %cst_19 = arith.constant 0.000000e+00 : f32
    %116 = vector.broadcast %cst_19 : f32 to vector<32x2xf32>
    %117 = arith.maximumf %115, %116 : vector<32x2xf32>
    %118 = arith.truncf %117 : vector<32x2xf32> to vector<32x2xbf16>
    %c96 = arith.constant 96 : index
    %c0_20 = arith.constant 0 : index
    %119 = vector.load %arg4[%c96, %c0_20] : memref<512x2xbf16, #tpu.memory_space<vmem>>, vector<32x2xbf16>
    tpu.vector_store %arg4[%c96, %c0_20], %118 {strides = array<i32>} : memref<512x2xbf16, #tpu.memory_space<vmem>>, vector<32x2xbf16>,
    %120 = vector.extract_strided_slice %2 {offsets = [128, 0], sizes = [32, 2], strides = [1, 1]} : vector<512x2xf32> to vector<32x2xf32>
    %121 = vector.broadcast %80 : vector<32x1xf32> to vector<32x2xf32>
    %122 = arith.mulf %120, %121 : vector<32x2xf32>
    %123 = vector.broadcast %83 : vector<32x1xf32> to vector<32x2xf32>
    %124 = arith.addf %122, %123 : vector<32x2xf32>
    %cst_21 = arith.constant 0.000000e+00 : f32
    %125 = vector.broadcast %cst_21 : f32 to vector<32x2xf32>
    %126 = arith.maximumf %124, %125 : vector<32x2xf32>
    %127 = arith.truncf %126 : vector<32x2xf32> to vector<32x2xbf16>
    %c128 = arith.constant 128 : index
    %c0_22 = arith.constant 0 : index
    %128 = vector.load %arg4[%c128, %c0_22] : memref<512x2xbf16, #tpu.memory_space<vmem>>, vector<32x2xbf16>
    tpu.vector_store %arg4[%c128, %c0_22], %127 {strides = array<i32>} : memref<512x2xbf16, #tpu.memory_space<vmem>>, vector<32x2xbf16>,
    %129 = vector.extract_strided_slice %2 {offsets = [160, 0], sizes = [32, 2], strides = [1, 1]} : vector<512x2xf32> to vector<32x2xf32>
    %130 = vector.broadcast %80 : vector<32x1xf32> to vector<32x2xf32>
    %131 = arith.mulf %129, %130 : vector<32x2xf32>
    %132 = vector.broadcast %83 : vector<32x1xf32> to vector<32x2xf32>
    %133 = arith.addf %131, %132 : vector<32x2xf32>
    %cst_23 = arith.constant 0.000000e+00 : f32
    %134 = vector.broadcast %cst_23 : f32 to vector<32x2xf32>
    %135 = arith.maximumf %133, %134 : vector<32x2xf32>
    %136 = arith.truncf %135 : vector<32x2xf32> to vector<32x2xbf16>
    %c160 = arith.constant 160 : index
    %c0_24 = arith.constant 0 : index
    %137 = vector.load %arg4[%c160, %c0_24] : memref<512x2xbf16, #tpu.memory_space<vmem>>, vector<32x2xbf16>
    tpu.vector_store %arg4[%c160, %c0_24], %136 {strides = array<i32>} : memref<512x2xbf16, #tpu.memory_space<vmem>>, vector<32x2xbf16>,
    %138 = vector.extract_strided_slice %2 {offsets = [192, 0], sizes = [32, 2], strides = [1, 1]} : vector<512x2xf32> to vector<32x2xf32>
    %139 = vector.broadcast %80 : vector<32x1xf32> to vector<32x2xf32>
    %140 = arith.mulf %138, %139 : vector<32x2xf32>
    %141 = vector.broadcast %83 : vector<32x1xf32> to vector<32x2xf32>
    %142 = arith.addf %140, %141 : vector<32x2xf32>
    %cst_25 = arith.constant 0.000000e+00 : f32
    %143 = vector.broadcast %cst_25 : f32 to vector<32x2xf32>
    %144 = arith.maximumf %142, %143 : vector<32x2xf32>
    %145 = arith.truncf %144 : vector<32x2xf32> to vector<32x2xbf16>
    %c192 = arith.constant 192 : index
    %c0_26 = arith.constant 0 : index
    %146 = vector.load %arg4[%c192, %c0_26] : memref<512x2xbf16, #tpu.memory_space<vmem>>, vector<32x2xbf16>
    tpu.vector_store %arg4[%c192, %c0_26], %145 {strides = array<i32>} : memref<512x2xbf16, #tpu.memory_space<vmem>>, vector<32x2xbf16>,
    %147 = vector.extract_strided_slice %2 {offsets = [224, 0], sizes = [32, 2], strides = [1, 1]} : vector<512x2xf32> to vector<32x2xf32>
    %148 = vector.broadcast %80 : vector<32x1xf32> to vector<32x2xf32>
    %149 = arith.mulf %147, %148 : vector<32x2xf32>
    %150 = vector.broadcast %83 : vector<32x1xf32> to vector<32x2xf32>
    %151 = arith.addf %149, %150 : vector<32x2xf32>
    %cst_27 = arith.constant 0.000000e+00 : f32
    %152 = vector.broadcast %cst_27 : f32 to vector<32x2xf32>
    %153 = arith.maximumf %151, %152 : vector<32x2xf32>
    %154 = arith.truncf %153 : vector<32x2xf32> to vector<32x2xbf16>
    %c224 = arith.constant 224 : index
    %c0_28 = arith.constant 0 : index
    %155 = vector.load %arg4[%c224, %c0_28] : memref<512x2xbf16, #tpu.memory_space<vmem>>, vector<32x2xbf16>
    tpu.vector_store %arg4[%c224, %c0_28], %154 {strides = array<i32>} : memref<512x2xbf16, #tpu.memory_space<vmem>>, vector<32x2xbf16>,
    %156 = vector.extract_strided_slice %2 {offsets = [256, 0], sizes = [32, 2], strides = [1, 1]} : vector<512x2xf32> to vector<32x2xf32>
    %157 = vector.broadcast %80 : vector<32x1xf32> to vector<32x2xf32>
    %158 = arith.mulf %156, %157 : vector<32x2xf32>
    %159 = vector.broadcast %83 : vector<32x1xf32> to vector<32x2xf32>
    %160 = arith.addf %158, %159 : vector<32x2xf32>
    %cst_29 = arith.constant 0.000000e+00 : f32
    %161 = vector.broadcast %cst_29 : f32 to vector<32x2xf32>
    %162 = arith.maximumf %160, %161 : vector<32x2xf32>
    %163 = arith.truncf %162 : vector<32x2xf32> to vector<32x2xbf16>
    %c256 = arith.constant 256 : index
    %c0_30 = arith.constant 0 : index
    %164 = vector.load %arg4[%c256, %c0_30] : memref<512x2xbf16, #tpu.memory_space<vmem>>, vector<32x2xbf16>
    tpu.vector_store %arg4[%c256, %c0_30], %163 {strides = array<i32>} : memref<512x2xbf16, #tpu.memory_space<vmem>>, vector<32x2xbf16>,
    %165 = vector.extract_strided_slice %2 {offsets = [288, 0], sizes = [32, 2], strides = [1, 1]} : vector<512x2xf32> to vector<32x2xf32>
    %166 = vector.broadcast %80 : vector<32x1xf32> to vector<32x2xf32>
    %167 = arith.mulf %165, %166 : vector<32x2xf32>
    %168 = vector.broadcast %83 : vector<32x1xf32> to vector<32x2xf32>
    %169 = arith.addf %167, %168 : vector<32x2xf32>
    %cst_31 = arith.constant 0.000000e+00 : f32
    %170 = vector.broadcast %cst_31 : f32 to vector<32x2xf32>
    %171 = arith.maximumf %169, %170 : vector<32x2xf32>
    %172 = arith.truncf %171 : vector<32x2xf32> to vector<32x2xbf16>
    %c288 = arith.constant 288 : index
    %c0_32 = arith.constant 0 : index
    %173 = vector.load %arg4[%c288, %c0_32] : memref<512x2xbf16, #tpu.memory_space<vmem>>, vector<32x2xbf16>
    tpu.vector_store %arg4[%c288, %c0_32], %172 {strides = array<i32>} : memref<512x2xbf16, #tpu.memory_space<vmem>>, vector<32x2xbf16>,
    %174 = vector.extract_strided_slice %2 {offsets = [320, 0], sizes = [32, 2], strides = [1, 1]} : vector<512x2xf32> to vector<32x2xf32>
    %175 = vector.broadcast %80 : vector<32x1xf32> to vector<32x2xf32>
    %176 = arith.mulf %174, %175 : vector<32x2xf32>
    %177 = vector.broadcast %83 : vector<32x1xf32> to vector<32x2xf32>
    %178 = arith.addf %176, %177 : vector<32x2xf32>
    %cst_33 = arith.constant 0.000000e+00 : f32
    %179 = vector.broadcast %cst_33 : f32 to vector<32x2xf32>
    %180 = arith.maximumf %178, %179 : vector<32x2xf32>
    %181 = arith.truncf %180 : vector<32x2xf32> to vector<32x2xbf16>
    %c320 = arith.constant 320 : index
    %c0_34 = arith.constant 0 : index
    %182 = vector.load %arg4[%c320, %c0_34] : memref<512x2xbf16, #tpu.memory_space<vmem>>, vector<32x2xbf16>
    tpu.vector_store %arg4[%c320, %c0_34], %181 {strides = array<i32>} : memref<512x2xbf16, #tpu.memory_space<vmem>>, vector<32x2xbf16>,
    %183 = vector.extract_strided_slice %2 {offsets = [352, 0], sizes = [32, 2], strides = [1, 1]} : vector<512x2xf32> to vector<32x2xf32>
    %184 = vector.broadcast %80 : vector<32x1xf32> to vector<32x2xf32>
    %185 = arith.mulf %183, %184 : vector<32x2xf32>
    %186 = vector.broadcast %83 : vector<32x1xf32> to vector<32x2xf32>
    %187 = arith.addf %185, %186 : vector<32x2xf32>
    %cst_35 = arith.constant 0.000000e+00 : f32
    %188 = vector.broadcast %cst_35 : f32 to vector<32x2xf32>
    %189 = arith.maximumf %187, %188 : vector<32x2xf32>
    %190 = arith.truncf %189 : vector<32x2xf32> to vector<32x2xbf16>
    %c352 = arith.constant 352 : index
    %c0_36 = arith.constant 0 : index
    %191 = vector.load %arg4[%c352, %c0_36] : memref<512x2xbf16, #tpu.memory_space<vmem>>, vector<32x2xbf16>
    tpu.vector_store %arg4[%c352, %c0_36], %190 {strides = array<i32>} : memref<512x2xbf16, #tpu.memory_space<vmem>>, vector<32x2xbf16>,
    %192 = vector.extract_strided_slice %2 {offsets = [384, 0], sizes = [32, 2], strides = [1, 1]} : vector<512x2xf32> to vector<32x2xf32>
    %193 = vector.broadcast %80 : vector<32x1xf32> to vector<32x2xf32>
    %194 = arith.mulf %192, %193 : vector<32x2xf32>
    %195 = vector.broadcast %83 : vector<32x1xf32> to vector<32x2xf32>
    %196 = arith.addf %194, %195 : vector<32x2xf32>
    %cst_37 = arith.constant 0.000000e+00 : f32
    %197 = vector.broadcast %cst_37 : f32 to vector<32x2xf32>
    %198 = arith.maximumf %196, %197 : vector<32x2xf32>
    %199 = arith.truncf %198 : vector<32x2xf32> to vector<32x2xbf16>
    %c384 = arith.constant 384 : index
    %c0_38 = arith.constant 0 : index
    %200 = vector.load %arg4[%c384, %c0_38] : memref<512x2xbf16, #tpu.memory_space<vmem>>, vector<32x2xbf16>
    tpu.vector_store %arg4[%c384, %c0_38], %199 {strides = array<i32>} : memref<512x2xbf16, #tpu.memory_space<vmem>>, vector<32x2xbf16>,
    %201 = vector.extract_strided_slice %2 {offsets = [416, 0], sizes = [32, 2], strides = [1, 1]} : vector<512x2xf32> to vector<32x2xf32>
    %202 = vector.broadcast %80 : vector<32x1xf32> to vector<32x2xf32>
    %203 = arith.mulf %201, %202 : vector<32x2xf32>
    %204 = vector.broadcast %83 : vector<32x1xf32> to vector<32x2xf32>
    %205 = arith.addf %203, %204 : vector<32x2xf32>
    %cst_39 = arith.constant 0.000000e+00 : f32
    %206 = vector.broadcast %cst_39 : f32 to vector<32x2xf32>
    %207 = arith.maximumf %205, %206 : vector<32x2xf32>
    %208 = arith.truncf %207 : vector<32x2xf32> to vector<32x2xbf16>
    %c416 = arith.constant 416 : index
    %c0_40 = arith.constant 0 : index
    %209 = vector.load %arg4[%c416, %c0_40] : memref<512x2xbf16, #tpu.memory_space<vmem>>, vector<32x2xbf16>
    tpu.vector_store %arg4[%c416, %c0_40], %208 {strides = array<i32>} : memref<512x2xbf16, #tpu.memory_space<vmem>>, vector<32x2xbf16>,
    %210 = vector.extract_strided_slice %2 {offsets = [448, 0], sizes = [32, 2], strides = [1, 1]} : vector<512x2xf32> to vector<32x2xf32>
    %211 = vector.broadcast %80 : vector<32x1xf32> to vector<32x2xf32>
    %212 = arith.mulf %210, %211 : vector<32x2xf32>
    %213 = vector.broadcast %83 : vector<32x1xf32> to vector<32x2xf32>
    %214 = arith.addf %212, %213 : vector<32x2xf32>
    %cst_41 = arith.constant 0.000000e+00 : f32
    %215 = vector.broadcast %cst_41 : f32 to vector<32x2xf32>
    %216 = arith.maximumf %214, %215 : vector<32x2xf32>
    %217 = arith.truncf %216 : vector<32x2xf32> to vector<32x2xbf16>
    %c448 = arith.constant 448 : index
    %c0_42 = arith.constant 0 : index
    %218 = vector.load %arg4[%c448, %c0_42] : memref<512x2xbf16, #tpu.memory_space<vmem>>, vector<32x2xbf16>
    tpu.vector_store %arg4[%c448, %c0_42], %217 {strides = array<i32>} : memref<512x2xbf16, #tpu.memory_space<vmem>>, vector<32x2xbf16>,
    %219 = vector.extract_strided_slice %2 {offsets = [480, 0], sizes = [32, 2], strides = [1, 1]} : vector<512x2xf32> to vector<32x2xf32>
    %220 = vector.broadcast %80 : vector<32x1xf32> to vector<32x2xf32>
    %221 = arith.mulf %219, %220 : vector<32x2xf32>
    %222 = vector.broadcast %83 : vector<32x1xf32> to vector<32x2xf32>
    %223 = arith.addf %221, %222 : vector<32x2xf32>
    %cst_43 = arith.constant 0.000000e+00 : f32
    %224 = vector.broadcast %cst_43 : f32 to vector<32x2xf32>
    %225 = arith.maximumf %223, %224 : vector<32x2xf32>
    %226 = arith.truncf %225 : vector<32x2xf32> to vector<32x2xbf16>
    %c480 = arith.constant 480 : index
    %c0_44 = arith.constant 0 : index
    %227 = vector.load %arg4[%c480, %c0_44] : memref<512x2xbf16, #tpu.memory_space<vmem>>, vector<32x2xbf16>
    tpu.vector_store %arg4[%c480, %c0_44], %226 {strides = array<i32>} : memref<512x2xbf16, #tpu.memory_space<vmem>>, vector<32x2xbf16>,
    return
  }
}

module attributes {stable_mosaic.version = 11 : i64} {
  func.func @kernel(%arg0: memref<64x288xbf16, #tpu.memory_space<vmem>>, %arg1: memref<288x32xbf16, #tpu.memory_space<vmem>>, %arg2: memref<16x1xf32, #tpu.memory_space<vmem>>, %arg3: memref<16x1xf32, #tpu.memory_space<vmem>>, %arg4: memref<64x32xbf16, #tpu.memory_space<vmem>>) attributes {dimension_semantics = [], scalar_prefetch = 0 : i64, scratch_operands = 0 : i64, tpu.core_type = #tpu.core_type<tc>} {
    %c0 = arith.constant 0 : index
    %c0_0 = arith.constant 0 : index
    %0 = vector.load %arg0[%c0, %c0_0] : memref<64x288xbf16, #tpu.memory_space<vmem>>, vector<64x288xbf16>
    %c0_1 = arith.constant 0 : index
    %c0_2 = arith.constant 0 : index
    %1 = vector.load %arg1[%c0_1, %c0_2] : memref<288x32xbf16, #tpu.memory_space<vmem>>, vector<288x32xbf16>
    %cst = arith.constant dense<0.000000e+00> : vector<64x32xf32>
    %2 = tpu.matmul %0, %1, %cst {dimension_numbers = #tpu.dot_dimension_numbers<[1], [0], [0], [1], [0, 0, 1, 1], [], []>} : vector<64x288xbf16>, vector<288x32xbf16>, vector<64x32xf32> -> vector<64x32xf32>
    %cst_3 = arith.constant dense<0.000000e+00> : vector<64xf32>
    %3 = vector.multi_reduction <add>, %2, %cst_3 [1] : vector<64x32xf32> to vector<64xf32>
    %4 = vector.shape_cast %3 : vector<64xf32> to vector<64x1xf32>
    %5 = arith.mulf %2, %2 : vector<64x32xf32>
    %cst_4 = arith.constant dense<0.000000e+00> : vector<64xf32>
    %6 = vector.multi_reduction <add>, %5, %cst_4 [1] : vector<64x32xf32> to vector<64xf32>
    %7 = vector.shape_cast %6 : vector<64xf32> to vector<64x1xf32>
    %8 = vector.extract_strided_slice %4 {offsets = [0, 0], sizes = [16, 1], strides = [1, 1]} : vector<64x1xf32> to vector<16x1xf32>
    %9 = vector.extract_strided_slice %7 {offsets = [0, 0], sizes = [16, 1], strides = [1, 1]} : vector<64x1xf32> to vector<16x1xf32>
    %10 = vector.extract_strided_slice %4 {offsets = [16, 0], sizes = [16, 1], strides = [1, 1]} : vector<64x1xf32> to vector<16x1xf32>
    %11 = arith.addf %8, %10 : vector<16x1xf32>
    %12 = vector.extract_strided_slice %7 {offsets = [16, 0], sizes = [16, 1], strides = [1, 1]} : vector<64x1xf32> to vector<16x1xf32>
    %13 = arith.addf %9, %12 : vector<16x1xf32>
    %14 = vector.extract_strided_slice %4 {offsets = [32, 0], sizes = [16, 1], strides = [1, 1]} : vector<64x1xf32> to vector<16x1xf32>
    %15 = arith.addf %11, %14 : vector<16x1xf32>
    %16 = vector.extract_strided_slice %7 {offsets = [32, 0], sizes = [16, 1], strides = [1, 1]} : vector<64x1xf32> to vector<16x1xf32>
    %17 = arith.addf %13, %16 : vector<16x1xf32>
    %18 = vector.extract_strided_slice %4 {offsets = [48, 0], sizes = [16, 1], strides = [1, 1]} : vector<64x1xf32> to vector<16x1xf32>
    %19 = arith.addf %15, %18 : vector<16x1xf32>
    %20 = vector.extract_strided_slice %7 {offsets = [48, 0], sizes = [16, 1], strides = [1, 1]} : vector<64x1xf32> to vector<16x1xf32>
    %21 = arith.addf %17, %20 : vector<16x1xf32>
    %cst_5 = arith.constant 1.280000e+02 : f32
    %22 = vector.broadcast %cst_5 : f32 to vector<16x1xf32>
    %23 = arith.divf %19, %22 : vector<16x1xf32>
    %cst_6 = arith.constant 1.280000e+02 : f32
    %24 = vector.broadcast %cst_6 : f32 to vector<16x1xf32>
    %25 = arith.divf %21, %24 : vector<16x1xf32>
    %26 = arith.mulf %23, %23 : vector<16x1xf32>
    %27 = arith.subf %25, %26 : vector<16x1xf32>
    %cst_7 = arith.constant 9.99999974E-6 : f32
    %28 = vector.broadcast %cst_7 : f32 to vector<16x1xf32>
    %29 = arith.addf %27, %28 : vector<16x1xf32>
    %30 = math.rsqrt %29 : vector<16x1xf32>
    %c0_8 = arith.constant 0 : index
    %c0_9 = arith.constant 0 : index
    %31 = vector.load %arg2[%c0_8, %c0_9] : memref<16x1xf32, #tpu.memory_space<vmem>>, vector<16x1xf32>
    %32 = arith.mulf %31, %30 : vector<16x1xf32>
    %c0_10 = arith.constant 0 : index
    %c0_11 = arith.constant 0 : index
    %33 = vector.load %arg3[%c0_10, %c0_11] : memref<16x1xf32, #tpu.memory_space<vmem>>, vector<16x1xf32>
    %34 = arith.mulf %23, %32 : vector<16x1xf32>
    %35 = arith.subf %33, %34 : vector<16x1xf32>
    %36 = vector.extract_strided_slice %2 {offsets = [0, 0], sizes = [16, 32], strides = [1, 1]} : vector<64x32xf32> to vector<16x32xf32>
    %37 = vector.broadcast %32 : vector<16x1xf32> to vector<16x32xf32>
    %38 = arith.mulf %36, %37 : vector<16x32xf32>
    %39 = vector.broadcast %35 : vector<16x1xf32> to vector<16x32xf32>
    %40 = arith.addf %38, %39 : vector<16x32xf32>
    %cst_12 = arith.constant 0.000000e+00 : f32
    %41 = vector.broadcast %cst_12 : f32 to vector<16x32xf32>
    %42 = arith.maximumf %40, %41 : vector<16x32xf32>
    %43 = arith.truncf %42 : vector<16x32xf32> to vector<16x32xbf16>
    %c0_13 = arith.constant 0 : index
    %c0_14 = arith.constant 0 : index
    %44 = vector.load %arg4[%c0_13, %c0_14] : memref<64x32xbf16, #tpu.memory_space<vmem>>, vector<16x32xbf16>
    tpu.vector_store %arg4[%c0_13, %c0_14], %43 {strides = array<i32>} : memref<64x32xbf16, #tpu.memory_space<vmem>>, vector<16x32xbf16>,
    %45 = vector.extract_strided_slice %2 {offsets = [16, 0], sizes = [16, 32], strides = [1, 1]} : vector<64x32xf32> to vector<16x32xf32>
    %46 = vector.broadcast %32 : vector<16x1xf32> to vector<16x32xf32>
    %47 = arith.mulf %45, %46 : vector<16x32xf32>
    %48 = vector.broadcast %35 : vector<16x1xf32> to vector<16x32xf32>
    %49 = arith.addf %47, %48 : vector<16x32xf32>
    %cst_15 = arith.constant 0.000000e+00 : f32
    %50 = vector.broadcast %cst_15 : f32 to vector<16x32xf32>
    %51 = arith.maximumf %49, %50 : vector<16x32xf32>
    %52 = arith.truncf %51 : vector<16x32xf32> to vector<16x32xbf16>
    %c16 = arith.constant 16 : index
    %c0_16 = arith.constant 0 : index
    %53 = vector.load %arg4[%c16, %c0_16] : memref<64x32xbf16, #tpu.memory_space<vmem>>, vector<16x32xbf16>
    tpu.vector_store %arg4[%c16, %c0_16], %52 {strides = array<i32>} : memref<64x32xbf16, #tpu.memory_space<vmem>>, vector<16x32xbf16>,
    %54 = vector.extract_strided_slice %2 {offsets = [32, 0], sizes = [16, 32], strides = [1, 1]} : vector<64x32xf32> to vector<16x32xf32>
    %55 = vector.broadcast %32 : vector<16x1xf32> to vector<16x32xf32>
    %56 = arith.mulf %54, %55 : vector<16x32xf32>
    %57 = vector.broadcast %35 : vector<16x1xf32> to vector<16x32xf32>
    %58 = arith.addf %56, %57 : vector<16x32xf32>
    %cst_17 = arith.constant 0.000000e+00 : f32
    %59 = vector.broadcast %cst_17 : f32 to vector<16x32xf32>
    %60 = arith.maximumf %58, %59 : vector<16x32xf32>
    %61 = arith.truncf %60 : vector<16x32xf32> to vector<16x32xbf16>
    %c32 = arith.constant 32 : index
    %c0_18 = arith.constant 0 : index
    %62 = vector.load %arg4[%c32, %c0_18] : memref<64x32xbf16, #tpu.memory_space<vmem>>, vector<16x32xbf16>
    tpu.vector_store %arg4[%c32, %c0_18], %61 {strides = array<i32>} : memref<64x32xbf16, #tpu.memory_space<vmem>>, vector<16x32xbf16>,
    %63 = vector.extract_strided_slice %2 {offsets = [48, 0], sizes = [16, 32], strides = [1, 1]} : vector<64x32xf32> to vector<16x32xf32>
    %64 = vector.broadcast %32 : vector<16x1xf32> to vector<16x32xf32>
    %65 = arith.mulf %63, %64 : vector<16x32xf32>
    %66 = vector.broadcast %35 : vector<16x1xf32> to vector<16x32xf32>
    %67 = arith.addf %65, %66 : vector<16x32xf32>
    %cst_19 = arith.constant 0.000000e+00 : f32
    %68 = vector.broadcast %cst_19 : f32 to vector<16x32xf32>
    %69 = arith.maximumf %67, %68 : vector<16x32xf32>
    %70 = arith.truncf %69 : vector<16x32xf32> to vector<16x32xbf16>
    %c48 = arith.constant 48 : index
    %c0_20 = arith.constant 0 : index
    %71 = vector.load %arg4[%c48, %c0_20] : memref<64x32xbf16, #tpu.memory_space<vmem>>, vector<16x32xbf16>
    tpu.vector_store %arg4[%c48, %c0_20], %70 {strides = array<i32>} : memref<64x32xbf16, #tpu.memory_space<vmem>>, vector<16x32xbf16>,
    return
  }
}

module attributes {stable_mosaic.version = 11 : i64} {
  func.func @kernel(%arg0: memref<32x144xbf16, #tpu.memory_space<vmem>>, %arg1: memref<144x128xbf16, #tpu.memory_space<vmem>>, %arg2: memref<8x1xf32, #tpu.memory_space<vmem>>, %arg3: memref<8x1xf32, #tpu.memory_space<vmem>>, %arg4: memref<32x128xbf16, #tpu.memory_space<vmem>>) attributes {dimension_semantics = [], scalar_prefetch = 0 : i64, scratch_operands = 0 : i64, tpu.core_type = #tpu.core_type<tc>} {
    %c0 = arith.constant 0 : index
    %c0_0 = arith.constant 0 : index
    %0 = vector.load %arg0[%c0, %c0_0] : memref<32x144xbf16, #tpu.memory_space<vmem>>, vector<32x144xbf16>
    %c0_1 = arith.constant 0 : index
    %c0_2 = arith.constant 0 : index
    %1 = vector.load %arg1[%c0_1, %c0_2] : memref<144x128xbf16, #tpu.memory_space<vmem>>, vector<144x128xbf16>
    %cst = arith.constant dense<0.000000e+00> : vector<32x128xf32>
    %2 = tpu.matmul %0, %1, %cst {dimension_numbers = #tpu.dot_dimension_numbers<[1], [0], [0], [1], [0, 0, 1, 1], [], []>} : vector<32x144xbf16>, vector<144x128xbf16>, vector<32x128xf32> -> vector<32x128xf32>
    %cst_3 = arith.constant dense<0.000000e+00> : vector<32xf32>
    %3 = vector.multi_reduction <add>, %2, %cst_3 [1] : vector<32x128xf32> to vector<32xf32>
    %4 = vector.shape_cast %3 : vector<32xf32> to vector<32x1xf32>
    %5 = arith.mulf %2, %2 : vector<32x128xf32>
    %cst_4 = arith.constant dense<0.000000e+00> : vector<32xf32>
    %6 = vector.multi_reduction <add>, %5, %cst_4 [1] : vector<32x128xf32> to vector<32xf32>
    %7 = vector.shape_cast %6 : vector<32xf32> to vector<32x1xf32>
    %8 = vector.extract_strided_slice %4 {offsets = [0, 0], sizes = [8, 1], strides = [1, 1]} : vector<32x1xf32> to vector<8x1xf32>
    %9 = vector.extract_strided_slice %7 {offsets = [0, 0], sizes = [8, 1], strides = [1, 1]} : vector<32x1xf32> to vector<8x1xf32>
    %10 = vector.extract_strided_slice %4 {offsets = [8, 0], sizes = [8, 1], strides = [1, 1]} : vector<32x1xf32> to vector<8x1xf32>
    %11 = arith.addf %8, %10 : vector<8x1xf32>
    %12 = vector.extract_strided_slice %7 {offsets = [8, 0], sizes = [8, 1], strides = [1, 1]} : vector<32x1xf32> to vector<8x1xf32>
    %13 = arith.addf %9, %12 : vector<8x1xf32>
    %14 = vector.extract_strided_slice %4 {offsets = [16, 0], sizes = [8, 1], strides = [1, 1]} : vector<32x1xf32> to vector<8x1xf32>
    %15 = arith.addf %11, %14 : vector<8x1xf32>
    %16 = vector.extract_strided_slice %7 {offsets = [16, 0], sizes = [8, 1], strides = [1, 1]} : vector<32x1xf32> to vector<8x1xf32>
    %17 = arith.addf %13, %16 : vector<8x1xf32>
    %18 = vector.extract_strided_slice %4 {offsets = [24, 0], sizes = [8, 1], strides = [1, 1]} : vector<32x1xf32> to vector<8x1xf32>
    %19 = arith.addf %15, %18 : vector<8x1xf32>
    %20 = vector.extract_strided_slice %7 {offsets = [24, 0], sizes = [8, 1], strides = [1, 1]} : vector<32x1xf32> to vector<8x1xf32>
    %21 = arith.addf %17, %20 : vector<8x1xf32>
    %cst_5 = arith.constant 5.120000e+02 : f32
    %22 = vector.broadcast %cst_5 : f32 to vector<8x1xf32>
    %23 = arith.divf %19, %22 : vector<8x1xf32>
    %cst_6 = arith.constant 5.120000e+02 : f32
    %24 = vector.broadcast %cst_6 : f32 to vector<8x1xf32>
    %25 = arith.divf %21, %24 : vector<8x1xf32>
    %26 = arith.mulf %23, %23 : vector<8x1xf32>
    %27 = arith.subf %25, %26 : vector<8x1xf32>
    %cst_7 = arith.constant 9.99999974E-6 : f32
    %28 = vector.broadcast %cst_7 : f32 to vector<8x1xf32>
    %29 = arith.addf %27, %28 : vector<8x1xf32>
    %30 = math.rsqrt %29 : vector<8x1xf32>
    %c0_8 = arith.constant 0 : index
    %c0_9 = arith.constant 0 : index
    %31 = vector.load %arg2[%c0_8, %c0_9] : memref<8x1xf32, #tpu.memory_space<vmem>>, vector<8x1xf32>
    %32 = arith.mulf %31, %30 : vector<8x1xf32>
    %c0_10 = arith.constant 0 : index
    %c0_11 = arith.constant 0 : index
    %33 = vector.load %arg3[%c0_10, %c0_11] : memref<8x1xf32, #tpu.memory_space<vmem>>, vector<8x1xf32>
    %34 = arith.mulf %23, %32 : vector<8x1xf32>
    %35 = arith.subf %33, %34 : vector<8x1xf32>
    %36 = vector.extract_strided_slice %2 {offsets = [0, 0], sizes = [8, 128], strides = [1, 1]} : vector<32x128xf32> to vector<8x128xf32>
    %37 = vector.broadcast %32 : vector<8x1xf32> to vector<8x128xf32>
    %38 = arith.mulf %36, %37 : vector<8x128xf32>
    %39 = vector.broadcast %35 : vector<8x1xf32> to vector<8x128xf32>
    %40 = arith.addf %38, %39 : vector<8x128xf32>
    %cst_12 = arith.constant 0.000000e+00 : f32
    %41 = vector.broadcast %cst_12 : f32 to vector<8x128xf32>
    %42 = arith.maximumf %40, %41 : vector<8x128xf32>
    %43 = arith.truncf %42 : vector<8x128xf32> to vector<8x128xbf16>
    %c0_13 = arith.constant 0 : index
    %c0_14 = arith.constant 0 : index
    %44 = vector.load %arg4[%c0_13, %c0_14] : memref<32x128xbf16, #tpu.memory_space<vmem>>, vector<8x128xbf16>
    tpu.vector_store %arg4[%c0_13, %c0_14], %43 {strides = array<i32>} : memref<32x128xbf16, #tpu.memory_space<vmem>>, vector<8x128xbf16>,
    %45 = vector.extract_strided_slice %2 {offsets = [8, 0], sizes = [8, 128], strides = [1, 1]} : vector<32x128xf32> to vector<8x128xf32>
    %46 = vector.broadcast %32 : vector<8x1xf32> to vector<8x128xf32>
    %47 = arith.mulf %45, %46 : vector<8x128xf32>
    %48 = vector.broadcast %35 : vector<8x1xf32> to vector<8x128xf32>
    %49 = arith.addf %47, %48 : vector<8x128xf32>
    %cst_15 = arith.constant 0.000000e+00 : f32
    %50 = vector.broadcast %cst_15 : f32 to vector<8x128xf32>
    %51 = arith.maximumf %49, %50 : vector<8x128xf32>
    %52 = arith.truncf %51 : vector<8x128xf32> to vector<8x128xbf16>
    %c8 = arith.constant 8 : index
    %c0_16 = arith.constant 0 : index
    %53 = vector.load %arg4[%c8, %c0_16] : memref<32x128xbf16, #tpu.memory_space<vmem>>, vector<8x128xbf16>
    tpu.vector_store %arg4[%c8, %c0_16], %52 {strides = array<i32>} : memref<32x128xbf16, #tpu.memory_space<vmem>>, vector<8x128xbf16>,
    %54 = vector.extract_strided_slice %2 {offsets = [16, 0], sizes = [8, 128], strides = [1, 1]} : vector<32x128xf32> to vector<8x128xf32>
    %55 = vector.broadcast %32 : vector<8x1xf32> to vector<8x128xf32>
    %56 = arith.mulf %54, %55 : vector<8x128xf32>
    %57 = vector.broadcast %35 : vector<8x1xf32> to vector<8x128xf32>
    %58 = arith.addf %56, %57 : vector<8x128xf32>
    %cst_17 = arith.constant 0.000000e+00 : f32
    %59 = vector.broadcast %cst_17 : f32 to vector<8x128xf32>
    %60 = arith.maximumf %58, %59 : vector<8x128xf32>
    %61 = arith.truncf %60 : vector<8x128xf32> to vector<8x128xbf16>
    %c16 = arith.constant 16 : index
    %c0_18 = arith.constant 0 : index
    %62 = vector.load %arg4[%c16, %c0_18] : memref<32x128xbf16, #tpu.memory_space<vmem>>, vector<8x128xbf16>
    tpu.vector_store %arg4[%c16, %c0_18], %61 {strides = array<i32>} : memref<32x128xbf16, #tpu.memory_space<vmem>>, vector<8x128xbf16>,
    %63 = vector.extract_strided_slice %2 {offsets = [24, 0], sizes = [8, 128], strides = [1, 1]} : vector<32x128xf32> to vector<8x128xf32>
    %64 = vector.broadcast %32 : vector<8x1xf32> to vector<8x128xf32>
    %65 = arith.mulf %63, %64 : vector<8x128xf32>
    %66 = vector.broadcast %35 : vector<8x1xf32> to vector<8x128xf32>
    %67 = arith.addf %65, %66 : vector<8x128xf32>
    %cst_19 = arith.constant 0.000000e+00 : f32
    %68 = vector.broadcast %cst_19 : f32 to vector<8x128xf32>
    %69 = arith.maximumf %67, %68 : vector<8x128xf32>
    %70 = arith.truncf %69 : vector<8x128xf32> to vector<8x128xbf16>
    %c24 = arith.constant 24 : index
    %c0_20 = arith.constant 0 : index
    %71 = vector.load %arg4[%c24, %c0_20] : memref<32x128xbf16, #tpu.memory_space<vmem>>, vector<8x128xbf16>
    tpu.vector_store %arg4[%c24, %c0_20], %70 {strides = array<i32>} : memref<32x128xbf16, #tpu.memory_space<vmem>>, vector<8x128xbf16>,
    return
  }
}

module attributes {stable_mosaic.version = 11 : i64} {
  func.func @_deconv_tanh_kernel(%arg0: memref<12x72xbf16, #tpu.memory_space<vmem>>, %arg1: memref<72x512xbf16, #tpu.memory_space<vmem>>, %arg2: memref<12x512xf32, #tpu.memory_space<vmem>>) attributes {dimension_semantics = [], scalar_prefetch = 0 : i64, scratch_operands = 0 : i64, tpu.core_type = #tpu.core_type<tc>} {
    %c0 = arith.constant 0 : index
    %c0_0 = arith.constant 0 : index
    %0 = vector.load %arg0[%c0, %c0_0] : memref<12x72xbf16, #tpu.memory_space<vmem>>, vector<12x72xbf16>
    %c0_1 = arith.constant 0 : index
    %c0_2 = arith.constant 0 : index
    %1 = vector.load %arg1[%c0_1, %c0_2] : memref<72x512xbf16, #tpu.memory_space<vmem>>, vector<72x512xbf16>
    %cst = arith.constant dense<0.000000e+00> : vector<12x512xf32>
    %2 = tpu.matmul %0, %1, %cst {dimension_numbers = #tpu.dot_dimension_numbers<[1], [0], [0], [1], [0, 0, 1, 1], [], []>} : vector<12x72xbf16>, vector<72x512xbf16>, vector<12x512xf32> -> vector<12x512xf32>
    %3 = math.tanh %2 : vector<12x512xf32>
    %c0_3 = arith.constant 0 : index
    %c0_4 = arith.constant 0 : index
    %4 = vector.load %arg2[%c0_3, %c0_4] : memref<12x512xf32, #tpu.memory_space<vmem>>, vector<12x512xf32>
    tpu.vector_store %arg2[%c0_3, %c0_4], %3 {strides = array<i32>} : memref<12x512xf32, #tpu.memory_space<vmem>>, vector<12x512xf32>,
    return
  }
}

</mosaic_0001>

<llo_original>
// kernel: dc_generator_forward.4
$region0: #{dc_generator_forward.4}
  #allocation0 [shape = 'u32[]', space=smem, size = 0x4, offset = 0x4, fixed_abs, tag = 'smem constant byte address 0x4 - core index']
  #allocation1 [shape = 'u32[144,128]{1,0:T(1,128)}', space=vmem, size = 0x12000, scoped, tag = 'internal scratch']
  %s0 = inlined_call_operand.vmem [shape: bf16[512,32], index: 0, kind: input, shape index: {}]
  %s1 = inlined_call_operand.vmem [shape: bf16[32,2], index: 1, kind: input, shape index: {}]
  %s2 = inlined_call_operand.vmem [shape: f32[32,1], index: 2, kind: input, shape index: {}]
  %s3 = inlined_call_operand.vmem [shape: f32[32,1], index: 3, kind: input, shape index: {}]
  %s4 = inlined_call_operand.vmem [shape: bf16[512,2], index: 4, kind: output, shape index: {}]
  %s5 = sld [smem:[#allocation0]]
  $region26: #{dc_generator_forward.4} parent=0
    _
  %s7 = ssub.s32 1, %s5
  %s8 = scalar_select 0, %s7, %s5
  // Predicated region
  $region2: #{dc_generator_forward.4} parent=0 // pred_check
    _
  $region3: #{dc_generator_forward.4} parent=0 // pred_check_branch
    %10 = sbr.rel (0) target = $region5
  $region4: #{dc_generator_forward.4} parent=0 // pred_region
    _
  $region5: #{dc_generator_forward.4} parent=0 // pred_fallthru
    _
  // Predicated region
  $region6: #{dc_generator_forward.4} parent=0 // pred_check
    _
  $region7: #{dc_generator_forward.4} parent=0 // pred_check_branch
    %12 = sbr.rel (0) target = $region9
  $region8: #{dc_generator_forward.4} parent=0 // pred_region
    _
  $region9: #{dc_generator_forward.4} parent=0 // pred_fallthru
    _
  // Predicated region
  $region10: #{dc_generator_forward.4} parent=0 // pred_check
    _
  $region11: #{dc_generator_forward.4} parent=0 // pred_check_branch
    %14 = sbr.rel (0) target = $region13
  $region12: #{dc_generator_forward.4} parent=0 // pred_region
    _
  $region13: #{dc_generator_forward.4} parent=0 // pred_fallthru
    _
  // Predicated region
  $region14: #{dc_generator_forward.4} parent=0 // pred_check
    _
  $region15: #{dc_generator_forward.4} parent=0 // pred_check_branch
    %16 = sbr.rel (0) target = $region17
  $region16: #{dc_generator_forward.4} parent=0 // pred_region
    _
  $region17: #{dc_generator_forward.4} parent=0 // pred_fallthru
    _
  %v18 = vld [vmem:[%s0] sm:$0xf]
  %v19 = vld [vmem:[%s0 + $0x4] sm:$0xf]
  %v20 = vld [vmem:[%s0 + $0x8] sm:$0xf]
  %v21 = vld [vmem:[%s0 + $0xc] sm:$0xf]
  %v22 = vld [vmem:[%s0 + $0x10] sm:$0xf]
  %v23 = vld [vmem:[%s0 + $0x14] sm:$0xf]
  %v24 = vld [vmem:[%s0 + $0x18] sm:$0xf]
  %v25 = vld [vmem:[%s0 + $0x1c] sm:$0xf]
  %v26 = vld [vmem:[%s0 + $0x20] sm:$0xf]
  %v27 = vld [vmem:[%s0 + $0x24] sm:$0xf]
  %v28 = vld [vmem:[%s0 + $0x28] sm:$0xf]
  %v29 = vld [vmem:[%s0 + $0x2c] sm:$0xf]
  %v30 = vld [vmem:[%s0 + $0x30] sm:$0xf]
  %v31 = vld [vmem:[%s0 + $0x34] sm:$0xf]
  %v32 = vld [vmem:[%s0 + $0x38] sm:$0xf]
  %v33 = vld [vmem:[%s0 + $0x3c] sm:$0xf]
  %v34 = vld [vmem:[%s0 + $0x40] sm:$0xf]
  %v35 = vld [vmem:[%s0 + $0x44] sm:$0xf]
  %v36 = vld [vmem:[%s0 + $0x48] sm:$0xf]
  %v37 = vld [vmem:[%s0 + $0x4c] sm:$0xf]
  %v38 = vld [vmem:[%s0 + $0x50] sm:$0xf]
  %v39 = vld [vmem:[%s0 + $0x54] sm:$0xf]
  %v40 = vld [vmem:[%s0 + $0x58] sm:$0xf]
  %v41 = vld [vmem:[%s0 + $0x5c] sm:$0xf]
  %v42 = vld [vmem:[%s0 + $0x60] sm:$0xf]
  %v43 = vld [vmem:[%s0 + $0x64] sm:$0xf]
  %v44 = vld [vmem:[%s0 + $0x68] sm:$0xf]
  %v45 = vld [vmem:[%s0 + $0x6c] sm:$0xf]
  %v46 = vld [vmem:[%s0 + $0x70] sm:$0xf]
  %v47 = vld [vmem:[%s0 + $0x74] sm:$0xf]
  %v48 = vld [vmem:[%s0 + $0x78] sm:$0xf]
  %v49 = vld [vmem:[%s0 + $0x7c] sm:$0xf]
  %v50 = vld [vmem:[%s0 + $0x80] sm:$0xf]
  %v51 = vld [vmem:[%s0 + $0x84] sm:$0xf]
  %v52 = vld [vmem:[%s0 + $0x88] sm:$0xf]
  %v53 = vld [vmem:[%s0 + $0x8c] sm:$0xf]
  %v54 = vld [vmem:[%s0 + $0x90] sm:$0xf]
  %v55 = vld [vmem:[%s0 + $0x94] sm:$0xf]
  %v56 = vld [vmem:[%s0 + $0x98] sm:$0xf]
  %v57 = vld [vmem:[%s0 + $0x9c] sm:$0xf]
  %v58 = vld [vmem:[%s0 + $0xa0] sm:$0xf]
  %v59 = vld [vmem:[%s0 + $0xa4] sm:$0xf]
  %v60 = vld [vmem:[%s0 + $0xa8] sm:$0xf]
  %v61 = vld [vmem:[%s0 + $0xac] sm:$0xf]
  %v62 = vld [vmem:[%s0 + $0xb0] sm:$0xf]
  %v63 = vld [vmem:[%s0 + $0xb4] sm:$0xf]
  %v64 = vld [vmem:[%s0 + $0xb8] sm:$0xf]
  %v65 = vld [vmem:[%s0 + $0xbc] sm:$0xf]
  %v66 = vld [vmem:[%s0 + $0xc0] sm:$0xf]
  %v67 = vld [vmem:[%s0 + $0xc4] sm:$0xf]
  %v68 = vld [vmem:[%s0 + $0xc8] sm:$0xf]
  %v69 = vld [vmem:[%s0 + $0xcc] sm:$0xf]
  %v70 = vld [vmem:[%s0 + $0xd0] sm:$0xf]
  %v71 = vld [vmem:[%s0 + $0xd4] sm:$0xf]
  %v72 = vld [vmem:[%s0 + $0xd8] sm:$0xf]
  %v73 = vld [vmem:[%s0 + $0xdc] sm:$0xf]
  %v74 = vld [vmem:[%s0 + $0xe0] sm:$0xf]
  %v75 = vld [vmem:[%s0 + $0xe4] sm:$0xf]
  %v76 = vld [vmem:[%s0 + $0xe8] sm:$0xf]
  %v77 = vld [vmem:[%s0 + $0xec] sm:$0xf]
  %v78 = vld [vmem:[%s0 + $0xf0] sm:$0xf]
  %v79 = vld [vmem:[%s0 + $0xf4] sm:$0xf]
  %v80 = vld [vmem:[%s0 + $0xf8] sm:$0xf]
  %v81 = vld [vmem:[%s0 + $0xfc] sm:$0xf]
  %v82 = vld [vmem:[%s1] sm:$0xf]
  %v83 = vld [vmem:[%s1 + $0x4] sm:$0xf]
  %v84 = vld [vmem:[%s1 + $0x8] sm:$0xf]
  %v85 = vld [vmem:[%s1 + $0xc] sm:$0xf]
  %v150 = vunpack.c.l.b16 %v18
  %v151 = vunpack.c.l.b16 %v19
  %v152 = vunpack.c.l.b16 %v20
  %v153 = vunpack.c.l.b16 %v21
  %v154 = vunpack.c.l.b16 %v22
  %v155 = vunpack.c.l.b16 %v23
  %v156 = vunpack.c.l.b16 %v24
  %v157 = vunpack.c.l.b16 %v25
  %v158 = vunpack.c.l.b16 %v26
  %v159 = vunpack.c.l.b16 %v27
  %v160 = vunpack.c.l.b16 %v28
  %v161 = vunpack.c.l.b16 %v29
  %v162 = vunpack.c.l.b16 %v30
  %v163 = vunpack.c.l.b16 %v31
  %v164 = vunpack.c.l.b16 %v32
  %v165 = vunpack.c.l.b16 %v33
  %v166 = vunpack.c.l.b16 %v34
  %v167 = vunpack.c.l.b16 %v35
  %v168 = vunpack.c.l.b16 %v36
  %v169 = vunpack.c.l.b16 %v37
  %v170 = vunpack.c.l.b16 %v38
  %v171 = vunpack.c.l.b16 %v39
  %v172 = vunpack.c.l.b16 %v40
  %v173 = vunpack.c.l.b16 %v41
  %v174 = vunpack.c.l.b16 %v42
  %v175 = vunpack.c.l.b16 %v43
  %v176 = vunpack.c.l.b16 %v44
  %v177 = vunpack.c.l.b16 %v45
  %v178 = vunpack.c.l.b16 %v46
  %v179 = vunpack.c.l.b16 %v47
  %v180 = vunpack.c.l.b16 %v48
  %v181 = vunpack.c.l.b16 %v49
  %v182 = vunpack.c.l.b16 %v50
  %v183 = vunpack.c.l.b16 %v51
  %v184 = vunpack.c.l.b16 %v52
  %v185 = vunpack.c.l.b16 %v53
  %v186 = vunpack.c.l.b16 %v54
  %v187 = vunpack.c.l.b16 %v55
  %v188 = vunpack.c.l.b16 %v56
  %v189 = vunpack.c.l.b16 %v57
  %v190 = vunpack.c.l.b16 %v58
  %v191 = vunpack.c.l.b16 %v59
  %v192 = vunpack.c.l.b16 %v60
  %v193 = vunpack.c.l.b16 %v61
  %v194 = vunpack.c.l.b16 %v62
  %v195 = vunpack.c.l.b16 %v63
  %v196 = vunpack.c.l.b16 %v64
  %v197 = vunpack.c.l.b16 %v65
  %v198 = vunpack.c.l.b16 %v66
  %v199 = vunpack.c.l.b16 %v67
  %v200 = vunpack.c.l.b16 %v68
  %v201 = vunpack.c.l.b16 %v69
  %v202 = vunpack.c.l.b16 %v70
  %v203 = vunpack.c.l.b16 %v71
  %v204 = vunpack.c.l.b16 %v72
  %v205 = vunpack.c.l.b16 %v73
  %v206 = vunpack.c.l.b16 %v74
  %v207 = vunpack.c.l.b16 %v75
  %v208 = vunpack.c.l.b16 %v76
  %v209 = vunpack.c.l.b16 %v77
  %v210 = vunpack.c.l.b16 %v78
  %v211 = vunpack.c.l.b16 %v79
  %v212 = vunpack.c.l.b16 %v80
  %v213 = vunpack.c.l.b16 %v81
  %v214 = vpack.c.b16 %v151, %v150
  %v215 = vpack.c.b16 %v153, %v152
  %v216 = vpack.c.b16 %v155, %v154
  %v217 = vpack.c.b16 %v157, %v156
  %v218 = vpack.c.b16 %v159, %v158
  %v219 = vpack.c.b16 %v161, %v160
  %v220 = vpack.c.b16 %v163, %v162
  %v221 = vpack.c.b16 %v165, %v164
  %v222 = vpack.c.b16 %v167, %v166
  %v223 = vpack.c.b16 %v169, %v168
  %v224 = vpack.c.b16 %v171, %v170
  %v225 = vpack.c.b16 %v173, %v172
  %v226 = vpack.c.b16 %v175, %v174
  %v227 = vpack.c.b16 %v177, %v176
  %v228 = vpack.c.b16 %v179, %v178
  %v229 = vpack.c.b16 %v181, %v180
  %v230 = vpack.c.b16 %v183, %v182
  %v231 = vpack.c.b16 %v185, %v184
  %v232 = vpack.c.b16 %v187, %v186
  %v233 = vpack.c.b16 %v189, %v188
  %v234 = vpack.c.b16 %v191, %v190
  %v235 = vpack.c.b16 %v193, %v192
  %v236 = vpack.c.b16 %v195, %v194
  %v237 = vpack.c.b16 %v197, %v196
  %v238 = vpack.c.b16 %v199, %v198
  %v239 = vpack.c.b16 %v201, %v200
  %v240 = vpack.c.b16 %v203, %v202
  %v241 = vpack.c.b16 %v205, %v204
  %v242 = vpack.c.b16 %v207, %v206
  %v243 = vpack.c.b16 %v209, %v208
  %v244 = vpack.c.b16 %v211, %v210
  %v245 = vpack.c.b16 %v213, %v212
  %v250 = vunpack.c.l.b16 %v82
  %v251 = vunpack.c.l.b16 %v83
  %v252 = vunpack.c.l.b16 %v84
  %v253 = vunpack.c.l.b16 %v85
  %v254 = vpack.c.b16 %v251, %v250
  %v255 = vpack.c.b16 %v253, %v252
  %vm258 = vcmask 261120
  %v260 = vsel %vm258, %v214, 0
  %v263 = vsel %vm258, %v215, 0
  %v266 = vsel %vm258, %v216, 0
  %v269 = vsel %vm258, %v217, 0
  %v272 = vsel %vm258, %v218, 0
  %v275 = vsel %vm258, %v219, 0
  %v278 = vsel %vm258, %v220, 0
  %v281 = vsel %vm258, %v221, 0
  %v284 = vsel %vm258, %v222, 0
  %v287 = vsel %vm258, %v223, 0
  %v290 = vsel %vm258, %v224, 0
  %v293 = vsel %vm258, %v225, 0
  %v296 = vsel %vm258, %v226, 0
  %v299 = vsel %vm258, %v227, 0
  %v302 = vsel %vm258, %v228, 0
  %v305 = vsel %vm258, %v229, 0
  %v308 = vsel %vm258, %v230, 0
  %v311 = vsel %vm258, %v231, 0
  %v314 = vsel %vm258, %v232, 0
  %v317 = vsel %vm258, %v233, 0
  %v320 = vsel %vm258, %v234, 0
  %v323 = vsel %vm258, %v235, 0
  %v326 = vsel %vm258, %v236, 0
  %v329 = vsel %vm258, %v237, 0
  %v332 = vsel %vm258, %v238, 0
  %v335 = vsel %vm258, %v239, 0
  %v338 = vsel %vm258, %v240, 0
  %v341 = vsel %vm258, %v241, 0
  %v344 = vsel %vm258, %v242, 0
  %v347 = vsel %vm258, %v243, 0
  %v350 = vsel %vm258, %v244, 0
  %v353 = vsel %vm258, %v245, 0
  %355 = vmatprep.subr.bf16.mxu0 0
  %356 = vmatpush1.bf16.msra.mxu0 0
  %357 = vmatprep.subr.bf16.mxu0 0
  %358 = vmatpush1.bf16.msra.mxu0 0
  %359 = vmatprep.subr.bf16.mxu0 0
  %360 = vmatpush1.bf16.msra.mxu0 0
  %361 = vmatprep.subr.bf16.mxu0 0
  %362 = vmatpush1.bf16.msra.mxu0 0
  %363 = vmatprep.subr.bf16.mxu0 0
  %364 = vmatpush1.bf16.msra.mxu0 0
  %365 = vmatprep.subr.bf16.mxu0 0
  %366 = vmatpush1.bf16.msra.mxu0 0
  %367 = vmatprep.subr.bf16.mxu0 0
  %368 = vmatpush1.bf16.msra.mxu0 %v255
  %369 = vmatprep.subr.bf16.mxu0 0
  %370 = vmatpush1.bf16.msra.mxu0 %v254
  %371 = vmatprep.subr.bf16.mxu0 0
  %372 = vmatpush2.bf16.msra.mxu0 0
  %373 = vmatprep.subr.bf16.mxu0 0
  %374 = vmatpush2.bf16.msra.mxu0 0
  %375 = vmatprep.subr.bf16.mxu0 0
  %376 = vmatpush2.bf16.msra.mxu0 0
  %377 = vmatprep.subr.bf16.mxu0 0
  %378 = vmatpush2.bf16.msra.mxu0 0
  %379 = vmatprep.subr.bf16.mxu0 0
  %380 = vmatpush2.bf16.msra.mxu0 0
  %381 = vmatprep.subr.bf16.mxu0 0
  %382 = vmatpush2.bf16.msra.mxu0 0
  %383 = vmatprep.subr.bf16.mxu0 0
  %384 = vmatpush2.bf16.msra.mxu0 0
  %385 = vmatprep.subr.bf16.mxu0 0
  %386 = vmatpush2.bf16.msra.mxu0 0
  %387 = vmatprep.mubr.bf16.mxu0 0
  %388 = vmatmul.mubr.bf16.gmra.mxu0 %v260
  %v389 = vpop.f32.mrf.mxu0
  %v390 = vadd.f32 0.0, %v389
  %v391 = vpop.f32.mrf.mxu0
  %v392 = vpop.f32.mrf.mxu0
  %v393 = vadd.f32 0.0, %v392
  %v394 = vpop.f32.mrf.mxu0
  %395 = vmatprep.mubr.bf16.mxu0 0
  %396 = vmatmul.mubr.bf16.gmra.mxu0 %v263
  %v397 = vpop.f32.mrf.mxu0
  %v398 = vadd.f32 0.0, %v397
  %v399 = vpop.f32.mrf.mxu0
  %v400 = vpop.f32.mrf.mxu0
  %v401 = vadd.f32 0.0, %v400
  %v402 = vpop.f32.mrf.mxu0
  %403 = vmatprep.mubr.bf16.mxu0 0
  %404 = vmatmul.mubr.bf16.gmra.mxu0 %v266
  %v405 = vpop.f32.mrf.mxu0
  %v406 = vadd.f32 0.0, %v405
  %v407 = vpop.f32.mrf.mxu0
  %v408 = vpop.f32.mrf.mxu0
  %v409 = vadd.f32 0.0, %v408
  %v410 = vpop.f32.mrf.mxu0
  %411 = vmatprep.mubr.bf16.mxu0 0
  %412 = vmatmul.mubr.bf16.gmra.mxu0 %v269
  %v413 = vpop.f32.mrf.mxu0
  %v414 = vadd.f32 0.0, %v413
  %v415 = vpop.f32.mrf.mxu0
  %v416 = vpop.f32.mrf.mxu0
  %v417 = vadd.f32 0.0, %v416
  %v418 = vpop.f32.mrf.mxu0
  %419 = vmatprep.mubr.bf16.mxu0 0
  %420 = vmatmul.mubr.bf16.gmra.mxu0 %v272
  %v421 = vpop.f32.mrf.mxu0
  %v422 = vadd.f32 0.0, %v421
  %v423 = vpop.f32.mrf.mxu0
  %v424 = vpop.f32.mrf.mxu0
  %v425 = vadd.f32 0.0, %v424
  %v426 = vpop.f32.mrf.mxu0
  %427 = vmatprep.mubr.bf16.mxu0 0
  %428 = vmatmul.mubr.bf16.gmra.mxu0 %v275
  %v429 = vpop.f32.mrf.mxu0
  %v430 = vadd.f32 0.0, %v429
  %v431 = vpop.f32.mrf.mxu0
  %v432 = vpop.f32.mrf.mxu0
  %v433 = vadd.f32 0.0, %v432
  %v434 = vpop.f32.mrf.mxu0
  %435 = vmatprep.mubr.bf16.mxu0 0
  %436 = vmatmul.mubr.bf16.gmra.mxu0 %v278
  %v437 = vpop.f32.mrf.mxu0
  %v438 = vadd.f32 0.0, %v437
  %v439 = vpop.f32.mrf.mxu0
  %v440 = vpop.f32.mrf.mxu0
  %v441 = vadd.f32 0.0, %v440
  %v442 = vpop.f32.mrf.mxu0
  %443 = vmatprep.mubr.bf16.mxu0 0
  %444 = vmatmul.mubr.bf16.gmra.mxu0 %v281
  %v445 = vpop.f32.mrf.mxu0
  %v446 = vadd.f32 0.0, %v445
  %v447 = vpop.f32.mrf.mxu0
  %v448 = vpop.f32.mrf.mxu0
  %v449 = vadd.f32 0.0, %v448
  %v450 = vpop.f32.mrf.mxu0
  %451 = vmatprep.mubr.bf16.mxu0 0
  %452 = vmatmul.mubr.bf16.gmra.mxu0 %v284
  %v453 = vpop.f32.mrf.mxu0
  %v454 = vadd.f32 0.0, %v453
  %v455 = vpop.f32.mrf.mxu0
  %v456 = vpop.f32.mrf.mxu0
  %v457 = vadd.f32 0.0, %v456
  %v458 = vpop.f32.mrf.mxu0
  %459 = vmatprep.mubr.bf16.mxu0 0
  %460 = vmatmul.mubr.bf16.gmra.mxu0 %v287
  %v461 = vpop.f32.mrf.mxu0
  %v462 = vadd.f32 0.0, %v461
  %v463 = vpop.f32.mrf.mxu0
  %v464 = vpop.f32.mrf.mxu0
  %v465 = vadd.f32 0.0, %v464
  %v466 = vpop.f32.mrf.mxu0
  %467 = vmatprep.mubr.bf16.mxu0 0
  %468 = vmatmul.mubr.bf16.gmra.mxu0 %v290
  %v469 = vpop.f32.mrf.mxu0
  %v470 = vadd.f32 0.0, %v469
  %v471 = vpop.f32.mrf.mxu0
  %v472 = vpop.f32.mrf.mxu0
  %v473 = vadd.f32 0.0, %v472
  %v474 = vpop.f32.mrf.mxu0
  %475 = vmatprep.mubr.bf16.mxu0 0
  %476 = vmatmul.mubr.bf16.gmra.mxu0 %v293
  %v477 = vpop.f32.mrf.mxu0
  %v478 = vadd.f32 0.0, %v477
  %v479 = vpop.f32.mrf.mxu0
  %v480 = vpop.f32.mrf.mxu0
  %v481 = vadd.f32 0.0, %v480
  %v482 = vpop.f32.mrf.mxu0
  %483 = vmatprep.mubr.bf16.mxu0 0
  %484 = vmatmul.mubr.bf16.gmra.mxu0 %v296
  %v485 = vpop.f32.mrf.mxu0
  %v486 = vadd.f32 0.0, %v485
  %v487 = vpop.f32.mrf.mxu0
  %v488 = vpop.f32.mrf.mxu0
  %v489 = vadd.f32 0.0, %v488
  %v490 = vpop.f32.mrf.mxu0
  %491 = vmatprep.mubr.bf16.mxu0 0
  %492 = vmatmul.mubr.bf16.gmra.mxu0 %v299
  %v493 = vpop.f32.mrf.mxu0
  %v494 = vadd.f32 0.0, %v493
  %v495 = vpop.f32.mrf.mxu0
  %v496 = vpop.f32.mrf.mxu0
  %v497 = vadd.f32 0.0, %v496
  %v498 = vpop.f32.mrf.mxu0
  %499 = vmatprep.mubr.bf16.mxu0 0
  %500 = vmatmul.mubr.bf16.gmra.mxu0 %v302
  %v501 = vpop.f32.mrf.mxu0
  %v502 = vadd.f32 0.0, %v501
  %v503 = vpop.f32.mrf.mxu0
  %v504 = vpop.f32.mrf.mxu0
  %v505 = vadd.f32 0.0, %v504
  %v506 = vpop.f32.mrf.mxu0
  %507 = vmatprep.mubr.bf16.mxu0 0
  %508 = vmatmul.mubr.bf16.gmra.mxu0 %v305
  %v509 = vpop.f32.mrf.mxu0
  %v510 = vadd.f32 0.0, %v509
  %v511 = vpop.f32.mrf.mxu0
  %v512 = vpop.f32.mrf.mxu0
  %v513 = vadd.f32 0.0, %v512
  %v514 = vpop.f32.mrf.mxu0
  %515 = vmatprep.mubr.bf16.mxu0 0
  %516 = vmatmul.mubr.bf16.gmra.mxu0 %v308
  %v517 = vpop.f32.mrf.mxu0
  %v518 = vadd.f32 0.0, %v517
  %v519 = vpop.f32.mrf.mxu0
  %v520 = vpop.f32.mrf.mxu0
  %v521 = vadd.f32 0.0, %v520
  %v522 = vpop.f32.mrf.mxu0
  %523 = vmatprep.mubr.bf16.mxu0 0
  %524 = vmatmul.mubr.bf16.gmra.mxu0 %v311
  %v525 = vpop.f32.mrf.mxu0
  %v526 = vadd.f32 0.0, %v525
  %v527 = vpop.f32.mrf.mxu0
  %v528 = vpop.f32.mrf.mxu0
  %v529 = vadd.f32 0.0, %v528
  %v530 = vpop.f32.mrf.mxu0
  %531 = vmatprep.mubr.bf16.mxu0 0
  %532 = vmatmul.mubr.bf16.gmra.mxu0 %v314
  %v533 = vpop.f32.mrf.mxu0
  %v534 = vadd.f32 0.0, %v533
  %v535 = vpop.f32.mrf.mxu0
  %v536 = vpop.f32.mrf.mxu0
  %v537 = vadd.f32 0.0, %v536
  %v538 = vpop.f32.mrf.mxu0
  %539 = vmatprep.mubr.bf16.mxu0 0
  %540 = vmatmul.mubr.bf16.gmra.mxu0 %v317
  %v541 = vpop.f32.mrf.mxu0
  %v542 = vadd.f32 0.0, %v541
  %v543 = vpop.f32.mrf.mxu0
  %v544 = vpop.f32.mrf.mxu0
  %v545 = vadd.f32 0.0, %v544
  %v546 = vpop.f32.mrf.mxu0
  %547 = vmatprep.mubr.bf16.mxu0 0
  %548 = vmatmul.mubr.bf16.gmra.mxu0 %v320
  %v549 = vpop.f32.mrf.mxu0
  %v550 = vadd.f32 0.0, %v549
  %v551 = vpop.f32.mrf.mxu0
  %v552 = vpop.f32.mrf.mxu0
  %v553 = vadd.f32 0.0, %v552
  %v554 = vpop.f32.mrf.mxu0
  %555 = vmatprep.mubr.bf16.mxu0 0
  %556 = vmatmul.mubr.bf16.gmra.mxu0 %v323
  %v557 = vpop.f32.mrf.mxu0
  %v558 = vadd.f32 0.0, %v557
  %v559 = vpop.f32.mrf.mxu0
  %v560 = vpop.f32.mrf.mxu0
  %v561 = vadd.f32 0.0, %v560
  %v562 = vpop.f32.mrf.mxu0
  %563 = vmatprep.mubr.bf16.mxu0 0
  %564 = vmatmul.mubr.bf16.gmra.mxu0 %v326
  %v565 = vpop.f32.mrf.mxu0
  %v566 = vadd.f32 0.0, %v565
  %v567 = vpop.f32.mrf.mxu0
  %v568 = vpop.f32.mrf.mxu0
  %v569 = vadd.f32 0.0, %v568
  %v570 = vpop.f32.mrf.mxu0
  %571 = vmatprep.mubr.bf16.mxu0 0
  %572 = vmatmul.mubr.bf16.gmra.mxu0 %v329
  %v573 = vpop.f32.mrf.mxu0
  %v574 = vadd.f32 0.0, %v573
  %v575 = vpop.f32.mrf.mxu0
  %v576 = vpop.f32.mrf.mxu0
  %v577 = vadd.f32 0.0, %v576
  %v578 = vpop.f32.mrf.mxu0
  %579 = vmatprep.mubr.bf16.mxu0 0
  %580 = vmatmul.mubr.bf16.gmra.mxu0 %v332
  %v581 = vpop.f32.mrf.mxu0
  %v582 = vadd.f32 0.0, %v581
  %v583 = vpop.f32.mrf.mxu0
  %v584 = vpop.f32.mrf.mxu0
  %v585 = vadd.f32 0.0, %v584
  %v586 = vpop.f32.mrf.mxu0
  %587 = vmatprep.mubr.bf16.mxu0 0
  %588 = vmatmul.mubr.bf16.gmra.mxu0 %v335
  %v589 = vpop.f32.mrf.mxu0
  %v590 = vadd.f32 0.0, %v589
  %v591 = vpop.f32.mrf.mxu0
  %v592 = vpop.f32.mrf.mxu0
  %v593 = vadd.f32 0.0, %v592
  %v594 = vpop.f32.mrf.mxu0
  %595 = vmatprep.mubr.bf16.mxu0 0
  %596 = vmatmul.mubr.bf16.gmra.mxu0 %v338
  %v597 = vpop.f32.mrf.mxu0
  %v598 = vadd.f32 0.0, %v597
  %v599 = vpop.f32.mrf.mxu0
  %v600 = vpop.f32.mrf.mxu0
  %v601 = vadd.f32 0.0, %v600
  %v602 = vpop.f32.mrf.mxu0
  %603 = vmatprep.mubr.bf16.mxu0 0
  %604 = vmatmul.mubr.bf16.gmra.mxu0 %v341
  %v605 = vpop.f32.mrf.mxu0
  %v606 = vadd.f32 0.0, %v605
  %v607 = vpop.f32.mrf.mxu0
  %v608 = vpop.f32.mrf.mxu0
  %v609 = vadd.f32 0.0, %v608
  %v610 = vpop.f32.mrf.mxu0
  %611 = vmatprep.mubr.bf16.mxu0 0
  %612 = vmatmul.mubr.bf16.gmra.mxu0 %v344
  %v613 = vpop.f32.mrf.mxu0
  %v614 = vadd.f32 0.0, %v613
  %v615 = vpop.f32.mrf.mxu0
  %v616 = vpop.f32.mrf.mxu0
  %v617 = vadd.f32 0.0, %v616
  %v618 = vpop.f32.mrf.mxu0
  %619 = vmatprep.mubr.bf16.mxu0 0
  %620 = vmatmul.mubr.bf16.gmra.mxu0 %v347
  %v621 = vpop.f32.mrf.mxu0
  %v622 = vadd.f32 0.0, %v621
  %v623 = vpop.f32.mrf.mxu0
  %v624 = vpop.f32.mrf.mxu0
  %v625 = vadd.f32 0.0, %v624
  %v626 = vpop.f32.mrf.mxu0
  %627 = vmatprep.mubr.bf16.mxu0 0
  %628 = vmatmul.mubr.bf16.gmra.mxu0 %v350
  %v629 = vpop.f32.mrf.mxu0
  %v630 = vadd.f32 0.0, %v629
  %v631 = vpop.f32.mrf.mxu0
  %v632 = vpop.f32.mrf.mxu0
  %v633 = vadd.f32 0.0, %v632
  %v634 = vpop.f32.mrf.mxu0
  %635 = vmatprep.mubr.bf16.mxu0 0
  %636 = vmatmul.mubr.bf16.gmra.mxu0 %v353
  %v637 = vpop.f32.mrf.mxu0
  %v638 = vadd.f32 0.0, %v637
  %v639 = vpop.f32.mrf.mxu0
  %v640 = vpop.f32.mrf.mxu0
  %v641 = vadd.f32 0.0, %v640
  %v642 = vpop.f32.mrf.mxu0
  %643 = vdwg.mxu0
  %vm644 = vcmask 15360
  %v645 = vsel %vm644, %v390, 0.0
  %646 = vadd.xlane.f32.xlu0 %v645
  %v647 = vpop.xlane.xlu0 %646
  %v648 = vsel %vm644, %v393, 0.0
  %649 = vadd.xlane.f32.xlu0 %v648
  %v650 = vpop.xlane.xlu0 %649
  %v651 = vsel %vm644, %v398, 0.0
  %652 = vadd.xlane.f32.xlu0 %v651
  %v653 = vpop.xlane.xlu0 %652
  %v654 = vsel %vm644, %v401, 0.0
  %655 = vadd.xlane.f32.xlu0 %v654
  %v656 = vpop.xlane.xlu0 %655
  %v657 = vsel %vm644, %v406, 0.0
  %658 = vadd.xlane.f32.xlu0 %v657
  %v659 = vpop.xlane.xlu0 %658
  %v660 = vsel %vm644, %v409, 0.0
  %661 = vadd.xlane.f32.xlu0 %v660
  %v662 = vpop.xlane.xlu0 %661
  %v663 = vsel %vm644, %v414, 0.0
  %664 = vadd.xlane.f32.xlu0 %v663
  %v665 = vpop.xlane.xlu0 %664
  %v666 = vsel %vm644, %v417, 0.0
  %667 = vadd.xlane.f32.xlu0 %v666
  %v668 = vpop.xlane.xlu0 %667
  %v669 = vsel %vm644, %v422, 0.0
  %670 = vadd.xlane.f32.xlu0 %v669
  %v671 = vpop.xlane.xlu0 %670
  %v672 = vsel %vm644, %v425, 0.0
  %673 = vadd.xlane.f32.xlu0 %v672
  %v674 = vpop.xlane.xlu0 %673
  %v675 = vsel %vm644, %v430, 0.0
  %676 = vadd.xlane.f32.xlu0 %v675
  %v677 = vpop.xlane.xlu0 %676
  %v678 = vsel %vm644, %v433, 0.0
  %679 = vadd.xlane.f32.xlu0 %v678
  %v680 = vpop.xlane.xlu0 %679
  %v681 = vsel %vm644, %v438, 0.0
  %682 = vadd.xlane.f32.xlu0 %v681
  %v683 = vpop.xlane.xlu0 %682
  %v684 = vsel %vm644, %v441, 0.0
  %685 = vadd.xlane.f32.xlu0 %v684
  %v686 = vpop.xlane.xlu0 %685
  %v687 = vsel %vm644, %v446, 0.0
  %688 = vadd.xlane.f32.xlu0 %v687
  %v689 = vpop.xlane.xlu0 %688
  %v690 = vsel %vm644, %v449, 0.0
  %691 = vadd.xlane.f32.xlu0 %v690
  %v692 = vpop.xlane.xlu0 %691
  %v693 = vsel %vm644, %v454, 0.0
  %694 = vadd.xlane.f32.xlu0 %v693
  %v695 = vpop.xlane.xlu0 %694
  %v696 = vsel %vm644, %v457, 0.0
  %697 = vadd.xlane.f32.xlu0 %v696
  %v698 = vpop.xlane.xlu0 %697
  %v699 = vsel %vm644, %v462, 0.0
  %700 = vadd.xlane.f32.xlu0 %v699
  %v701 = vpop.xlane.xlu0 %700
  %v702 = vsel %vm644, %v465, 0.0
  %703 = vadd.xlane.f32.xlu0 %v702
  %v704 = vpop.xlane.xlu0 %703
  %v705 = vsel %vm644, %v470, 0.0
  %706 = vadd.xlane.f32.xlu0 %v705
  %v707 = vpop.xlane.xlu0 %706
  %v708 = vsel %vm644, %v473, 0.0
  %709 = vadd.xlane.f32.xlu0 %v708
  %v710 = vpop.xlane.xlu0 %709
  %v711 = vsel %vm644, %v478, 0.0
  %712 = vadd.xlane.f32.xlu0 %v711
  %v713 = vpop.xlane.xlu0 %712
  %v714 = vsel %vm644, %v481, 0.0
  %715 = vadd.xlane.f32.xlu0 %v714
  %v716 = vpop.xlane.xlu0 %715
  %v717 = vsel %vm644, %v486, 0.0
  %718 = vadd.xlane.f32.xlu0 %v717
  %v719 = vpop.xlane.xlu0 %718
  %v720 = vsel %vm644, %v489, 0.0
  %721 = vadd.xlane.f32.xlu0 %v720
  %v722 = vpop.xlane.xlu0 %721
  %v723 = vsel %vm644, %v494, 0.0
  %724 = vadd.xlane.f32.xlu0 %v723
  %v725 = vpop.xlane.xlu0 %724
  %v726 = vsel %vm644, %v497, 0.0
  %727 = vadd.xlane.f32.xlu0 %v726
  %v728 = vpop.xlane.xlu0 %727
  %v729 = vsel %vm644, %v502, 0.0
  %730 = vadd.xlane.f32.xlu0 %v729
  %v731 = vpop.xlane.xlu0 %730
  %v732 = vsel %vm644, %v505, 0.0
  %733 = vadd.xlane.f32.xlu0 %v732
  %v734 = vpop.xlane.xlu0 %733
  %v735 = vsel %vm644, %v510, 0.0
  %736 = vadd.xlane.f32.xlu0 %v735
  %v737 = vpop.xlane.xlu0 %736
  %v738 = vsel %vm644, %v513, 0.0
  %739 = vadd.xlane.f32.xlu0 %v738
  %v740 = vpop.xlane.xlu0 %739
  %v741 = vsel %vm644, %v518, 0.0
  %742 = vadd.xlane.f32.xlu0 %v741
  %v743 = vpop.xlane.xlu0 %742
  %v744 = vsel %vm644, %v521, 0.0
  %745 = vadd.xlane.f32.xlu0 %v744
  %v746 = vpop.xlane.xlu0 %745
  %v747 = vsel %vm644, %v526, 0.0
  %748 = vadd.xlane.f32.xlu0 %v747
  %v749 = vpop.xlane.xlu0 %748
  %v750 = vsel %vm644, %v529, 0.0
  %751 = vadd.xlane.f32.xlu0 %v750
  %v752 = vpop.xlane.xlu0 %751
  %v753 = vsel %vm644, %v534, 0.0
  %754 = vadd.xlane.f32.xlu0 %v753
  %v755 = vpop.xlane.xlu0 %754
  %v756 = vsel %vm644, %v537, 0.0
  %757 = vadd.xlane.f32.xlu0 %v756
  %v758 = vpop.xlane.xlu0 %757
  %v759 = vsel %vm644, %v542, 0.0
  %760 = vadd.xlane.f32.xlu0 %v759
  %v761 = vpop.xlane.xlu0 %760
  %v762 = vsel %vm644, %v545, 0.0
  %763 = vadd.xlane.f32.xlu0 %v762
  %v764 = vpop.xlane.xlu0 %763
  %v765 = vsel %vm644, %v550, 0.0
  %766 = vadd.xlane.f32.xlu0 %v765
  %v767 = vpop.xlane.xlu0 %766
  %v768 = vsel %vm644, %v553, 0.0
  %769 = vadd.xlane.f32.xlu0 %v768
  %v770 = vpop.xlane.xlu0 %769
  %v771 = vsel %vm644, %v558, 0.0
  %772 = vadd.xlane.f32.xlu0 %v771
  %v773 = vpop.xlane.xlu0 %772
  %v774 = vsel %vm644, %v561, 0.0
  %775 = vadd.xlane.f32.xlu0 %v774
  %v776 = vpop.xlane.xlu0 %775
  %v777 = vsel %vm644, %v566, 0.0
  %778 = vadd.xlane.f32.xlu0 %v777
  %v779 = vpop.xlane.xlu0 %778
  %v780 = vsel %vm644, %v569, 0.0
  %781 = vadd.xlane.f32.xlu0 %v780
  %v782 = vpop.xlane.xlu0 %781
  %v783 = vsel %vm644, %v574, 0.0
  %784 = vadd.xlane.f32.xlu0 %v783
  %v785 = vpop.xlane.xlu0 %784
  %v786 = vsel %vm644, %v577, 0.0
  %787 = vadd.xlane.f32.xlu0 %v786
  %v788 = vpop.xlane.xlu0 %787
  %v789 = vsel %vm644, %v582, 0.0
  %790 = vadd.xlane.f32.xlu0 %v789
  %v791 = vpop.xlane.xlu0 %790
  %v792 = vsel %vm644, %v585, 0.0
  %793 = vadd.xlane.f32.xlu0 %v792
  %v794 = vpop.xlane.xlu0 %793
  %v795 = vsel %vm644, %v590, 0.0
  %796 = vadd.xlane.f32.xlu0 %v795
  %v797 = vpop.xlane.xlu0 %796
  %v798 = vsel %vm644, %v593, 0.0
  %799 = vadd.xlane.f32.xlu0 %v798
  %v800 = vpop.xlane.xlu0 %799
  %v801 = vsel %vm644, %v598, 0.0
  %802 = vadd.xlane.f32.xlu0 %v801
  %v803 = vpop.xlane.xlu0 %802
  %v804 = vsel %vm644, %v601, 0.0
  %805 = vadd.xlane.f32.xlu0 %v804
  %v806 = vpop.xlane.xlu0 %805
  %v807 = vsel %vm644, %v606, 0.0
  %808 = vadd.xlane.f32.xlu0 %v807
  %v809 = vpop.xlane.xlu0 %808
  %v810 = vsel %vm644, %v609, 0.0
  %811 = vadd.xlane.f32.xlu0 %v810
  %v812 = vpop.xlane.xlu0 %811
  %v813 = vsel %vm644, %v614, 0.0
  %814 = vadd.xlane.f32.xlu0 %v813
  %v815 = vpop.xlane.xlu0 %814
  %v816 = vsel %vm644, %v617, 0.0
  %817 = vadd.xlane.f32.xlu0 %v816
  %v818 = vpop.xlane.xlu0 %817
  %v819 = vsel %vm644, %v622, 0.0
  %820 = vadd.xlane.f32.xlu0 %v819
  %v821 = vpop.xlane.xlu0 %820
  %v822 = vsel %vm644, %v625, 0.0
  %823 = vadd.xlane.f32.xlu0 %v822
  %v824 = vpop.xlane.xlu0 %823
  %v825 = vsel %vm644, %v630, 0.0
  %826 = vadd.xlane.f32.xlu0 %v825
  %v827 = vpop.xlane.xlu0 %826
  %v828 = vsel %vm644, %v633, 0.0
  %829 = vadd.xlane.f32.xlu0 %v828
  %v830 = vpop.xlane.xlu0 %829
  %v831 = vsel %vm644, %v638, 0.0
  %832 = vadd.xlane.f32.xlu0 %v831
  %v833 = vpop.xlane.xlu0 %832
  %v834 = vsel %vm644, %v641, 0.0
  %835 = vadd.xlane.f32.xlu0 %v834
  %v836 = vpop.xlane.xlu0 %835
  %v837 = vmul.f32 %v390, %v390
  %v838 = vmul.f32 %v393, %v393
  %v839 = vmul.f32 %v398, %v398
  %v840 = vmul.f32 %v401, %v401
  %v841 = vmul.f32 %v406, %v406
  %v842 = vmul.f32 %v409, %v409
  %v843 = vmul.f32 %v414, %v414
  %v844 = vmul.f32 %v417, %v417
  %v845 = vmul.f32 %v422, %v422
  %v846 = vmul.f32 %v425, %v425
  %v847 = vmul.f32 %v430, %v430
  %v848 = vmul.f32 %v433, %v433
  %v849 = vmul.f32 %v438, %v438
  %v850 = vmul.f32 %v441, %v441
  %v851 = vmul.f32 %v446, %v446
  %v852 = vmul.f32 %v449, %v449
  %v853 = vmul.f32 %v454, %v454
  %v854 = vmul.f32 %v457, %v457
  %v855 = vmul.f32 %v462, %v462
  %v856 = vmul.f32 %v465, %v465
  %v857 = vmul.f32 %v470, %v470
  %v858 = vmul.f32 %v473, %v473
  %v859 = vmul.f32 %v478, %v478
  %v860 = vmul.f32 %v481, %v481
  %v861 = vmul.f32 %v486, %v486
  %v862 = vmul.f32 %v489, %v489
  %v863 = vmul.f32 %v494, %v494
  %v864 = vmul.f32 %v497, %v497
  %v865 = vmul.f32 %v502, %v502
  %v866 = vmul.f32 %v505, %v505
  %v867 = vmul.f32 %v510, %v510
  %v868 = vmul.f32 %v513, %v513
  %v869 = vmul.f32 %v518, %v518
  %v870 = vmul.f32 %v521, %v521
  %v871 = vmul.f32 %v526, %v526
  %v872 = vmul.f32 %v529, %v529
  %v873 = vmul.f32 %v534, %v534
  %v874 = vmul.f32 %v537, %v537
  %v875 = vmul.f32 %v542, %v542
  %v876 = vmul.f32 %v545, %v545
  %v877 = vmul.f32 %v550, %v550
  %v878 = vmul.f32 %v553, %v553
  %v879 = vmul.f32 %v558, %v558
  %v880 = vmul.f32 %v561, %v561
  %v881 = vmul.f32 %v566, %v566
  %v882 = vmul.f32 %v569, %v569
  %v883 = vmul.f32 %v574, %v574
  %v884 = vmul.f32 %v577, %v577
  %v885 = vmul.f32 %v582, %v582
  %v886 = vmul.f32 %v585, %v585
  %v887 = vmul.f32 %v590, %v590
  %v888 = vmul.f32 %v593, %v593
  %v889 = vmul.f32 %v598, %v598
  %v890 = vmul.f32 %v601, %v601
  %v891 = vmul.f32 %v606, %v606
  %v892 = vmul.f32 %v609, %v609
  %v893 = vmul.f32 %v614, %v614
  %v894 = vmul.f32 %v617, %v617
  %v895 = vmul.f32 %v622, %v622
  %v896 = vmul.f32 %v625, %v625
  %v897 = vmul.f32 %v630, %v630
  %v898 = vmul.f32 %v633, %v633
  %v899 = vmul.f32 %v638, %v638
  %v900 = vmul.f32 %v641, %v641
  %v901 = vsel %vm644, %v837, 0.0
  %902 = vadd.xlane.f32.xlu0 %v901
  %v903 = vpop.xlane.xlu0 %902
  %v904 = vsel %vm644, %v838, 0.0
  %905 = vadd.xlane.f32.xlu0 %v904
  %v906 = vpop.xlane.xlu0 %905
  %v907 = vsel %vm644, %v839, 0.0
  %908 = vadd.xlane.f32.xlu0 %v907
  %v909 = vpop.xlane.xlu0 %908
  %v910 = vsel %vm644, %v840, 0.0
  %911 = vadd.xlane.f32.xlu0 %v910
  %v912 = vpop.xlane.xlu0 %911
  %v913 = vsel %vm644, %v841, 0.0
  %914 = vadd.xlane.f32.xlu0 %v913
  %v915 = vpop.xlane.xlu0 %914
  %v916 = vsel %vm644, %v842, 0.0
  %917 = vadd.xlane.f32.xlu0 %v916
  %v918 = vpop.xlane.xlu0 %917
  %v919 = vsel %vm644, %v843, 0.0
  %920 = vadd.xlane.f32.xlu0 %v919
  %v921 = vpop.xlane.xlu0 %920
  %v922 = vsel %vm644, %v844, 0.0
  %923 = vadd.xlane.f32.xlu0 %v922
  %v924 = vpop.xlane.xlu0 %923
  %v925 = vsel %vm644, %v845, 0.0
  %926 = vadd.xlane.f32.xlu0 %v925
  %v927 = vpop.xlane.xlu0 %926
  %v928 = vsel %vm644, %v846, 0.0
  %929 = vadd.xlane.f32.xlu0 %v928
  %v930 = vpop.xlane.xlu0 %929
  %v931 = vsel %vm644, %v847, 0.0
  %932 = vadd.xlane.f32.xlu0 %v931
  %v933 = vpop.xlane.xlu0 %932
  %v934 = vsel %vm644, %v848, 0.0
  %935 = vadd.xlane.f32.xlu0 %v934
  %v936 = vpop.xlane.xlu0 %935
  %v937 = vsel %vm644, %v849, 0.0
  %938 = vadd.xlane.f32.xlu0 %v937
  %v939 = vpop.xlane.xlu0 %938
  %v940 = vsel %vm644, %v850, 0.0
  %941 = vadd.xlane.f32.xlu0 %v940
  %v942 = vpop.xlane.xlu0 %941
  %v943 = vsel %vm644, %v851, 0.0
  %944 = vadd.xlane.f32.xlu0 %v943
  %v945 = vpop.xlane.xlu0 %944
  %v946 = vsel %vm644, %v852, 0.0
  %947 = vadd.xlane.f32.xlu0 %v946
  %v948 = vpop.xlane.xlu0 %947
  %v949 = vsel %vm644, %v853, 0.0
  %950 = vadd.xlane.f32.xlu0 %v949
  %v951 = vpop.xlane.xlu0 %950
  %v952 = vsel %vm644, %v854, 0.0
  %953 = vadd.xlane.f32.xlu0 %v952
  %v954 = vpop.xlane.xlu0 %953
  %v955 = vsel %vm644, %v855, 0.0
  %956 = vadd.xlane.f32.xlu0 %v955
  %v957 = vpop.xlane.xlu0 %956
  %v958 = vsel %vm644, %v856, 0.0
  %959 = vadd.xlane.f32.xlu0 %v958
  %v960 = vpop.xlane.xlu0 %959
  %v961 = vsel %vm644, %v857, 0.0
  %962 = vadd.xlane.f32.xlu0 %v961
  %v963 = vpop.xlane.xlu0 %962
  %v964 = vsel %vm644, %v858, 0.0
  %965 = vadd.xlane.f32.xlu0 %v964
  %v966 = vpop.xlane.xlu0 %965
  %v967 = vsel %vm644, %v859, 0.0
  %968 = vadd.xlane.f32.xlu0 %v967
  %v969 = vpop.xlane.xlu0 %968
  %v970 = vsel %vm644, %v860, 0.0
  %971 = vadd.xlane.f32.xlu0 %v970
  %v972 = vpop.xlane.xlu0 %971
  %v973 = vsel %vm644, %v861, 0.0
  %974 = vadd.xlane.f32.xlu0 %v973
  %v975 = vpop.xlane.xlu0 %974
  %v976 = vsel %vm644, %v862, 0.0
  %977 = vadd.xlane.f32.xlu0 %v976
  %v978 = vpop.xlane.xlu0 %977
  %v979 = vsel %vm644, %v863, 0.0
  %980 = vadd.xlane.f32.xlu0 %v979
  %v981 = vpop.xlane.xlu0 %980
  %v982 = vsel %vm644, %v864, 0.0
  %983 = vadd.xlane.f32.xlu0 %v982
  %v984 = vpop.xlane.xlu0 %983
  %v985 = vsel %vm644, %v865, 0.0
  %986 = vadd.xlane.f32.xlu0 %v985
  %v987 = vpop.xlane.xlu0 %986
  %v988 = vsel %vm644, %v866, 0.0
  %989 = vadd.xlane.f32.xlu0 %v988
  %v990 = vpop.xlane.xlu0 %989
  %v991 = vsel %vm644, %v867, 0.0
  %992 = vadd.xlane.f32.xlu0 %v991
  %v993 = vpop.xlane.xlu0 %992
  %v994 = vsel %vm644, %v868, 0.0
  %995 = vadd.xlane.f32.xlu0 %v994
  %v996 = vpop.xlane.xlu0 %995
  %v997 = vsel %vm644, %v869, 0.0
  %998 = vadd.xlane.f32.xlu0 %v997
  %v999 = vpop.xlane.xlu0 %998
  %v1000 = vsel %vm644, %v870, 0.0
  %1001 = vadd.xlane.f32.xlu0 %v1000
  %v1002 = vpop.xlane.xlu0 %1001
  %v1003 = vsel %vm644, %v871, 0.0
  %1004 = vadd.xlane.f32.xlu0 %v1003
  %v1005 = vpop.xlane.xlu0 %1004
  %v1006 = vsel %vm644, %v872, 0.0
  %1007 = vadd.xlane.f32.xlu0 %v1006
  %v1008 = vpop.xlane.xlu0 %1007
  %v1009 = vsel %vm644, %v873, 0.0
  %1010 = vadd.xlane.f32.xlu0 %v1009
  %v1011 = vpop.xlane.xlu0 %1010
  %v1012 = vsel %vm644, %v874, 0.0
  %1013 = vadd.xlane.f32.xlu0 %v1012
  %v1014 = vpop.xlane.xlu0 %1013
  %v1015 = vsel %vm644, %v875, 0.0
  %1016 = vadd.xlane.f32.xlu0 %v1015
  %v1017 = vpop.xlane.xlu0 %1016
  %v1018 = vsel %vm644, %v876, 0.0
  %1019 = vadd.xlane.f32.xlu0 %v1018
  %v1020 = vpop.xlane.xlu0 %1019
  %v1021 = vsel %vm644, %v877, 0.0
  %1022 = vadd.xlane.f32.xlu0 %v1021
  %v1023 = vpop.xlane.xlu0 %1022
  %v1024 = vsel %vm644, %v878, 0.0
  %1025 = vadd.xlane.f32.xlu0 %v1024
  %v1026 = vpop.xlane.xlu0 %1025
  %v1027 = vsel %vm644, %v879, 0.0
  %1028 = vadd.xlane.f32.xlu0 %v1027
  %v1029 = vpop.xlane.xlu0 %1028
  %v1030 = vsel %vm644, %v880, 0.0
  %1031 = vadd.xlane.f32.xlu0 %v1030
  %v1032 = vpop.xlane.xlu0 %1031
  %v1033 = vsel %vm644, %v881, 0.0
  %1034 = vadd.xlane.f32.xlu0 %v1033
  %v1035 = vpop.xlane.xlu0 %1034
  %v1036 = vsel %vm644, %v882, 0.0
  %1037 = vadd.xlane.f32.xlu0 %v1036
  %v1038 = vpop.xlane.xlu0 %1037
  %v1039 = vsel %vm644, %v883, 0.0
  %1040 = vadd.xlane.f32.xlu0 %v1039
  %v1041 = vpop.xlane.xlu0 %1040
  %v1042 = vsel %vm644, %v884, 0.0
  %1043 = vadd.xlane.f32.xlu0 %v1042
  %v1044 = vpop.xlane.xlu0 %1043
  %v1045 = vsel %vm644, %v885, 0.0
  %1046 = vadd.xlane.f32.xlu0 %v1045
  %v1047 = vpop.xlane.xlu0 %1046
  %v1048 = vsel %vm644, %v886, 0.0
  %1049 = vadd.xlane.f32.xlu0 %v1048
  %v1050 = vpop.xlane.xlu0 %1049
  %v1051 = vsel %vm644, %v887, 0.0
  %1052 = vadd.xlane.f32.xlu0 %v1051
  %v1053 = vpop.xlane.xlu0 %1052
  %v1054 = vsel %vm644, %v888, 0.0
  %1055 = vadd.xlane.f32.xlu0 %v1054
  %v1056 = vpop.xlane.xlu0 %1055
  %v1057 = vsel %vm644, %v889, 0.0
  %1058 = vadd.xlane.f32.xlu0 %v1057
  %v1059 = vpop.xlane.xlu0 %1058
  %v1060 = vsel %vm644, %v890, 0.0
  %1061 = vadd.xlane.f32.xlu0 %v1060
  %v1062 = vpop.xlane.xlu0 %1061
  %v1063 = vsel %vm644, %v891, 0.0
  %1064 = vadd.xlane.f32.xlu0 %v1063
  %v1065 = vpop.xlane.xlu0 %1064
  %v1066 = vsel %vm644, %v892, 0.0
  %1067 = vadd.xlane.f32.xlu0 %v1066
  %v1068 = vpop.xlane.xlu0 %1067
  %v1069 = vsel %vm644, %v893, 0.0
  %1070 = vadd.xlane.f32.xlu0 %v1069
  %v1071 = vpop.xlane.xlu0 %1070
  %v1072 = vsel %vm644, %v894, 0.0
  %1073 = vadd.xlane.f32.xlu0 %v1072
  %v1074 = vpop.xlane.xlu0 %1073
  %v1075 = vsel %vm644, %v895, 0.0
  %1076 = vadd.xlane.f32.xlu0 %v1075
  %v1077 = vpop.xlane.xlu0 %1076
  %v1078 = vsel %vm644, %v896, 0.0
  %1079 = vadd.xlane.f32.xlu0 %v1078
  %v1080 = vpop.xlane.xlu0 %1079
  %v1081 = vsel %vm644, %v897, 0.0
  %1082 = vadd.xlane.f32.xlu0 %v1081
  %v1083 = vpop.xlane.xlu0 %1082
  %v1084 = vsel %vm644, %v898, 0.0
  %1085 = vadd.xlane.f32.xlu0 %v1084
  %v1086 = vpop.xlane.xlu0 %1085
  %v1087 = vsel %vm644, %v899, 0.0
  %1088 = vadd.xlane.f32.xlu0 %v1087
  %v1089 = vpop.xlane.xlu0 %1088
  %v1090 = vsel %vm644, %v900, 0.0
  %1091 = vadd.xlane.f32.xlu0 %v1090
  %v1092 = vpop.xlane.xlu0 %1091
  %v1093 = vadd.f32 %v647, %v659
  %v1094 = vadd.f32 %v650, %v662
  %v1095 = vadd.f32 %v653, %v665
  %v1096 = vadd.f32 %v656, %v668
  %v1097 = vadd.f32 %v903, %v915
  %v1098 = vadd.f32 %v906, %v918
  %v1099 = vadd.f32 %v909, %v921
  %v1100 = vadd.f32 %v912, %v924
  %v1101 = vadd.f32 %v1093, %v671
  %v1102 = vadd.f32 %v1094, %v674
  %v1103 = vadd.f32 %v1095, %v677
  %v1104 = vadd.f32 %v1096, %v680
  %v1105 = vadd.f32 %v1097, %v927
  %v1106 = vadd.f32 %v1098, %v930
  %v1107 = vadd.f32 %v1099, %v933
  %v1108 = vadd.f32 %v1100, %v936
  %v1109 = vadd.f32 %v1101, %v683
  %v1110 = vadd.f32 %v1102, %v686
  %v1111 = vadd.f32 %v1103, %v689
  %v1112 = vadd.f32 %v1104, %v692
  %v1113 = vadd.f32 %v1105, %v939
  %v1114 = vadd.f32 %v1106, %v942
  %v1115 = vadd.f32 %v1107, %v945
  %v1116 = vadd.f32 %v1108, %v948
  %v1117 = vadd.f32 %v1109, %v695
  %v1118 = vadd.f32 %v1110, %v698
  %v1119 = vadd.f32 %v1111, %v701
  %v1120 = vadd.f32 %v1112, %v704
  %v1121 = vadd.f32 %v1113, %v951
  %v1122 = vadd.f32 %v1114, %v954
  %v1123 = vadd.f32 %v1115, %v957
  %v1124 = vadd.f32 %v1116, %v960
  %v1125 = vadd.f32 %v1117, %v707
  %v1126 = vadd.f32 %v1118, %v710
  %v1127 = vadd.f32 %v1119, %v713
  %v1128 = vadd.f32 %v1120, %v716
  %v1129 = vadd.f32 %v1121, %v963
  %v1130 = vadd.f32 %v1122, %v966
  %v1131 = vadd.f32 %v1123, %v969
  %v1132 = vadd.f32 %v1124, %v972
  %v1133 = vadd.f32 %v1125, %v719
  %v1134 = vadd.f32 %v1126, %v722
  %v1135 = vadd.f32 %v1127, %v725
  %v1136 = vadd.f32 %v1128, %v728
  %v1137 = vadd.f32 %v1129, %v975
  %v1138 = vadd.f32 %v1130, %v978
  %v1139 = vadd.f32 %v1131, %v981
  %v1140 = vadd.f32 %v1132, %v984
  %v1141 = vadd.f32 %v1133, %v731
  %v1142 = vadd.f32 %v1134, %v734
  %v1143 = vadd.f32 %v1135, %v737
  %v1144 = vadd.f32 %v1136, %v740
  %v1145 = vadd.f32 %v1137, %v987
  %v1146 = vadd.f32 %v1138, %v990
  %v1147 = vadd.f32 %v1139, %v993
  %v1148 = vadd.f32 %v1140, %v996
  %v1149 = vadd.f32 %v1141, %v743
  %v1150 = vadd.f32 %v1142, %v746
  %v1151 = vadd.f32 %v1143, %v749
  %v1152 = vadd.f32 %v1144, %v752
  %v1153 = vadd.f32 %v1145, %v999
  %v1154 = vadd.f32 %v1146, %v1002
  %v1155 = vadd.f32 %v1147, %v1005
  %v1156 = vadd.f32 %v1148, %v1008
  %v1157 = vadd.f32 %v1149, %v755
  %v1158 = vadd.f32 %v1150, %v758
  %v1159 = vadd.f32 %v1151, %v761
  %v1160 = vadd.f32 %v1152, %v764
  %v1161 = vadd.f32 %v1153, %v1011
  %v1162 = vadd.f32 %v1154, %v1014
  %v1163 = vadd.f32 %v1155, %v1017
  %v1164 = vadd.f32 %v1156, %v1020
  %v1165 = vadd.f32 %v1157, %v767
  %v1166 = vadd.f32 %v1158, %v770
  %v1167 = vadd.f32 %v1159, %v773
  %v1168 = vadd.f32 %v1160, %v776
  %v1169 = vadd.f32 %v1161, %v1023
  %v1170 = vadd.f32 %v1162, %v1026
  %v1171 = vadd.f32 %v1163, %v1029
  %v1172 = vadd.f32 %v1164, %v1032
  %v1173 = vadd.f32 %v1165, %v779
  %v1174 = vadd.f32 %v1166, %v782
  %v1175 = vadd.f32 %v1167, %v785
  %v1176 = vadd.f32 %v1168, %v788
  %v1177 = vadd.f32 %v1169, %v1035
  %v1178 = vadd.f32 %v1170, %v1038
  %v1179 = vadd.f32 %v1171, %v1041
  %v1180 = vadd.f32 %v1172, %v1044
  %v1181 = vadd.f32 %v1173, %v791
  %v1182 = vadd.f32 %v1174, %v794
  %v1183 = vadd.f32 %v1175, %v797
  %v1184 = vadd.f32 %v1176, %v800
  %v1185 = vadd.f32 %v1177, %v1047
  %v1186 = vadd.f32 %v1178, %v1050
  %v1187 = vadd.f32 %v1179, %v1053
  %v1188 = vadd.f32 %v1180, %v1056
  %v1189 = vadd.f32 %v1181, %v803
  %v1190 = vadd.f32 %v1182, %v806
  %v1191 = vadd.f32 %v1183, %v809
  %v1192 = vadd.f32 %v1184, %v812
  %v1193 = vadd.f32 %v1185, %v1059
  %v1194 = vadd.f32 %v1186, %v1062
  %v1195 = vadd.f32 %v1187, %v1065
  %v1196 = vadd.f32 %v1188, %v1068
  %v1197 = vadd.f32 %v1189, %v815
  %v1198 = vadd.f32 %v1190, %v818
  %v1199 = vadd.f32 %v1191, %v821
  %v1200 = vadd.f32 %v1192, %v824
  %v1201 = vadd.f32 %v1193, %v1071
  %v1202 = vadd.f32 %v1194, %v1074
  %v1203 = vadd.f32 %v1195, %v1077
  %v1204 = vadd.f32 %v1196, %v1080
  %v1205 = vadd.f32 %v1197, %v827
  %v1206 = vadd.f32 %v1198, %v830
  %v1207 = vadd.f32 %v1199, %v833
  %v1208 = vadd.f32 %v1200, %v836
  %v1209 = vadd.f32 %v1201, %v1083
  %v1210 = vadd.f32 %v1202, %v1086
  %v1211 = vadd.f32 %v1203, %v1089
  %v1212 = vadd.f32 %v1204, %v1092
  %v1213 = vrcp.pop 32.0
  %v1214 = vmul.f32 %v1205, %v1213
  %v1215 = vmul.f32 %v1206, %v1213
  %v1216 = vmul.f32 %v1207, %v1213
  %v1217 = vmul.f32 %v1208, %v1213
  %v1218 = vmul.f32 %v1209, %v1213
  %v1219 = vmul.f32 %v1210, %v1213
  %v1220 = vmul.f32 %v1211, %v1213
  %v1221 = vmul.f32 %v1212, %v1213
  %v1222 = vmul.f32 %v1214, %v1214
  %v1223 = vmul.f32 %v1215, %v1215
  %v1224 = vmul.f32 %v1216, %v1216
  %v1225 = vmul.f32 %v1217, %v1217
  %v1226 = vsub.f32 %v1218, %v1222
  %v1227 = vsub.f32 %v1219, %v1223
  %v1228 = vsub.f32 %v1220, %v1224
  %v1229 = vsub.f32 %v1221, %v1225
  %v1230 = vadd.f32 %v1226, 1e-05
  %v1231 = vadd.f32 %v1227, 1e-05
  %v1232 = vadd.f32 %v1228, 1e-05
  %v1233 = vadd.f32 %v1229, 1e-05
  %v1234 = vrsqrt.pop %v1230
  %v1235 = vrsqrt.pop %v1231
  %v1236 = vrsqrt.pop %v1232
  %v1237 = vrsqrt.pop %v1233
  %v1238 = vld [vmem:[%s2] sm:$0xff]
  %v1239 = vld [vmem:[%s2 + $0x8] sm:$0xff]
  %v1240 = vld [vmem:[%s2 + $0x10] sm:$0xff]
  %v1241 = vld [vmem:[%s2 + $0x18] sm:$0xff]
  %v1242 = vmul.f32 %v1238, %v1234
  %v1243 = vmul.f32 %v1239, %v1235
  %v1244 = vmul.f32 %v1240, %v1236
  %v1245 = vmul.f32 %v1241, %v1237
  %v1246 = vld [vmem:[%s3] sm:$0xff]
  %v1247 = vld [vmem:[%s3 + $0x8] sm:$0xff]
  %v1248 = vld [vmem:[%s3 + $0x10] sm:$0xff]
  %v1249 = vld [vmem:[%s3 + $0x18] sm:$0xff]
  %v1250 = vmul.f32 %v1214, %v1242
  %v1251 = vmul.f32 %v1215, %v1243
  %v1252 = vmul.f32 %v1216, %v1244
  %v1253 = vmul.f32 %v1217, %v1245
  %v1254 = vsub.f32 %v1246, %v1250
  %v1255 = vsub.f32 %v1247, %v1251
  %v1256 = vsub.f32 %v1248, %v1252
  %v1257 = vsub.f32 %v1249, %v1253
  %1259 = vset.pattern.permute.xlu0 0
  %1260 = vperm.xlu0 %1259, %v1242
  %v1261 = vpop.permute.xlu0 %1260
  %1264 = vset.pattern.permute.xlu0 0
  %1265 = vperm.xlu0 %1264, %v1243
  %v1266 = vpop.permute.xlu0 %1265
  %1269 = vset.pattern.permute.xlu0 0
  %1270 = vperm.xlu0 %1269, %v1244
  %v1271 = vpop.permute.xlu0 %1270
  %1274 = vset.pattern.permute.xlu0 0
  %1275 = vperm.xlu0 %1274, %v1245
  %v1276 = vpop.permute.xlu0 %1275
  %v1278 = vmul.f32 %v390, %v1261
  %v1279 = vmul.f32 %v393, %v1266
  %v1280 = vmul.f32 %v398, %v1271
  %v1281 = vmul.f32 %v401, %v1276
  %1283 = vset.pattern.permute.xlu0 0
  %1284 = vperm.xlu0 %1283, %v1254
  %v1285 = vpop.permute.xlu0 %1284
  %1288 = vset.pattern.permute.xlu0 0
  %1289 = vperm.xlu0 %1288, %v1255
  %v1290 = vpop.permute.xlu0 %1289
  %1293 = vset.pattern.permute.xlu0 0
  %1294 = vperm.xlu0 %1293, %v1256
  %v1295 = vpop.permute.xlu0 %1294
  %1298 = vset.pattern.permute.xlu0 0
  %1299 = vperm.xlu0 %1298, %v1257
  %v1300 = vpop.permute.xlu0 %1299
  %v1302 = vadd.f32 %v1278, %v1285
  %v1303 = vadd.f32 %v1279, %v1290
  %v1304 = vadd.f32 %v1280, %v1295
  %v1305 = vadd.f32 %v1281, %v1300
  %v1306 = vmax.f32 %v1302, 0.0
  %v1307 = vmax.f32 %v1303, 0.0
  %v1308 = vmax.f32 %v1304, 0.0
  %v1309 = vmax.f32 %v1305, 0.0
  %v1310 = vpack.c.bf16 %v1307, %v1306
  %v1311 = vpack.c.bf16 %v1309, %v1308
  %v1314 = vunpack.c.l.b16 %v1310
  %v1315 = vunpack.c.h.b16 %v1310
  %v1316 = vunpack.c.l.b16 %v1311
  %v1317 = vunpack.c.h.b16 %v1311
  %v1318 = vpack.c.b16 %v1314, %v1314
  %v1319 = vpack.c.b16 %v1315, %v1315
  %v1320 = vpack.c.b16 %v1316, %v1316
  %v1321 = vpack.c.b16 %v1317, %v1317
  %vm1326 = vcmask 11264
  %1327 = vst.msk [vmem:[%s4] sm:$0xf] %vm1326, %v1318
  %1328 = vst.msk [vmem:[%s4 + $0x4] sm:$0xf] %vm1326, %v1319
  %1329 = vst.msk [vmem:[%s4 + $0x8] sm:$0xf] %vm1326, %v1320
  %1330 = vst.msk [vmem:[%s4 + $0xc] sm:$0xf] %vm1326, %v1321
  %v1331 = vmul.f32 %v406, %v1261
  %v1332 = vmul.f32 %v409, %v1266
  %v1333 = vmul.f32 %v414, %v1271
  %v1334 = vmul.f32 %v417, %v1276
  %v1335 = vadd.f32 %v1331, %v1285
  %v1336 = vadd.f32 %v1332, %v1290
  %v1337 = vadd.f32 %v1333, %v1295
  %v1338 = vadd.f32 %v1334, %v1300
  %v1339 = vmax.f32 %v1335, 0.0
  %v1340 = vmax.f32 %v1336, 0.0
  %v1341 = vmax.f32 %v1337, 0.0
  %v1342 = vmax.f32 %v1338, 0.0
  %v1343 = vpack.c.bf16 %v1340, %v1339
  %v1344 = vpack.c.bf16 %v1342, %v1341
  %v1347 = vunpack.c.l.b16 %v1343
  %v1348 = vunpack.c.h.b16 %v1343
  %v1349 = vunpack.c.l.b16 %v1344
  %v1350 = vunpack.c.h.b16 %v1344
  %v1351 = vpack.c.b16 %v1347, %v1347
  %v1352 = vpack.c.b16 %v1348, %v1348
  %v1353 = vpack.c.b16 %v1349, %v1349
  %v1354 = vpack.c.b16 %v1350, %v1350
  %1359 = vst.msk [vmem:[%s4 + $0x10] sm:$0xf] %vm1326, %v1351
  %1360 = vst.msk [vmem:[%s4 + $0x14] sm:$0xf] %vm1326, %v1352
  %1361 = vst.msk [vmem:[%s4 + $0x18] sm:$0xf] %vm1326, %v1353
  %1362 = vst.msk [vmem:[%s4 + $0x1c] sm:$0xf] %vm1326, %v1354
  %v1363 = vmul.f32 %v422, %v1261
  %v1364 = vmul.f32 %v425, %v1266
  %v1365 = vmul.f32 %v430, %v1271
  %v1366 = vmul.f32 %v433, %v1276
  %v1367 = vadd.f32 %v1363, %v1285
  %v1368 = vadd.f32 %v1364, %v1290
  %v1369 = vadd.f32 %v1365, %v1295
  %v1370 = vadd.f32 %v1366, %v1300
  %v1371 = vmax.f32 %v1367, 0.0
  %v1372 = vmax.f32 %v1368, 0.0
  %v1373 = vmax.f32 %v1369, 0.0
  %v1374 = vmax.f32 %v1370, 0.0
  %v1375 = vpack.c.bf16 %v1372, %v1371
  %v1376 = vpack.c.bf16 %v1374, %v1373
  %v1379 = vunpack.c.l.b16 %v1375
  %v1380 = vunpack.c.h.b16 %v1375
  %v1381 = vunpack.c.l.b16 %v1376
  %v1382 = vunpack.c.h.b16 %v1376
  %v1383 = vpack.c.b16 %v1379, %v1379
  %v1384 = vpack.c.b16 %v1380, %v1380
  %v1385 = vpack.c.b16 %v1381, %v1381
  %v1386 = vpack.c.b16 %v1382, %v1382
  %1391 = vst.msk [vmem:[%s4 + $0x20] sm:$0xf] %vm1326, %v1383
  %1392 = vst.msk [vmem:[%s4 + $0x24] sm:$0xf] %vm1326, %v1384
  %1393 = vst.msk [vmem:[%s4 + $0x28] sm:$0xf] %vm1326, %v1385
  %1394 = vst.msk [vmem:[%s4 + $0x2c] sm:$0xf] %vm1326, %v1386
  %v1395 = vmul.f32 %v438, %v1261
  %v1396 = vmul.f32 %v441, %v1266
  %v1397 = vmul.f32 %v446, %v1271
  %v1398 = vmul.f32 %v449, %v1276
  %v1399 = vadd.f32 %v1395, %v1285
  %v1400 = vadd.f32 %v1396, %v1290
  %v1401 = vadd.f32 %v1397, %v1295
  %v1402 = vadd.f32 %v1398, %v1300
  %v1403 = vmax.f32 %v1399, 0.0
  %v1404 = vmax.f32 %v1400, 0.0
  %v1405 = vmax.f32 %v1401, 0.0
  %v1406 = vmax.f32 %v1402, 0.0
  %v1407 = vpack.c.bf16 %v1404, %v1403
  %v1408 = vpack.c.bf16 %v1406, %v1405
  %v1411 = vunpack.c.l.b16 %v1407
  %v1412 = vunpack.c.h.b16 %v1407
  %v1413 = vunpack.c.l.b16 %v1408
  %v1414 = vunpack.c.h.b16 %v1408
  %v1415 = vpack.c.b16 %v1411, %v1411
  %v1416 = vpack.c.b16 %v1412, %v1412
  %v1417 = vpack.c.b16 %v1413, %v1413
  %v1418 = vpack.c.b16 %v1414, %v1414
  %1423 = vst.msk [vmem:[%s4 + $0x30] sm:$0xf] %vm1326, %v1415
  %1424 = vst.msk [vmem:[%s4 + $0x34] sm:$0xf] %vm1326, %v1416
  %1425 = vst.msk [vmem:[%s4 + $0x38] sm:$0xf] %vm1326, %v1417
  %1426 = vst.msk [vmem:[%s4 + $0x3c] sm:$0xf] %vm1326, %v1418
  %v1427 = vmul.f32 %v454, %v1261
  %v1428 = vmul.f32 %v457, %v1266
  %v1429 = vmul.f32 %v462, %v1271
  %v1430 = vmul.f32 %v465, %v1276
  %v1431 = vadd.f32 %v1427, %v1285
  %v1432 = vadd.f32 %v1428, %v1290
  %v1433 = vadd.f32 %v1429, %v1295
  %v1434 = vadd.f32 %v1430, %v1300
  %v1435 = vmax.f32 %v1431, 0.0
  %v1436 = vmax.f32 %v1432, 0.0
  %v1437 = vmax.f32 %v1433, 0.0
  %v1438 = vmax.f32 %v1434, 0.0
  %v1439 = vpack.c.bf16 %v1436, %v1435
  %v1440 = vpack.c.bf16 %v1438, %v1437
  %v1443 = vunpack.c.l.b16 %v1439
  %v1444 = vunpack.c.h.b16 %v1439
  %v1445 = vunpack.c.l.b16 %v1440
  %v1446 = vunpack.c.h.b16 %v1440
  %v1447 = vpack.c.b16 %v1443, %v1443
  %v1448 = vpack.c.b16 %v1444, %v1444
  %v1449 = vpack.c.b16 %v1445, %v1445
  %v1450 = vpack.c.b16 %v1446, %v1446
  %1455 = vst.msk [vmem:[%s4 + $0x40] sm:$0xf] %vm1326, %v1447
  %1456 = vst.msk [vmem:[%s4 + $0x44] sm:$0xf] %vm1326, %v1448
  %1457 = vst.msk [vmem:[%s4 + $0x48] sm:$0xf] %vm1326, %v1449
  %1458 = vst.msk [vmem:[%s4 + $0x4c] sm:$0xf] %vm1326, %v1450
  %v1459 = vmul.f32 %v470, %v1261
  %v1460 = vmul.f32 %v473, %v1266
  %v1461 = vmul.f32 %v478, %v1271
  %v1462 = vmul.f32 %v481, %v1276
  %v1463 = vadd.f32 %v1459, %v1285
  %v1464 = vadd.f32 %v1460, %v1290
  %v1465 = vadd.f32 %v1461, %v1295
  %v1466 = vadd.f32 %v1462, %v1300
  %v1467 = vmax.f32 %v1463, 0.0
  %v1468 = vmax.f32 %v1464, 0.0
  %v1469 = vmax.f32 %v1465, 0.0
  %v1470 = vmax.f32 %v1466, 0.0
  %v1471 = vpack.c.bf16 %v1468, %v1467
  %v1472 = vpack.c.bf16 %v1470, %v1469
  %v1475 = vunpack.c.l.b16 %v1471
  %v1476 = vunpack.c.h.b16 %v1471
  %v1477 = vunpack.c.l.b16 %v1472
  %v1478 = vunpack.c.h.b16 %v1472
  %v1479 = vpack.c.b16 %v1475, %v1475
  %v1480 = vpack.c.b16 %v1476, %v1476
  %v1481 = vpack.c.b16 %v1477, %v1477
  %v1482 = vpack.c.b16 %v1478, %v1478
  %1487 = vst.msk [vmem:[%s4 + $0x50] sm:$0xf] %vm1326, %v1479
  %1488 = vst.msk [vmem:[%s4 + $0x54] sm:$0xf] %vm1326, %v1480
  %1489 = vst.msk [vmem:[%s4 + $0x58] sm:$0xf] %vm1326, %v1481
  %1490 = vst.msk [vmem:[%s4 + $0x5c] sm:$0xf] %vm1326, %v1482
  %v1491 = vmul.f32 %v486, %v1261
  %v1492 = vmul.f32 %v489, %v1266
  %v1493 = vmul.f32 %v494, %v1271
  %v1494 = vmul.f32 %v497, %v1276
  %v1495 = vadd.f32 %v1491, %v1285
  %v1496 = vadd.f32 %v1492, %v1290
  %v1497 = vadd.f32 %v1493, %v1295
  %v1498 = vadd.f32 %v1494, %v1300
  %v1499 = vmax.f32 %v1495, 0.0
  %v1500 = vmax.f32 %v1496, 0.0
  %v1501 = vmax.f32 %v1497, 0.0
  %v1502 = vmax.f32 %v1498, 0.0
  %v1503 = vpack.c.bf16 %v1500, %v1499
  %v1504 = vpack.c.bf16 %v1502, %v1501
  %v1507 = vunpack.c.l.b16 %v1503
  %v1508 = vunpack.c.h.b16 %v1503
  %v1509 = vunpack.c.l.b16 %v1504
  %v1510 = vunpack.c.h.b16 %v1504
  %v1511 = vpack.c.b16 %v1507, %v1507
  %v1512 = vpack.c.b16 %v1508, %v1508
  %v1513 = vpack.c.b16 %v1509, %v1509
  %v1514 = vpack.c.b16 %v1510, %v1510
  %1519 = vst.msk [vmem:[%s4 + $0x60] sm:$0xf] %vm1326, %v1511
  %1520 = vst.msk [vmem:[%s4 + $0x64] sm:$0xf] %vm1326, %v1512
  %1521 = vst.msk [vmem:[%s4 + $0x68] sm:$0xf] %vm1326, %v1513
  %1522 = vst.msk [vmem:[%s4 + $0x6c] sm:$0xf] %vm1326, %v1514
  %v1523 = vmul.f32 %v502, %v1261
  %v1524 = vmul.f32 %v505, %v1266
  %v1525 = vmul.f32 %v510, %v1271
  %v1526 = vmul.f32 %v513, %v1276
  %v1527 = vadd.f32 %v1523, %v1285
  %v1528 = vadd.f32 %v1524, %v1290
  %v1529 = vadd.f32 %v1525, %v1295
  %v1530 = vadd.f32 %v1526, %v1300
  %v1531 = vmax.f32 %v1527, 0.0
  %v1532 = vmax.f32 %v1528, 0.0
  %v1533 = vmax.f32 %v1529, 0.0
  %v1534 = vmax.f32 %v1530, 0.0
  %v1535 = vpack.c.bf16 %v1532, %v1531
  %v1536 = vpack.c.bf16 %v1534, %v1533
  %v1539 = vunpack.c.l.b16 %v1535
  %v1540 = vunpack.c.h.b16 %v1535
  %v1541 = vunpack.c.l.b16 %v1536
  %v1542 = vunpack.c.h.b16 %v1536
  %v1543 = vpack.c.b16 %v1539, %v1539
  %v1544 = vpack.c.b16 %v1540, %v1540
  %v1545 = vpack.c.b16 %v1541, %v1541
  %v1546 = vpack.c.b16 %v1542, %v1542
  %1551 = vst.msk [vmem:[%s4 + $0x70] sm:$0xf] %vm1326, %v1543
  %1552 = vst.msk [vmem:[%s4 + $0x74] sm:$0xf] %vm1326, %v1544
  %1553 = vst.msk [vmem:[%s4 + $0x78] sm:$0xf] %vm1326, %v1545
  %1554 = vst.msk [vmem:[%s4 + $0x7c] sm:$0xf] %vm1326, %v1546
  %v1555 = vmul.f32 %v518, %v1261
  %v1556 = vmul.f32 %v521, %v1266
  %v1557 = vmul.f32 %v526, %v1271
  %v1558 = vmul.f32 %v529, %v1276
  %v1559 = vadd.f32 %v1555, %v1285
  %v1560 = vadd.f32 %v1556, %v1290
  %v1561 = vadd.f32 %v1557, %v1295
  %v1562 = vadd.f32 %v1558, %v1300
  %v1563 = vmax.f32 %v1559, 0.0
  %v1564 = vmax.f32 %v1560, 0.0
  %v1565 = vmax.f32 %v1561, 0.0
  %v1566 = vmax.f32 %v1562, 0.0
  %v1567 = vpack.c.bf16 %v1564, %v1563
  %v1568 = vpack.c.bf16 %v1566, %v1565
  %v1571 = vunpack.c.l.b16 %v1567
  %v1572 = vunpack.c.h.b16 %v1567
  %v1573 = vunpack.c.l.b16 %v1568
  %v1574 = vunpack.c.h.b16 %v1568
  %v1575 = vpack.c.b16 %v1571, %v1571
  %v1576 = vpack.c.b16 %v1572, %v1572
  %v1577 = vpack.c.b16 %v1573, %v1573
  %v1578 = vpack.c.b16 %v1574, %v1574
  %1583 = vst.msk [vmem:[%s4 + $0x80] sm:$0xf] %vm1326, %v1575
  %1584 = vst.msk [vmem:[%s4 + $0x84] sm:$0xf] %vm1326, %v1576
  %1585 = vst.msk [vmem:[%s4 + $0x88] sm:$0xf] %vm1326, %v1577
  %1586 = vst.msk [vmem:[%s4 + $0x8c] sm:$0xf] %vm1326, %v1578
  %v1587 = vmul.f32 %v534, %v1261
  %v1588 = vmul.f32 %v537, %v1266
  %v1589 = vmul.f32 %v542, %v1271
  %v1590 = vmul.f32 %v545, %v1276
  %v1591 = vadd.f32 %v1587, %v1285
  %v1592 = vadd.f32 %v1588, %v1290
  %v1593 = vadd.f32 %v1589, %v1295
  %v1594 = vadd.f32 %v1590, %v1300
  %v1595 = vmax.f32 %v1591, 0.0
  %v1596 = vmax.f32 %v1592, 0.0
  %v1597 = vmax.f32 %v1593, 0.0
  %v1598 = vmax.f32 %v1594, 0.0
  %v1599 = vpack.c.bf16 %v1596, %v1595
  %v1600 = vpack.c.bf16 %v1598, %v1597
  %v1603 = vunpack.c.l.b16 %v1599
  %v1604 = vunpack.c.h.b16 %v1599
  %v1605 = vunpack.c.l.b16 %v1600
  %v1606 = vunpack.c.h.b16 %v1600
  %v1607 = vpack.c.b16 %v1603, %v1603
  %v1608 = vpack.c.b16 %v1604, %v1604
  %v1609 = vpack.c.b16 %v1605, %v1605
  %v1610 = vpack.c.b16 %v1606, %v1606
  %1615 = vst.msk [vmem:[%s4 + $0x90] sm:$0xf] %vm1326, %v1607
  %1616 = vst.msk [vmem:[%s4 + $0x94] sm:$0xf] %vm1326, %v1608
  %1617 = vst.msk [vmem:[%s4 + $0x98] sm:$0xf] %vm1326, %v1609
  %1618 = vst.msk [vmem:[%s4 + $0x9c] sm:$0xf] %vm1326, %v1610
  %v1619 = vmul.f32 %v550, %v1261
  %v1620 = vmul.f32 %v553, %v1266
  %v1621 = vmul.f32 %v558, %v1271
  %v1622 = vmul.f32 %v561, %v1276
  %v1623 = vadd.f32 %v1619, %v1285
  %v1624 = vadd.f32 %v1620, %v1290
  %v1625 = vadd.f32 %v1621, %v1295
  %v1626 = vadd.f32 %v1622, %v1300
  %v1627 = vmax.f32 %v1623, 0.0
  %v1628 = vmax.f32 %v1624, 0.0
  %v1629 = vmax.f32 %v1625, 0.0
  %v1630 = vmax.f32 %v1626, 0.0
  %v1631 = vpack.c.bf16 %v1628, %v1627
  %v1632 = vpack.c.bf16 %v1630, %v1629
  %v1635 = vunpack.c.l.b16 %v1631
  %v1636 = vunpack.c.h.b16 %v1631
  %v1637 = vunpack.c.l.b16 %v1632
  %v1638 = vunpack.c.h.b16 %v1632
  %v1639 = vpack.c.b16 %v1635, %v1635
  %v1640 = vpack.c.b16 %v1636, %v1636
  %v1641 = vpack.c.b16 %v1637, %v1637
  %v1642 = vpack.c.b16 %v1638, %v1638
  %1647 = vst.msk [vmem:[%s4 + $0xa0] sm:$0xf] %vm1326, %v1639
  %1648 = vst.msk [vmem:[%s4 + $0xa4] sm:$0xf] %vm1326, %v1640
  %1649 = vst.msk [vmem:[%s4 + $0xa8] sm:$0xf] %vm1326, %v1641
  %1650 = vst.msk [vmem:[%s4 + $0xac] sm:$0xf] %vm1326, %v1642
  %v1651 = vmul.f32 %v566, %v1261
  %v1652 = vmul.f32 %v569, %v1266
  %v1653 = vmul.f32 %v574, %v1271
  %v1654 = vmul.f32 %v577, %v1276
  %v1655 = vadd.f32 %v1651, %v1285
  %v1656 = vadd.f32 %v1652, %v1290
  %v1657 = vadd.f32 %v1653, %v1295
  %v1658 = vadd.f32 %v1654, %v1300
  %v1659 = vmax.f32 %v1655, 0.0
  %v1660 = vmax.f32 %v1656, 0.0
  %v1661 = vmax.f32 %v1657, 0.0
  %v1662 = vmax.f32 %v1658, 0.0
  %v1663 = vpack.c.bf16 %v1660, %v1659
  %v1664 = vpack.c.bf16 %v1662, %v1661
  %v1667 = vunpack.c.l.b16 %v1663
  %v1668 = vunpack.c.h.b16 %v1663
  %v1669 = vunpack.c.l.b16 %v1664
  %v1670 = vunpack.c.h.b16 %v1664
  %v1671 = vpack.c.b16 %v1667, %v1667
  %v1672 = vpack.c.b16 %v1668, %v1668
  %v1673 = vpack.c.b16 %v1669, %v1669
  %v1674 = vpack.c.b16 %v1670, %v1670
  %1679 = vst.msk [vmem:[%s4 + $0xb0] sm:$0xf] %vm1326, %v1671
  %1680 = vst.msk [vmem:[%s4 + $0xb4] sm:$0xf] %vm1326, %v1672
  %1681 = vst.msk [vmem:[%s4 + $0xb8] sm:$0xf] %vm1326, %v1673
  %1682 = vst.msk [vmem:[%s4 + $0xbc] sm:$0xf] %vm1326, %v1674
  %v1683 = vmul.f32 %v582, %v1261
  %v1684 = vmul.f32 %v585, %v1266
  %v1685 = vmul.f32 %v590, %v1271
  %v1686 = vmul.f32 %v593, %v1276
  %v1687 = vadd.f32 %v1683, %v1285
  %v1688 = vadd.f32 %v1684, %v1290
  %v1689 = vadd.f32 %v1685, %v1295
  %v1690 = vadd.f32 %v1686, %v1300
  %v1691 = vmax.f32 %v1687, 0.0
  %v1692 = vmax.f32 %v1688, 0.0
  %v1693 = vmax.f32 %v1689, 0.0
  %v1694 = vmax.f32 %v1690, 0.0
  %v1695 = vpack.c.bf16 %v1692, %v1691
  %v1696 = vpack.c.bf16 %v1694, %v1693
  %v1699 = vunpack.c.l.b16 %v1695
  %v1700 = vunpack.c.h.b16 %v1695
  %v1701 = vunpack.c.l.b16 %v1696
  %v1702 = vunpack.c.h.b16 %v1696
  %v1703 = vpack.c.b16 %v1699, %v1699
  %v1704 = vpack.c.b16 %v1700, %v1700
  %v1705 = vpack.c.b16 %v1701, %v1701
  %v1706 = vpack.c.b16 %v1702, %v1702
  %1711 = vst.msk [vmem:[%s4 + $0xc0] sm:$0xf] %vm1326, %v1703
  %1712 = vst.msk [vmem:[%s4 + $0xc4] sm:$0xf] %vm1326, %v1704
  %1713 = vst.msk [vmem:[%s4 + $0xc8] sm:$0xf] %vm1326, %v1705
  %1714 = vst.msk [vmem:[%s4 + $0xcc] sm:$0xf] %vm1326, %v1706
  %v1715 = vmul.f32 %v598, %v1261
  %v1716 = vmul.f32 %v601, %v1266
  %v1717 = vmul.f32 %v606, %v1271
  %v1718 = vmul.f32 %v609, %v1276
  %v1719 = vadd.f32 %v1715, %v1285
  %v1720 = vadd.f32 %v1716, %v1290
  %v1721 = vadd.f32 %v1717, %v1295
  %v1722 = vadd.f32 %v1718, %v1300
  %v1723 = vmax.f32 %v1719, 0.0
  %v1724 = vmax.f32 %v1720, 0.0
  %v1725 = vmax.f32 %v1721, 0.0
  %v1726 = vmax.f32 %v1722, 0.0
  %v1727 = vpack.c.bf16 %v1724, %v1723
  %v1728 = vpack.c.bf16 %v1726, %v1725
  %v1731 = vunpack.c.l.b16 %v1727
  %v1732 = vunpack.c.h.b16 %v1727
  %v1733 = vunpack.c.l.b16 %v1728
  %v1734 = vunpack.c.h.b16 %v1728
  %v1735 = vpack.c.b16 %v1731, %v1731
  %v1736 = vpack.c.b16 %v1732, %v1732
  %v1737 = vpack.c.b16 %v1733, %v1733
  %v1738 = vpack.c.b16 %v1734, %v1734
  %1743 = vst.msk [vmem:[%s4 + $0xd0] sm:$0xf] %vm1326, %v1735
  %1744 = vst.msk [vmem:[%s4 + $0xd4] sm:$0xf] %vm1326, %v1736
  %1745 = vst.msk [vmem:[%s4 + $0xd8] sm:$0xf] %vm1326, %v1737
  %1746 = vst.msk [vmem:[%s4 + $0xdc] sm:$0xf] %vm1326, %v1738
  %v1747 = vmul.f32 %v614, %v1261
  %v1748 = vmul.f32 %v617, %v1266
  %v1749 = vmul.f32 %v622, %v1271
  %v1750 = vmul.f32 %v625, %v1276
  %v1751 = vadd.f32 %v1747, %v1285
  %v1752 = vadd.f32 %v1748, %v1290
  %v1753 = vadd.f32 %v1749, %v1295
  %v1754 = vadd.f32 %v1750, %v1300
  %v1755 = vmax.f32 %v1751, 0.0
  %v1756 = vmax.f32 %v1752, 0.0
  %v1757 = vmax.f32 %v1753, 0.0
  %v1758 = vmax.f32 %v1754, 0.0
  %v1759 = vpack.c.bf16 %v1756, %v1755
  %v1760 = vpack.c.bf16 %v1758, %v1757
  %v1763 = vunpack.c.l.b16 %v1759
  %v1764 = vunpack.c.h.b16 %v1759
  %v1765 = vunpack.c.l.b16 %v1760
  %v1766 = vunpack.c.h.b16 %v1760
  %v1767 = vpack.c.b16 %v1763, %v1763
  %v1768 = vpack.c.b16 %v1764, %v1764
  %v1769 = vpack.c.b16 %v1765, %v1765
  %v1770 = vpack.c.b16 %v1766, %v1766
  %1775 = vst.msk [vmem:[%s4 + $0xe0] sm:$0xf] %vm1326, %v1767
  %1776 = vst.msk [vmem:[%s4 + $0xe4] sm:$0xf] %vm1326, %v1768
  %1777 = vst.msk [vmem:[%s4 + $0xe8] sm:$0xf] %vm1326, %v1769
  %1778 = vst.msk [vmem:[%s4 + $0xec] sm:$0xf] %vm1326, %v1770
  %v1779 = vmul.f32 %v630, %v1261
  %v1780 = vmul.f32 %v633, %v1266
  %v1781 = vmul.f32 %v638, %v1271
  %v1782 = vmul.f32 %v641, %v1276
  %v1783 = vadd.f32 %v1779, %v1285
  %v1784 = vadd.f32 %v1780, %v1290
  %v1785 = vadd.f32 %v1781, %v1295
  %v1786 = vadd.f32 %v1782, %v1300
  %v1787 = vmax.f32 %v1783, 0.0
  %v1788 = vmax.f32 %v1784, 0.0
  %v1789 = vmax.f32 %v1785, 0.0
  %v1790 = vmax.f32 %v1786, 0.0
  %v1791 = vpack.c.bf16 %v1788, %v1787
  %v1792 = vpack.c.bf16 %v1790, %v1789
  %v1795 = vunpack.c.l.b16 %v1791
  %v1796 = vunpack.c.h.b16 %v1791
  %v1797 = vunpack.c.l.b16 %v1792
  %v1798 = vunpack.c.h.b16 %v1792
  %v1799 = vpack.c.b16 %v1795, %v1795
  %v1800 = vpack.c.b16 %v1796, %v1796
  %v1801 = vpack.c.b16 %v1797, %v1797
  %v1802 = vpack.c.b16 %v1798, %v1798
  %1807 = vst.msk [vmem:[%s4 + $0xf0] sm:$0xf] %vm1326, %v1799
  %1808 = vst.msk [vmem:[%s4 + $0xf4] sm:$0xf] %vm1326, %v1800
  %1809 = vst.msk [vmem:[%s4 + $0xf8] sm:$0xf] %vm1326, %v1801
  %1810 = vst.msk [vmem:[%s4 + $0xfc] sm:$0xf] %vm1326, %v1802
  // Predicated region
  $region18: #{dc_generator_forward.4} parent=0 // pred_check
    _
  $region19: #{dc_generator_forward.4} parent=0 // pred_check_branch
    %1812 = sbr.rel (0) target = $region21
  $region20: #{dc_generator_forward.4} parent=0 // pred_region
    _
  $region21: #{dc_generator_forward.4} parent=0 // pred_fallthru
    _
  // Predicated region
  $region22: #{dc_generator_forward.4} parent=0 // pred_check
    _
  $region23: #{dc_generator_forward.4} parent=0 // pred_check_branch
    %1814 = sbr.rel (0) target = $region25
  $region24: #{dc_generator_forward.4} parent=0 // pred_region
    _
  $region25: #{dc_generator_forward.4} parent=0 // pred_fallthru
    _

// kernel: dc_generator_forward.5
$region0: #{dc_generator_forward.5}
  #allocation0 [shape = 'u32[]', space=smem, size = 0x4, offset = 0x4, fixed_abs, tag = 'smem constant byte address 0x4 - core index']
  #allocation1 [shape = 'u32[144,128]{1,0:T(1,128)}', space=vmem, size = 0x12000, scoped, tag = 'internal scratch']
  %s0 = inlined_call_operand.vmem [shape: bf16[64,288], index: 0, kind: input, shape index: {}]
  %s1 = inlined_call_operand.vmem [shape: bf16[288,32], index: 1, kind: input, shape index: {}]
  %s2 = inlined_call_operand.vmem [shape: f32[16,1], index: 2, kind: input, shape index: {}]
  %s3 = inlined_call_operand.vmem [shape: f32[16,1], index: 3, kind: input, shape index: {}]
  %s4 = inlined_call_operand.vmem [shape: bf16[64,32], index: 4, kind: output, shape index: {}]
  %s5 = sld [smem:[#allocation0]]
  $region26: #{dc_generator_forward.5} parent=0
    _
  %s7 = ssub.s32 1, %s5
  %s8 = scalar_select 0, %s7, %s5
  // Predicated region
  $region2: #{dc_generator_forward.5} parent=0 // pred_check
    _
  $region3: #{dc_generator_forward.5} parent=0 // pred_check_branch
    %10 = sbr.rel (0) target = $region5
  $region4: #{dc_generator_forward.5} parent=0 // pred_region
    _
  $region5: #{dc_generator_forward.5} parent=0 // pred_fallthru
    _
  // Predicated region
  $region6: #{dc_generator_forward.5} parent=0 // pred_check
    _
  $region7: #{dc_generator_forward.5} parent=0 // pred_check_branch
    %12 = sbr.rel (0) target = $region9
  $region8: #{dc_generator_forward.5} parent=0 // pred_region
    _
  $region9: #{dc_generator_forward.5} parent=0 // pred_fallthru
    _
  // Predicated region
  $region10: #{dc_generator_forward.5} parent=0 // pred_check
    _
  $region11: #{dc_generator_forward.5} parent=0 // pred_check_branch
    %14 = sbr.rel (0) target = $region13
  $region12: #{dc_generator_forward.5} parent=0 // pred_region
    _
  $region13: #{dc_generator_forward.5} parent=0 // pred_fallthru
    _
  // Predicated region
  $region14: #{dc_generator_forward.5} parent=0 // pred_check
    _
  $region15: #{dc_generator_forward.5} parent=0 // pred_check_branch
    %16 = sbr.rel (0) target = $region17
  $region16: #{dc_generator_forward.5} parent=0 // pred_region
    _
  $region17: #{dc_generator_forward.5} parent=0 // pred_fallthru
    _
  %v18 = vld [vmem:[%s0] sm:$0xff]
  %v19 = vld [vmem:[%s0 + $0x8] sm:$0xf]
  %v20 = vld [vmem:[%s0 + $0xc] sm:$0xff]
  %v21 = vld [vmem:[%s0 + $0x14] sm:$0xf]
  %v22 = vld [vmem:[%s0 + $0x18] sm:$0xff]
  %v23 = vld [vmem:[%s0 + $0x20] sm:$0xf]
  %v24 = vld [vmem:[%s0 + $0x24] sm:$0xff]
  %v25 = vld [vmem:[%s0 + $0x2c] sm:$0xf]
  %v26 = vld [vmem:[%s0 + $0x30] sm:$0xff]
  %v27 = vld [vmem:[%s0 + $0x38] sm:$0xf]
  %v28 = vld [vmem:[%s0 + $0x3c] sm:$0xff]
  %v29 = vld [vmem:[%s0 + $0x44] sm:$0xf]
  %v30 = vld [vmem:[%s0 + $0x48] sm:$0xff]
  %v31 = vld [vmem:[%s0 + $0x50] sm:$0xf]
  %v32 = vld [vmem:[%s0 + $0x54] sm:$0xff]
  %v33 = vld [vmem:[%s0 + $0x5c] sm:$0xf]
  %v34 = vld [vmem:[%s1] sm:$0xf]
  %v35 = vld [vmem:[%s1 + $0x4] sm:$0xf]
  %v36 = vld [vmem:[%s1 + $0x8] sm:$0xf]
  %v37 = vld [vmem:[%s1 + $0xc] sm:$0xf]
  %v38 = vld [vmem:[%s1 + $0x10] sm:$0xf]
  %v39 = vld [vmem:[%s1 + $0x14] sm:$0xf]
  %v40 = vld [vmem:[%s1 + $0x18] sm:$0xf]
  %v41 = vld [vmem:[%s1 + $0x1c] sm:$0xf]
  %v42 = vld [vmem:[%s1 + $0x20] sm:$0xf]
  %v43 = vld [vmem:[%s1 + $0x24] sm:$0xf]
  %v44 = vld [vmem:[%s1 + $0x28] sm:$0xf]
  %v45 = vld [vmem:[%s1 + $0x2c] sm:$0xf]
  %v46 = vld [vmem:[%s1 + $0x30] sm:$0xf]
  %v47 = vld [vmem:[%s1 + $0x34] sm:$0xf]
  %v48 = vld [vmem:[%s1 + $0x38] sm:$0xf]
  %v49 = vld [vmem:[%s1 + $0x3c] sm:$0xf]
  %v50 = vld [vmem:[%s1 + $0x40] sm:$0xf]
  %v51 = vld [vmem:[%s1 + $0x44] sm:$0xf]
  %v52 = vld [vmem:[%s1 + $0x48] sm:$0xf]
  %v53 = vld [vmem:[%s1 + $0x4c] sm:$0xf]
  %v54 = vld [vmem:[%s1 + $0x50] sm:$0xf]
  %v55 = vld [vmem:[%s1 + $0x54] sm:$0xf]
  %v56 = vld [vmem:[%s1 + $0x58] sm:$0xf]
  %v57 = vld [vmem:[%s1 + $0x5c] sm:$0xf]
  %v58 = vld [vmem:[%s1 + $0x60] sm:$0xf]
  %v59 = vld [vmem:[%s1 + $0x64] sm:$0xf]
  %v60 = vld [vmem:[%s1 + $0x68] sm:$0xf]
  %v61 = vld [vmem:[%s1 + $0x6c] sm:$0xf]
  %v62 = vld [vmem:[%s1 + $0x70] sm:$0xf]
  %v63 = vld [vmem:[%s1 + $0x74] sm:$0xf]
  %v64 = vld [vmem:[%s1 + $0x78] sm:$0xf]
  %v65 = vld [vmem:[%s1 + $0x7c] sm:$0xf]
  %v66 = vld [vmem:[%s1 + $0x80] sm:$0xf]
  %v67 = vld [vmem:[%s1 + $0x84] sm:$0xf]
  %v68 = vld [vmem:[%s1 + $0x88] sm:$0xf]
  %v69 = vld [vmem:[%s1 + $0x8c] sm:$0xf]
  %v86 = vunpack.c.l.b16 %v18
  %v87 = vunpack.c.h.b16 %v18
  %v88 = vunpack.c.l.b16 %v19
  %v89 = vunpack.c.l.b16 %v20
  %v90 = vunpack.c.h.b16 %v20
  %v91 = vunpack.c.l.b16 %v21
  %v92 = vunpack.c.l.b16 %v22
  %v93 = vunpack.c.h.b16 %v22
  %v94 = vunpack.c.l.b16 %v23
  %v95 = vunpack.c.l.b16 %v24
  %v96 = vunpack.c.h.b16 %v24
  %v97 = vunpack.c.l.b16 %v25
  %v98 = vunpack.c.l.b16 %v26
  %v99 = vunpack.c.h.b16 %v26
  %v100 = vunpack.c.l.b16 %v27
  %v101 = vunpack.c.l.b16 %v28
  %v102 = vunpack.c.h.b16 %v28
  %v103 = vunpack.c.l.b16 %v29
  %v104 = vunpack.c.l.b16 %v30
  %v105 = vunpack.c.h.b16 %v30
  %v106 = vunpack.c.l.b16 %v31
  %v107 = vunpack.c.l.b16 %v32
  %v108 = vunpack.c.h.b16 %v32
  %v109 = vunpack.c.l.b16 %v33
  %v110 = vpack.c.b16 %v89, %v86
  %v111 = vpack.c.b16 %v90, %v87
  %v112 = vpack.c.b16 %v91, %v88
  %v113 = vpack.c.b16 %v95, %v92
  %v114 = vpack.c.b16 %v96, %v93
  %v115 = vpack.c.b16 %v97, %v94
  %v116 = vpack.c.b16 %v101, %v98
  %v117 = vpack.c.b16 %v102, %v99
  %v118 = vpack.c.b16 %v103, %v100
  %v119 = vpack.c.b16 %v107, %v104
  %v120 = vpack.c.b16 %v108, %v105
  %v121 = vpack.c.b16 %v109, %v106
  %v166 = vunpack.c.l.b16 %v34
  %v167 = vunpack.c.l.b16 %v35
  %v168 = vunpack.c.l.b16 %v36
  %v169 = vunpack.c.l.b16 %v37
  %v170 = vunpack.c.l.b16 %v38
  %v171 = vunpack.c.l.b16 %v39
  %v172 = vunpack.c.l.b16 %v40
  %v173 = vunpack.c.l.b16 %v41
  %v174 = vunpack.c.l.b16 %v42
  %v175 = vunpack.c.l.b16 %v43
  %v176 = vunpack.c.l.b16 %v44
  %v177 = vunpack.c.l.b16 %v45
  %v178 = vunpack.c.l.b16 %v46
  %v179 = vunpack.c.l.b16 %v47
  %v180 = vunpack.c.l.b16 %v48
  %v181 = vunpack.c.l.b16 %v49
  %v182 = vunpack.c.l.b16 %v50
  %v183 = vunpack.c.l.b16 %v51
  %v184 = vunpack.c.l.b16 %v52
  %v185 = vunpack.c.l.b16 %v53
  %v186 = vunpack.c.l.b16 %v54
  %v187 = vunpack.c.l.b16 %v55
  %v188 = vunpack.c.l.b16 %v56
  %v189 = vunpack.c.l.b16 %v57
  %v190 = vunpack.c.l.b16 %v58
  %v191 = vunpack.c.l.b16 %v59
  %v192 = vunpack.c.l.b16 %v60
  %v193 = vunpack.c.l.b16 %v61
  %v194 = vunpack.c.l.b16 %v62
  %v195 = vunpack.c.l.b16 %v63
  %v196 = vunpack.c.l.b16 %v64
  %v197 = vunpack.c.l.b16 %v65
  %v198 = vunpack.c.l.b16 %v66
  %v199 = vunpack.c.l.b16 %v67
  %v200 = vunpack.c.l.b16 %v68
  %v201 = vunpack.c.l.b16 %v69
  %v202 = vpack.c.b16 %v167, %v166
  %v203 = vpack.c.b16 %v169, %v168
  %v204 = vpack.c.b16 %v171, %v170
  %v205 = vpack.c.b16 %v173, %v172
  %v206 = vpack.c.b16 %v175, %v174
  %v207 = vpack.c.b16 %v177, %v176
  %v208 = vpack.c.b16 %v179, %v178
  %v209 = vpack.c.b16 %v181, %v180
  %v210 = vpack.c.b16 %v183, %v182
  %v211 = vpack.c.b16 %v185, %v184
  %v212 = vpack.c.b16 %v187, %v186
  %v213 = vpack.c.b16 %v189, %v188
  %v214 = vpack.c.b16 %v191, %v190
  %v215 = vpack.c.b16 %v193, %v192
  %v216 = vpack.c.b16 %v195, %v194
  %v217 = vpack.c.b16 %v197, %v196
  %v218 = vpack.c.b16 %v199, %v198
  %v219 = vpack.c.b16 %v201, %v200
  %vm238 = vcmask 261120
  %v240 = vsel %vm238, %v112, 0
  %v243 = vsel %vm238, %v115, 0
  %v246 = vsel %vm238, %v118, 0
  %v249 = vsel %vm238, %v121, 0
  %251 = vmatprep.subr.bf16.mxu0 0
  %252 = vmatpush1.bf16.msra.mxu0 %v209
  %253 = vmatprep.subr.bf16.mxu0 0
  %254 = vmatpush1.bf16.msra.mxu0 %v208
  %255 = vmatprep.subr.bf16.mxu0 0
  %256 = vmatpush1.bf16.msra.mxu0 %v207
  %257 = vmatprep.subr.bf16.mxu0 0
  %258 = vmatpush1.bf16.msra.mxu0 %v206
  %259 = vmatprep.subr.bf16.mxu0 0
  %260 = vmatpush1.bf16.msra.mxu0 %v205
  %261 = vmatprep.subr.bf16.mxu0 0
  %262 = vmatpush1.bf16.msra.mxu0 %v204
  %263 = vmatprep.subr.bf16.mxu0 0
  %264 = vmatpush1.bf16.msra.mxu0 %v203
  %265 = vmatprep.subr.bf16.mxu0 0
  %266 = vmatpush1.bf16.msra.mxu0 %v202
  %267 = vmatprep.subr.bf16.mxu0 0
  %268 = vmatpush2.bf16.msra.mxu0 %v217
  %269 = vmatprep.subr.bf16.mxu0 0
  %270 = vmatpush2.bf16.msra.mxu0 %v216
  %271 = vmatprep.subr.bf16.mxu0 0
  %272 = vmatpush2.bf16.msra.mxu0 %v215
  %273 = vmatprep.subr.bf16.mxu0 0
  %274 = vmatpush2.bf16.msra.mxu0 %v214
  %275 = vmatprep.subr.bf16.mxu0 0
  %276 = vmatpush2.bf16.msra.mxu0 %v213
  %277 = vmatprep.subr.bf16.mxu0 0
  %278 = vmatpush2.bf16.msra.mxu0 %v212
  %279 = vmatprep.subr.bf16.mxu0 0
  %280 = vmatpush2.bf16.msra.mxu0 %v211
  %281 = vmatprep.subr.bf16.mxu0 0
  %282 = vmatpush2.bf16.msra.mxu0 %v210
  %283 = vmatprep.mubr.bf16.mxu0 %v111
  %284 = vmatmul.mubr.bf16.gmra.mxu0 %v110
  %v285 = vpop.f32.mrf.mxu0
  %v286 = vadd.f32 0.0, %v285
  %v287 = vpop.f32.mrf.mxu0
  %v288 = vpop.f32.mrf.mxu0
  %v289 = vadd.f32 0.0, %v288
  %v290 = vpop.f32.mrf.mxu0
  %291 = vmatprep.mubr.bf16.mxu0 %v114
  %292 = vmatmul.mubr.bf16.gmra.mxu0 %v113
  %v293 = vpop.f32.mrf.mxu0
  %v294 = vadd.f32 0.0, %v293
  %v295 = vpop.f32.mrf.mxu0
  %v296 = vpop.f32.mrf.mxu0
  %v297 = vadd.f32 0.0, %v296
  %v298 = vpop.f32.mrf.mxu0
  %299 = vmatprep.mubr.bf16.mxu0 %v117
  %300 = vmatmul.mubr.bf16.gmra.mxu0 %v116
  %v301 = vpop.f32.mrf.mxu0
  %v302 = vadd.f32 0.0, %v301
  %v303 = vpop.f32.mrf.mxu0
  %v304 = vpop.f32.mrf.mxu0
  %v305 = vadd.f32 0.0, %v304
  %v306 = vpop.f32.mrf.mxu0
  %307 = vmatprep.mubr.bf16.mxu0 %v120
  %308 = vmatmul.mubr.bf16.gmra.mxu0 %v119
  %v309 = vpop.f32.mrf.mxu0
  %v310 = vadd.f32 0.0, %v309
  %v311 = vpop.f32.mrf.mxu0
  %v312 = vpop.f32.mrf.mxu0
  %v313 = vadd.f32 0.0, %v312
  %v314 = vpop.f32.mrf.mxu0
  %315 = vdwg.mxu0
  %316 = vmatprep.subr.bf16.mxu0 0
  %317 = vmatpush1.bf16.msra.mxu0 0
  %318 = vmatprep.subr.bf16.mxu0 0
  %319 = vmatpush1.bf16.msra.mxu0 0
  %320 = vmatprep.subr.bf16.mxu0 0
  %321 = vmatpush1.bf16.msra.mxu0 0
  %322 = vmatprep.subr.bf16.mxu0 0
  %323 = vmatpush1.bf16.msra.mxu0 0
  %324 = vmatprep.subr.bf16.mxu0 0
  %325 = vmatpush1.bf16.msra.mxu0 0
  %326 = vmatprep.subr.bf16.mxu0 0
  %327 = vmatpush1.bf16.msra.mxu0 0
  %328 = vmatprep.subr.bf16.mxu0 0
  %329 = vmatpush1.bf16.msra.mxu0 %v219
  %330 = vmatprep.subr.bf16.mxu0 0
  %331 = vmatpush1.bf16.msra.mxu0 %v218
  %332 = vmatprep.subr.bf16.mxu0 0
  %333 = vmatpush2.bf16.msra.mxu0 0
  %334 = vmatprep.subr.bf16.mxu0 0
  %335 = vmatpush2.bf16.msra.mxu0 0
  %336 = vmatprep.subr.bf16.mxu0 0
  %337 = vmatpush2.bf16.msra.mxu0 0
  %338 = vmatprep.subr.bf16.mxu0 0
  %339 = vmatpush2.bf16.msra.mxu0 0
  %340 = vmatprep.subr.bf16.mxu0 0
  %341 = vmatpush2.bf16.msra.mxu0 0
  %342 = vmatprep.subr.bf16.mxu0 0
  %343 = vmatpush2.bf16.msra.mxu0 0
  %344 = vmatprep.subr.bf16.mxu0 0
  %345 = vmatpush2.bf16.msra.mxu0 0
  %346 = vmatprep.subr.bf16.mxu0 0
  %347 = vmatpush2.bf16.msra.mxu0 0
  %348 = vmatprep.mubr.bf16.mxu0 0
  %349 = vmatmul.mubr.bf16.gmra.mxu0 %v240
  %v350 = vpop.f32.mrf.mxu0
  %v351 = vadd.f32 %v286, %v350
  %v352 = vpop.f32.mrf.mxu0
  %v353 = vpop.f32.mrf.mxu0
  %v354 = vadd.f32 %v289, %v353
  %v355 = vpop.f32.mrf.mxu0
  %356 = vmatprep.mubr.bf16.mxu0 0
  %357 = vmatmul.mubr.bf16.gmra.mxu0 %v243
  %v358 = vpop.f32.mrf.mxu0
  %v359 = vadd.f32 %v294, %v358
  %v360 = vpop.f32.mrf.mxu0
  %v361 = vpop.f32.mrf.mxu0
  %v362 = vadd.f32 %v297, %v361
  %v363 = vpop.f32.mrf.mxu0
  %364 = vmatprep.mubr.bf16.mxu0 0
  %365 = vmatmul.mubr.bf16.gmra.mxu0 %v246
  %v366 = vpop.f32.mrf.mxu0
  %v367 = vadd.f32 %v302, %v366
  %v368 = vpop.f32.mrf.mxu0
  %v369 = vpop.f32.mrf.mxu0
  %v370 = vadd.f32 %v305, %v369
  %v371 = vpop.f32.mrf.mxu0
  %372 = vmatprep.mubr.bf16.mxu0 0
  %373 = vmatmul.mubr.bf16.gmra.mxu0 %v249
  %v374 = vpop.f32.mrf.mxu0
  %v375 = vadd.f32 %v310, %v374
  %v376 = vpop.f32.mrf.mxu0
  %v377 = vpop.f32.mrf.mxu0
  %v378 = vadd.f32 %v313, %v377
  %v379 = vpop.f32.mrf.mxu0
  %380 = vdwg.mxu0
  %v381 = vsel %vm238, %v351, 0.0
  %382 = vadd.xlane.f32.xlu0 %v381
  %v383 = vpop.xlane.xlu0 %382
  %v384 = vsel %vm238, %v354, 0.0
  %385 = vadd.xlane.f32.xlu0 %v384
  %v386 = vpop.xlane.xlu0 %385
  %v387 = vsel %vm238, %v359, 0.0
  %388 = vadd.xlane.f32.xlu0 %v387
  %v389 = vpop.xlane.xlu0 %388
  %v390 = vsel %vm238, %v362, 0.0
  %391 = vadd.xlane.f32.xlu0 %v390
  %v392 = vpop.xlane.xlu0 %391
  %v393 = vsel %vm238, %v367, 0.0
  %394 = vadd.xlane.f32.xlu0 %v393
  %v395 = vpop.xlane.xlu0 %394
  %v396 = vsel %vm238, %v370, 0.0
  %397 = vadd.xlane.f32.xlu0 %v396
  %v398 = vpop.xlane.xlu0 %397
  %v399 = vsel %vm238, %v375, 0.0
  %400 = vadd.xlane.f32.xlu0 %v399
  %v401 = vpop.xlane.xlu0 %400
  %v402 = vsel %vm238, %v378, 0.0
  %403 = vadd.xlane.f32.xlu0 %v402
  %v404 = vpop.xlane.xlu0 %403
  %v405 = vmul.f32 %v351, %v351
  %v406 = vmul.f32 %v354, %v354
  %v407 = vmul.f32 %v359, %v359
  %v408 = vmul.f32 %v362, %v362
  %v409 = vmul.f32 %v367, %v367
  %v410 = vmul.f32 %v370, %v370
  %v411 = vmul.f32 %v375, %v375
  %v412 = vmul.f32 %v378, %v378
  %v413 = vsel %vm238, %v405, 0.0
  %414 = vadd.xlane.f32.xlu0 %v413
  %v415 = vpop.xlane.xlu0 %414
  %v416 = vsel %vm238, %v406, 0.0
  %417 = vadd.xlane.f32.xlu0 %v416
  %v418 = vpop.xlane.xlu0 %417
  %v419 = vsel %vm238, %v407, 0.0
  %420 = vadd.xlane.f32.xlu0 %v419
  %v421 = vpop.xlane.xlu0 %420
  %v422 = vsel %vm238, %v408, 0.0
  %423 = vadd.xlane.f32.xlu0 %v422
  %v424 = vpop.xlane.xlu0 %423
  %v425 = vsel %vm238, %v409, 0.0
  %426 = vadd.xlane.f32.xlu0 %v425
  %v427 = vpop.xlane.xlu0 %426
  %v428 = vsel %vm238, %v410, 0.0
  %429 = vadd.xlane.f32.xlu0 %v428
  %v430 = vpop.xlane.xlu0 %429
  %v431 = vsel %vm238, %v411, 0.0
  %432 = vadd.xlane.f32.xlu0 %v431
  %v433 = vpop.xlane.xlu0 %432
  %v434 = vsel %vm238, %v412, 0.0
  %435 = vadd.xlane.f32.xlu0 %v434
  %v436 = vpop.xlane.xlu0 %435
  %v437 = vadd.f32 %v383, %v389
  %v438 = vadd.f32 %v386, %v392
  %v439 = vadd.f32 %v415, %v421
  %v440 = vadd.f32 %v418, %v424
  %v441 = vadd.f32 %v437, %v395
  %v442 = vadd.f32 %v438, %v398
  %v443 = vadd.f32 %v439, %v427
  %v444 = vadd.f32 %v440, %v430
  %v445 = vadd.f32 %v441, %v401
  %v446 = vadd.f32 %v442, %v404
  %v447 = vadd.f32 %v443, %v433
  %v448 = vadd.f32 %v444, %v436
  %v449 = vrcp.pop 128.0
  %v450 = vmul.f32 %v445, %v449
  %v451 = vmul.f32 %v446, %v449
  %v452 = vmul.f32 %v447, %v449
  %v453 = vmul.f32 %v448, %v449
  %v454 = vmul.f32 %v450, %v450
  %v455 = vmul.f32 %v451, %v451
  %v456 = vsub.f32 %v452, %v454
  %v457 = vsub.f32 %v453, %v455
  %v458 = vadd.f32 %v456, 1e-05
  %v459 = vadd.f32 %v457, 1e-05
  %v460 = vrsqrt.pop %v458
  %v461 = vrsqrt.pop %v459
  %v462 = vld [vmem:[%s2] sm:$0xff]
  %v463 = vld [vmem:[%s2 + $0x8] sm:$0xff]
  %v464 = vmul.f32 %v462, %v460
  %v465 = vmul.f32 %v463, %v461
  %v466 = vld [vmem:[%s3] sm:$0xff]
  %v467 = vld [vmem:[%s3 + $0x8] sm:$0xff]
  %v468 = vmul.f32 %v450, %v464
  %v469 = vmul.f32 %v451, %v465
  %v470 = vsub.f32 %v466, %v468
  %v471 = vsub.f32 %v467, %v469
  %473 = vset.pattern.permute.xlu0 0
  %474 = vperm.xlu0 %473, %v464
  %v475 = vpop.permute.xlu0 %474
  %478 = vset.pattern.permute.xlu0 0
  %479 = vperm.xlu0 %478, %v465
  %v480 = vpop.permute.xlu0 %479
  %v482 = vmul.f32 %v351, %v475
  %v483 = vmul.f32 %v354, %v480
  %485 = vset.pattern.permute.xlu0 0
  %486 = vperm.xlu0 %485, %v470
  %v487 = vpop.permute.xlu0 %486
  %490 = vset.pattern.permute.xlu0 0
  %491 = vperm.xlu0 %490, %v471
  %v492 = vpop.permute.xlu0 %491
  %v494 = vadd.f32 %v482, %v487
  %v495 = vadd.f32 %v483, %v492
  %v496 = vmax.f32 %v494, 0.0
  %v497 = vmax.f32 %v495, 0.0
  %v498 = vpack.c.bf16 %v497, %v496
  %v500 = vunpack.c.l.b16 %v498
  %v501 = vunpack.c.h.b16 %v498
  %v502 = vpack.c.b16 %v500, %v500
  %v503 = vpack.c.b16 %v501, %v501
  %vm506 = vcmask 257024
  %507 = vst.msk [vmem:[%s4] sm:$0xf] %vm506, %v502
  %508 = vst.msk [vmem:[%s4 + $0x4] sm:$0xf] %vm506, %v503
  %v509 = vmul.f32 %v359, %v475
  %v510 = vmul.f32 %v362, %v480
  %v511 = vadd.f32 %v509, %v487
  %v512 = vadd.f32 %v510, %v492
  %v513 = vmax.f32 %v511, 0.0
  %v514 = vmax.f32 %v512, 0.0
  %v515 = vpack.c.bf16 %v514, %v513
  %v517 = vunpack.c.l.b16 %v515
  %v518 = vunpack.c.h.b16 %v515
  %v519 = vpack.c.b16 %v517, %v517
  %v520 = vpack.c.b16 %v518, %v518
  %523 = vst.msk [vmem:[%s4 + $0x8] sm:$0xf] %vm506, %v519
  %524 = vst.msk [vmem:[%s4 + $0xc] sm:$0xf] %vm506, %v520
  %v525 = vmul.f32 %v367, %v475
  %v526 = vmul.f32 %v370, %v480
  %v527 = vadd.f32 %v525, %v487
  %v528 = vadd.f32 %v526, %v492
  %v529 = vmax.f32 %v527, 0.0
  %v530 = vmax.f32 %v528, 0.0
  %v531 = vpack.c.bf16 %v530, %v529
  %v533 = vunpack.c.l.b16 %v531
  %v534 = vunpack.c.h.b16 %v531
  %v535 = vpack.c.b16 %v533, %v533
  %v536 = vpack.c.b16 %v534, %v534
  %539 = vst.msk [vmem:[%s4 + $0x10] sm:$0xf] %vm506, %v535
  %540 = vst.msk [vmem:[%s4 + $0x14] sm:$0xf] %vm506, %v536
  %v541 = vmul.f32 %v375, %v475
  %v542 = vmul.f32 %v378, %v480
  %v543 = vadd.f32 %v541, %v487
  %v544 = vadd.f32 %v542, %v492
  %v545 = vmax.f32 %v543, 0.0
  %v546 = vmax.f32 %v544, 0.0
  %v547 = vpack.c.bf16 %v546, %v545
  %v549 = vunpack.c.l.b16 %v547
  %v550 = vunpack.c.h.b16 %v547
  %v551 = vpack.c.b16 %v549, %v549
  %v552 = vpack.c.b16 %v550, %v550
  %555 = vst.msk [vmem:[%s4 + $0x18] sm:$0xf] %vm506, %v551
  %556 = vst.msk [vmem:[%s4 + $0x1c] sm:$0xf] %vm506, %v552
  // Predicated region
  $region18: #{dc_generator_forward.5} parent=0 // pred_check
    _
  $region19: #{dc_generator_forward.5} parent=0 // pred_check_branch
    %558 = sbr.rel (0) target = $region21
  $region20: #{dc_generator_forward.5} parent=0 // pred_region
    _
  $region21: #{dc_generator_forward.5} parent=0 // pred_fallthru
    _
  // Predicated region
  $region22: #{dc_generator_forward.5} parent=0 // pred_check
    _
  $region23: #{dc_generator_forward.5} parent=0 // pred_check_branch
    %560 = sbr.rel (0) target = $region25
  $region24: #{dc_generator_forward.5} parent=0 // pred_region
    _
  $region25: #{dc_generator_forward.5} parent=0 // pred_fallthru
    _

// kernel: dc_generator_forward.6
$region0: #{dc_generator_forward.6}
  #allocation0 [shape = 'u32[]', space=smem, size = 0x4, offset = 0x4, fixed_abs, tag = 'smem constant byte address 0x4 - core index']
  #allocation1 [shape = 'u32[144,128]{1,0:T(1,128)}', space=vmem, size = 0x12000, scoped, tag = 'internal scratch']
  %s0 = inlined_call_operand.vmem [shape: bf16[32,144], index: 0, kind: input, shape index: {}]
  %s1 = inlined_call_operand.vmem [shape: bf16[144,128], index: 1, kind: input, shape index: {}]
  %s2 = inlined_call_operand.vmem [shape: f32[8,1], index: 2, kind: input, shape index: {}]
  %s3 = inlined_call_operand.vmem [shape: f32[8,1], index: 3, kind: input, shape index: {}]
  %s4 = inlined_call_operand.vmem [shape: bf16[32,128], index: 4, kind: output, shape index: {}]
  %s5 = sld [smem:[#allocation0]]
  $region26: #{dc_generator_forward.6} parent=0
    _
  %s7 = ssub.s32 1, %s5
  %s8 = scalar_select 0, %s7, %s5
  // Predicated region
  $region2: #{dc_generator_forward.6} parent=0 // pred_check
    _
  $region3: #{dc_generator_forward.6} parent=0 // pred_check_branch
    %10 = sbr.rel (0) target = $region5
  $region4: #{dc_generator_forward.6} parent=0 // pred_region
    _
  $region5: #{dc_generator_forward.6} parent=0 // pred_fallthru
    _
  // Predicated region
  $region6: #{dc_generator_forward.6} parent=0 // pred_check
    _
  $region7: #{dc_generator_forward.6} parent=0 // pred_check_branch
    %12 = sbr.rel (0) target = $region9
  $region8: #{dc_generator_forward.6} parent=0 // pred_region
    _
  $region9: #{dc_generator_forward.6} parent=0 // pred_fallthru
    _
  // Predicated region
  $region10: #{dc_generator_forward.6} parent=0 // pred_check
    _
  $region11: #{dc_generator_forward.6} parent=0 // pred_check_branch
    %14 = sbr.rel (0) target = $region13
  $region12: #{dc_generator_forward.6} parent=0 // pred_region
    _
  $region13: #{dc_generator_forward.6} parent=0 // pred_fallthru
    _
  // Predicated region
  $region14: #{dc_generator_forward.6} parent=0 // pred_check
    _
  $region15: #{dc_generator_forward.6} parent=0 // pred_check_branch
    %16 = sbr.rel (0) target = $region17
  $region16: #{dc_generator_forward.6} parent=0 // pred_region
    _
  $region17: #{dc_generator_forward.6} parent=0 // pred_fallthru
    _
  %v18 = vld [vmem:[%s0] sm:$0xff]
  %v19 = vld [vmem:[%s0 + $0x8] sm:$0xff]
  %v20 = vld [vmem:[%s0 + $0x10] sm:$0xff]
  %v21 = vld [vmem:[%s0 + $0x18] sm:$0xff]
  %v22 = vld [vmem:[%s1] sm:$0xf]
  %v23 = vld [vmem:[%s1 + $0x4] sm:$0xf]
  %v24 = vld [vmem:[%s1 + $0x8] sm:$0xf]
  %v25 = vld [vmem:[%s1 + $0xc] sm:$0xf]
  %v26 = vld [vmem:[%s1 + $0x10] sm:$0xf]
  %v27 = vld [vmem:[%s1 + $0x14] sm:$0xf]
  %v28 = vld [vmem:[%s1 + $0x18] sm:$0xf]
  %v29 = vld [vmem:[%s1 + $0x1c] sm:$0xf]
  %v30 = vld [vmem:[%s1 + $0x20] sm:$0xf]
  %v31 = vld [vmem:[%s1 + $0x24] sm:$0xf]
  %v32 = vld [vmem:[%s1 + $0x28] sm:$0xf]
  %v33 = vld [vmem:[%s1 + $0x2c] sm:$0xf]
  %v34 = vld [vmem:[%s1 + $0x30] sm:$0xf]
  %v35 = vld [vmem:[%s1 + $0x34] sm:$0xf]
  %v36 = vld [vmem:[%s1 + $0x38] sm:$0xf]
  %v37 = vld [vmem:[%s1 + $0x3c] sm:$0xf]
  %v38 = vld [vmem:[%s1 + $0x40] sm:$0xf]
  %v39 = vld [vmem:[%s1 + $0x44] sm:$0xf]
  %v44 = vunpack.c.l.b16 %v18
  %v45 = vunpack.c.h.b16 %v18
  %v46 = vunpack.c.l.b16 %v19
  %v47 = vunpack.c.h.b16 %v19
  %v48 = vunpack.c.l.b16 %v20
  %v49 = vunpack.c.h.b16 %v20
  %v50 = vunpack.c.l.b16 %v21
  %v51 = vunpack.c.h.b16 %v21
  %v52 = vpack.c.b16 %v46, %v44
  %v53 = vpack.c.b16 %v47, %v45
  %v54 = vpack.c.b16 %v50, %v48
  %v55 = vpack.c.b16 %v51, %v49
  %v76 = vunpack.c.l.b16 %v22
  %v77 = vunpack.c.l.b16 %v23
  %v78 = vunpack.c.l.b16 %v24
  %v79 = vunpack.c.l.b16 %v25
  %v80 = vunpack.c.l.b16 %v26
  %v81 = vunpack.c.l.b16 %v27
  %v82 = vunpack.c.l.b16 %v28
  %v83 = vunpack.c.l.b16 %v29
  %v84 = vunpack.c.l.b16 %v30
  %v85 = vunpack.c.l.b16 %v31
  %v86 = vunpack.c.l.b16 %v32
  %v87 = vunpack.c.l.b16 %v33
  %v88 = vunpack.c.l.b16 %v34
  %v89 = vunpack.c.l.b16 %v35
  %v90 = vunpack.c.l.b16 %v36
  %v91 = vunpack.c.l.b16 %v37
  %v92 = vunpack.c.l.b16 %v38
  %v93 = vunpack.c.l.b16 %v39
  %v94 = vpack.c.b16 %v77, %v76
  %v95 = vpack.c.b16 %v79, %v78
  %v96 = vpack.c.b16 %v81, %v80
  %v97 = vpack.c.b16 %v83, %v82
  %v98 = vpack.c.b16 %v85, %v84
  %v99 = vpack.c.b16 %v87, %v86
  %v100 = vpack.c.b16 %v89, %v88
  %v101 = vpack.c.b16 %v91, %v90
  %v102 = vpack.c.b16 %v93, %v92
  %vm112 = vcmask 130048
  %v114 = vsel %vm112, %v53, 0
  %v117 = vsel %vm112, %v55, 0
  %119 = vmatprep.subr.bf16.mxu0 0
  %120 = vmatpush1.bf16.msra.mxu0 %v101
  %121 = vmatprep.subr.bf16.mxu0 0
  %122 = vmatpush1.bf16.msra.mxu0 %v100
  %123 = vmatprep.subr.bf16.mxu0 0
  %124 = vmatpush1.bf16.msra.mxu0 %v99
  %125 = vmatprep.subr.bf16.mxu0 0
  %126 = vmatpush1.bf16.msra.mxu0 %v98
  %127 = vmatprep.subr.bf16.mxu0 0
  %128 = vmatpush1.bf16.msra.mxu0 %v97
  %129 = vmatprep.subr.bf16.mxu0 0
  %130 = vmatpush1.bf16.msra.mxu0 %v96
  %131 = vmatprep.subr.bf16.mxu0 0
  %132 = vmatpush1.bf16.msra.mxu0 %v95
  %133 = vmatprep.subr.bf16.mxu0 0
  %134 = vmatpush1.bf16.msra.mxu0 %v94
  %135 = vmatprep.subr.bf16.mxu0 0
  %136 = vmatpush2.bf16.msra.mxu0 0
  %137 = vmatprep.subr.bf16.mxu0 0
  %138 = vmatpush2.bf16.msra.mxu0 0
  %139 = vmatprep.subr.bf16.mxu0 0
  %140 = vmatpush2.bf16.msra.mxu0 0
  %141 = vmatprep.subr.bf16.mxu0 0
  %142 = vmatpush2.bf16.msra.mxu0 0
  %143 = vmatprep.subr.bf16.mxu0 0
  %144 = vmatpush2.bf16.msra.mxu0 0
  %145 = vmatprep.subr.bf16.mxu0 0
  %146 = vmatpush2.bf16.msra.mxu0 0
  %147 = vmatprep.subr.bf16.mxu0 0
  %148 = vmatpush2.bf16.msra.mxu0 0
  %149 = vmatprep.subr.bf16.mxu0 0
  %150 = vmatpush2.bf16.msra.mxu0 %v102
  %151 = vmatprep.mubr.bf16.mxu0 %v114
  %152 = vmatmul.mubr.bf16.gmra.mxu0 %v52
  %v153 = vpop.f32.mrf.mxu0
  %v154 = vadd.f32 0.0, %v153
  %v155 = vpop.f32.mrf.mxu0
  %v156 = vpop.f32.mrf.mxu0
  %v157 = vadd.f32 0.0, %v156
  %v158 = vpop.f32.mrf.mxu0
  %159 = vmatprep.mubr.bf16.mxu0 %v117
  %160 = vmatmul.mubr.bf16.gmra.mxu0 %v54
  %v161 = vpop.f32.mrf.mxu0
  %v162 = vadd.f32 0.0, %v161
  %v163 = vpop.f32.mrf.mxu0
  %v164 = vpop.f32.mrf.mxu0
  %v165 = vadd.f32 0.0, %v164
  %v166 = vpop.f32.mrf.mxu0
  %167 = vdwg.mxu0
  %168 = vadd.xlane.f32.xlu0 %v154
  %v169 = vpop.xlane.xlu0 %168
  %170 = vadd.xlane.f32.xlu0 %v157
  %v171 = vpop.xlane.xlu0 %170
  %172 = vadd.xlane.f32.xlu0 %v162
  %v173 = vpop.xlane.xlu0 %172
  %174 = vadd.xlane.f32.xlu0 %v165
  %v175 = vpop.xlane.xlu0 %174
  %v176 = vmul.f32 %v154, %v154
  %v177 = vmul.f32 %v157, %v157
  %v178 = vmul.f32 %v162, %v162
  %v179 = vmul.f32 %v165, %v165
  %180 = vadd.xlane.f32.xlu0 %v176
  %v181 = vpop.xlane.xlu0 %180
  %182 = vadd.xlane.f32.xlu0 %v177
  %v183 = vpop.xlane.xlu0 %182
  %184 = vadd.xlane.f32.xlu0 %v178
  %v185 = vpop.xlane.xlu0 %184
  %186 = vadd.xlane.f32.xlu0 %v179
  %v187 = vpop.xlane.xlu0 %186
  %v188 = vadd.f32 %v169, %v171
  %v189 = vadd.f32 %v181, %v183
  %v190 = vadd.f32 %v188, %v173
  %v191 = vadd.f32 %v189, %v185
  %v192 = vadd.f32 %v190, %v175
  %v193 = vadd.f32 %v191, %v187
  %v194 = vrcp.pop 512.0
  %v195 = vmul.f32 %v192, %v194
  %v196 = vmul.f32 %v193, %v194
  %v197 = vmul.f32 %v195, %v195
  %v198 = vsub.f32 %v196, %v197
  %v199 = vadd.f32 %v198, 1e-05
  %v200 = vrsqrt.pop %v199
  %v201 = vld [vmem:[%s2] sm:$0xff]
  %v202 = vmul.f32 %v201, %v200
  %v203 = vld [vmem:[%s3] sm:$0xff]
  %v204 = vmul.f32 %v195, %v202
  %v205 = vsub.f32 %v203, %v204
  %207 = vset.pattern.permute.xlu0 0
  %208 = vperm.xlu0 %207, %v202
  %v209 = vpop.permute.xlu0 %208
  %v211 = vmul.f32 %v154, %v209
  %213 = vset.pattern.permute.xlu0 0
  %214 = vperm.xlu0 %213, %v205
  %v215 = vpop.permute.xlu0 %214
  %v217 = vadd.f32 %v211, %v215
  %v218 = vmax.f32 %v217, 0.0
  %v219 = vpack.c.bf16 %v218, %v218
  %220 = vst [vmem:[%s4] sm:$0xf] %v219
  %v221 = vmul.f32 %v157, %v209
  %v222 = vadd.f32 %v221, %v215
  %v223 = vmax.f32 %v222, 0.0
  %v224 = vpack.c.bf16 %v223, %v223
  %225 = vst [vmem:[%s4 + $0x4] sm:$0xf] %v224
  %v226 = vmul.f32 %v162, %v209
  %v227 = vadd.f32 %v226, %v215
  %v228 = vmax.f32 %v227, 0.0
  %v229 = vpack.c.bf16 %v228, %v228
  %230 = vst [vmem:[%s4 + $0x8] sm:$0xf] %v229
  %v231 = vmul.f32 %v165, %v209
  %v232 = vadd.f32 %v231, %v215
  %v233 = vmax.f32 %v232, 0.0
  %v234 = vpack.c.bf16 %v233, %v233
  %235 = vst [vmem:[%s4 + $0xc] sm:$0xf] %v234
  // Predicated region
  $region18: #{dc_generator_forward.6} parent=0 // pred_check
    _
  $region19: #{dc_generator_forward.6} parent=0 // pred_check_branch
    %237 = sbr.rel (0) target = $region21
  $region20: #{dc_generator_forward.6} parent=0 // pred_region
    _
  $region21: #{dc_generator_forward.6} parent=0 // pred_fallthru
    _
  // Predicated region
  $region22: #{dc_generator_forward.6} parent=0 // pred_check
    _
  $region23: #{dc_generator_forward.6} parent=0 // pred_check_branch
    %239 = sbr.rel (0) target = $region25
  $region24: #{dc_generator_forward.6} parent=0 // pred_region
    _
  $region25: #{dc_generator_forward.6} parent=0 // pred_fallthru
    _

// kernel: dc_generator_forward.7
$region0: #{dc_generator_forward.7}
  #allocation0 [shape = 'u32[]', space=smem, size = 0x4, offset = 0x4, fixed_abs, tag = 'smem constant byte address 0x4 - core index']
  #allocation1 [shape = 'u32[144,128]{1,0:T(1,128)}', space=vmem, size = 0x12000, scoped, tag = 'internal scratch']
  %s0 = inlined_call_operand.vmem [shape: bf16[12,72], index: 0, kind: input, shape index: {}]
  %s1 = inlined_call_operand.vmem [shape: bf16[72,512], index: 1, kind: input, shape index: {}]
  %s2 = inlined_call_operand.vmem [shape: f32[12,512], index: 2, kind: output, shape index: {}]
  %s3 = sld [smem:[#allocation0]]
  $region18: #{dc_generator_forward.7} parent=0
    _
  %s5 = ssub.s32 1, %s3
  %s6 = scalar_select 0, %s5, %s3
  // Predicated region
  $region2: #{dc_generator_forward.7} parent=0 // pred_check
    _
  $region3: #{dc_generator_forward.7} parent=0 // pred_check_branch
    %8 = sbr.rel (0) target = $region5
  $region4: #{dc_generator_forward.7} parent=0 // pred_region
    _
  $region5: #{dc_generator_forward.7} parent=0 // pred_fallthru
    _
  // Predicated region
  $region6: #{dc_generator_forward.7} parent=0 // pred_check
    _
  $region7: #{dc_generator_forward.7} parent=0 // pred_check_branch
    %10 = sbr.rel (0) target = $region9
  $region8: #{dc_generator_forward.7} parent=0 // pred_region
    _
  $region9: #{dc_generator_forward.7} parent=0 // pred_fallthru
    _
  %v12 = vld [vmem:[%s0] sm:$0xf]
  %v13 = vld [vmem:[%s0 + $0x4] sm:$0x3]
  %v14 = vld [vmem:[%s1] sm:$0xff]
  %v15 = vld [vmem:[%s1 + $0x8] sm:$0xff]
  %v16 = vld [vmem:[%s1 + $0x10] sm:$0xff]
  %v17 = vld [vmem:[%s1 + $0x18] sm:$0xff]
  %v18 = vld [vmem:[%s1 + $0x20] sm:$0xff]
  %v19 = vld [vmem:[%s1 + $0x28] sm:$0xff]
  %v20 = vld [vmem:[%s1 + $0x30] sm:$0xff]
  %v21 = vld [vmem:[%s1 + $0x38] sm:$0xff]
  %v22 = vld [vmem:[%s1 + $0x40] sm:$0xff]
  %v23 = vld [vmem:[%s1 + $0x48] sm:$0xff]
  %v24 = vld [vmem:[%s1 + $0x50] sm:$0xff]
  %v25 = vld [vmem:[%s1 + $0x58] sm:$0xff]
  %v26 = vld [vmem:[%s1 + $0x60] sm:$0xff]
  %v27 = vld [vmem:[%s1 + $0x68] sm:$0xff]
  %v28 = vld [vmem:[%s1 + $0x70] sm:$0xff]
  %v29 = vld [vmem:[%s1 + $0x78] sm:$0xff]
  %v30 = vld [vmem:[%s1 + $0x80] sm:$0xff]
  %v31 = vld [vmem:[%s1 + $0x88] sm:$0xff]
  %v34 = vunpack.c.l.b16 %v12
  %v35 = vunpack.c.l.b16 %v13
  %v36 = vpack.c.b16 %v35, %v34
  %v55 = vunpack.c.l.b16 %v14
  %v56 = vunpack.c.h.b16 %v14
  %v57 = vunpack.c.l.b16 %v15
  %v58 = vunpack.c.h.b16 %v15
  %v59 = vunpack.c.l.b16 %v16
  %v60 = vunpack.c.h.b16 %v16
  %v61 = vunpack.c.l.b16 %v17
  %v62 = vunpack.c.h.b16 %v17
  %v63 = vunpack.c.l.b16 %v18
  %v64 = vunpack.c.h.b16 %v18
  %v65 = vunpack.c.l.b16 %v19
  %v66 = vunpack.c.h.b16 %v19
  %v67 = vunpack.c.l.b16 %v20
  %v68 = vunpack.c.h.b16 %v20
  %v69 = vunpack.c.l.b16 %v21
  %v70 = vunpack.c.h.b16 %v21
  %v71 = vunpack.c.l.b16 %v22
  %v72 = vunpack.c.h.b16 %v22
  %v73 = vunpack.c.l.b16 %v23
  %v74 = vunpack.c.h.b16 %v23
  %v75 = vunpack.c.l.b16 %v24
  %v76 = vunpack.c.h.b16 %v24
  %v77 = vunpack.c.l.b16 %v25
  %v78 = vunpack.c.h.b16 %v25
  %v79 = vunpack.c.l.b16 %v26
  %v80 = vunpack.c.h.b16 %v26
  %v81 = vunpack.c.l.b16 %v27
  %v82 = vunpack.c.h.b16 %v27
  %v83 = vunpack.c.l.b16 %v28
  %v84 = vunpack.c.h.b16 %v28
  %v85 = vunpack.c.l.b16 %v29
  %v86 = vunpack.c.h.b16 %v29
  %v87 = vunpack.c.l.b16 %v30
  %v88 = vunpack.c.h.b16 %v30
  %v89 = vunpack.c.l.b16 %v31
  %v90 = vunpack.c.h.b16 %v31
  %v91 = vpack.c.b16 %v59, %v55
  %v92 = vpack.c.b16 %v60, %v56
  %v93 = vpack.c.b16 %v61, %v57
  %v94 = vpack.c.b16 %v62, %v58
  %v95 = vpack.c.b16 %v67, %v63
  %v96 = vpack.c.b16 %v68, %v64
  %v97 = vpack.c.b16 %v69, %v65
  %v98 = vpack.c.b16 %v70, %v66
  %v99 = vpack.c.b16 %v75, %v71
  %v100 = vpack.c.b16 %v76, %v72
  %v101 = vpack.c.b16 %v77, %v73
  %v102 = vpack.c.b16 %v78, %v74
  %v103 = vpack.c.b16 %v83, %v79
  %v104 = vpack.c.b16 %v84, %v80
  %v105 = vpack.c.b16 %v85, %v81
  %v106 = vpack.c.b16 %v86, %v82
  %v107 = vpack.c.b16 %v87, %v87
  %v108 = vpack.c.b16 %v88, %v88
  %v109 = vpack.c.b16 %v89, %v89
  %v110 = vpack.c.b16 %v90, %v90
  %vm127 = vcmask 588800
  %v129 = vsel %vm127, %v36, 0
  %vm131 = vcmask 1043456
  %v133 = vsel %vm131, %v107, 0
  %v136 = vsel %vm131, %v108, 0
  %v139 = vsel %vm131, %v109, 0
  %v142 = vsel %vm131, %v110, 0
  %144 = vmatprep.subr.bf16.mxu0 0
  %145 = vmatpush1.bf16.msra.mxu0 0
  %146 = vmatprep.subr.bf16.mxu0 0
  %147 = vmatpush1.bf16.msra.mxu0 0
  %148 = vmatprep.subr.bf16.mxu0 0
  %149 = vmatpush1.bf16.msra.mxu0 0
  %150 = vmatprep.subr.bf16.mxu0 %v136
  %151 = vmatpush1.bf16.msra.mxu0 %v133
  %152 = vmatprep.subr.bf16.mxu0 %v104
  %153 = vmatpush1.bf16.msra.mxu0 %v103
  %154 = vmatprep.subr.bf16.mxu0 %v100
  %155 = vmatpush1.bf16.msra.mxu0 %v99
  %156 = vmatprep.subr.bf16.mxu0 %v96
  %157 = vmatpush1.bf16.msra.mxu0 %v95
  %158 = vmatprep.subr.bf16.mxu0 %v92
  %159 = vmatpush1.bf16.msra.mxu0 %v91
  %160 = vmatprep.subr.bf16.mxu0 0
  %161 = vmatpush2.bf16.msra.mxu0 0
  %162 = vmatprep.subr.bf16.mxu0 0
  %163 = vmatpush2.bf16.msra.mxu0 0
  %164 = vmatprep.subr.bf16.mxu0 0
  %165 = vmatpush2.bf16.msra.mxu0 0
  %166 = vmatprep.subr.bf16.mxu0 0
  %167 = vmatpush2.bf16.msra.mxu0 0
  %168 = vmatprep.subr.bf16.mxu0 0
  %169 = vmatpush2.bf16.msra.mxu0 0
  %170 = vmatprep.subr.bf16.mxu0 0
  %171 = vmatpush2.bf16.msra.mxu0 0
  %172 = vmatprep.subr.bf16.mxu0 0
  %173 = vmatpush2.bf16.msra.mxu0 0
  %174 = vmatprep.subr.bf16.mxu0 0
  %175 = vmatpush2.bf16.msra.mxu0 0
  %176 = vmatprep.mubr.bf16.mxu0 0
  %177 = vmatmul.mubr.bf16.gmra.mxu0 %v129
  %v178 = vpop.f32.mrf.mxu0
  %v179 = vadd.f32 0.0, %v178
  %v180 = vpop.f32.mrf.mxu0
  %v181 = vadd.f32 0.0, %v180
  %v182 = vpop.f32.mrf.mxu0
  %v183 = vadd.f32 0.0, %v182
  %v184 = vpop.f32.mrf.mxu0
  %v185 = vadd.f32 0.0, %v184
  %186 = vdwg.mxu0
  %187 = vmatprep.subr.bf16.mxu0 0
  %188 = vmatpush1.bf16.msra.mxu0 0
  %189 = vmatprep.subr.bf16.mxu0 0
  %190 = vmatpush1.bf16.msra.mxu0 0
  %191 = vmatprep.subr.bf16.mxu0 0
  %192 = vmatpush1.bf16.msra.mxu0 0
  %193 = vmatprep.subr.bf16.mxu0 %v142
  %194 = vmatpush1.bf16.msra.mxu0 %v139
  %195 = vmatprep.subr.bf16.mxu0 %v106
  %196 = vmatpush1.bf16.msra.mxu0 %v105
  %197 = vmatprep.subr.bf16.mxu0 %v102
  %198 = vmatpush1.bf16.msra.mxu0 %v101
  %199 = vmatprep.subr.bf16.mxu0 %v98
  %200 = vmatpush1.bf16.msra.mxu0 %v97
  %201 = vmatprep.subr.bf16.mxu0 %v94
  %202 = vmatpush1.bf16.msra.mxu0 %v93
  %203 = vmatprep.subr.bf16.mxu0 0
  %204 = vmatpush2.bf16.msra.mxu0 0
  %205 = vmatprep.subr.bf16.mxu0 0
  %206 = vmatpush2.bf16.msra.mxu0 0
  %207 = vmatprep.subr.bf16.mxu0 0
  %208 = vmatpush2.bf16.msra.mxu0 0
  %209 = vmatprep.subr.bf16.mxu0 0
  %210 = vmatpush2.bf16.msra.mxu0 0
  %211 = vmatprep.subr.bf16.mxu0 0
  %212 = vmatpush2.bf16.msra.mxu0 0
  %213 = vmatprep.subr.bf16.mxu0 0
  %214 = vmatpush2.bf16.msra.mxu0 0
  %215 = vmatprep.subr.bf16.mxu0 0
  %216 = vmatpush2.bf16.msra.mxu0 0
  %217 = vmatprep.subr.bf16.mxu0 0
  %218 = vmatpush2.bf16.msra.mxu0 0
  %219 = vmatprep.mubr.bf16.mxu0 0
  %220 = vmatmul.mubr.bf16.gmra.mxu0 %v129
  %v221 = vpop.f32.mrf.mxu0
  %v222 = vadd.f32 0.0, %v221
  %v223 = vpop.f32.mrf.mxu0
  %v224 = vadd.f32 0.0, %v223
  %v225 = vpop.f32.mrf.mxu0
  %v226 = vadd.f32 0.0, %v225
  %v227 = vpop.f32.mrf.mxu0
  %v228 = vadd.f32 0.0, %v227
  %229 = vdwg.mxu0
  %v230 = vtanh.pop %v179
  %v231 = vtanh.pop %v181
  %v232 = vtanh.pop %v222
  %v233 = vtanh.pop %v224
  %v234 = vtanh.pop %v183
  %v235 = vtanh.pop %v185
  %v236 = vtanh.pop %v226
  %v237 = vtanh.pop %v228
  %238 = vst [vmem:[%s2] sm:$0xff] %v230
  %239 = vst [vmem:[%s2 + $0x8] sm:$0xff] %v231
  %240 = vst [vmem:[%s2 + $0x10] sm:$0xff] %v232
  %241 = vst [vmem:[%s2 + $0x18] sm:$0xff] %v233
  %242 = vst [vmem:[%s2 + $0x20] sm:$0xf] %v234
  %243 = vst [vmem:[%s2 + $0x28] sm:$0xf] %v235
  %244 = vst [vmem:[%s2 + $0x30] sm:$0xf] %v236
  %245 = vst [vmem:[%s2 + $0x38] sm:$0xf] %v237
  // Predicated region
  $region10: #{dc_generator_forward.7} parent=0 // pred_check
    _
  $region11: #{dc_generator_forward.7} parent=0 // pred_check_branch
    %247 = sbr.rel (0) target = $region13
  $region12: #{dc_generator_forward.7} parent=0 // pred_region
    _
  $region13: #{dc_generator_forward.7} parent=0 // pred_fallthru
    _
  // Predicated region
  $region14: #{dc_generator_forward.7} parent=0 // pred_check
    _
  $region15: #{dc_generator_forward.7} parent=0 // pred_check_branch
    %249 = sbr.rel (0) target = $region17
  $region16: #{dc_generator_forward.7} parent=0 // pred_region
    _
  $region17: #{dc_generator_forward.7} parent=0 // pred_fallthru
    _

</llo_original>
